<compile_context>
chip_gen: v5e
topology: v5e:2x2
jax: 0.10.0
libtpu: 0.0.40
codegen_flags: <defaults>
</compile_context>

<pallas_src>
import math

import jax
import jax.numpy as jnp
from jax.experimental import pallas as pl
from jax.experimental.pallas import tpu as pltpu


def _round_up(x, m):
    return ((x + m - 1) // m) * m


def _vmem_tile_bytes(shape, dtype):
    """Rough padded-VMEM footprint of one buffer (lane dim -> 128, sublane -> 8)."""
    itemsize = jnp.dtype(dtype).itemsize
    if len(shape) == 1:
        return _round_up(shape[0], 128) * itemsize
    lead = math.prod(shape[:-2]) if len(shape) > 2 else 1
    return lead * _round_up(shape[-2], 8) * _round_up(shape[-1], 128) * itemsize


# ---------------------------------------------------------------------------
# Whole-stack fused kernel
# ---------------------------------------------------------------------------
def _make_stack_kernel(H, W, chans, n_layers, mxu_dtype):
    """chans = (C_in0, C_out0, C_out1, ...); one grid step = one batch image."""

    def kernel(*refs):
        x_ref = refs[0]
        wb = refs[1:1 + 2 * n_layers]
        o_ref = refs[1 + 2 * n_layers]
        buf_a = refs[2 + 2 * n_layers]
        buf_b = refs[3 + 2 * n_layers]

        # The zero borders of the padded scratch buffers implement padding=1.
        # Zero every grid step (tiny) so megacore-sharded steps on v7x never
        # depend on another core's scratch state.
        buf_a[...] = jnp.zeros_like(buf_a)
        buf_b[...] = jnp.zeros_like(buf_b)

        # Load this image's activation into buf_a's interior.
        buf_a[1:H + 1, 1:W + 1, :chans[0]] = x_ref[0].astype(buf_a.dtype)

        bufs = (buf_a, buf_b)
        for l in range(n_layers):
            cin, cout = chans[l], chans[l + 1]
            src = bufs[l % 2]
            dst = bufs[(l + 1) % 2]
            w_ref = wb[2 * l]        # (9, cin, cout)  BN-folded conv taps, mxu_dtype
            b_ref = wb[2 * l + 1]    # (1, cout)       BN-folded bias, f32

            # In-kernel "im2col": 9 shifted VMEM slices, each one MXU dot,
            # accumulated in f32.  No expanded operand ever touches HBM.
            acc = jnp.zeros((H * W, cout), jnp.float32)
            for dy in range(3):
                for dx in range(3):
                    tap = src[dy:dy + H, dx:dx + W, :cin].reshape(H * W, cin)
                    acc = acc + jnp.dot(tap.astype(mxu_dtype),
                                        w_ref[dy * 3 + dx],
                                        preferred_element_type=jnp.float32)

            # Folded-BN bias + ReLU epilogue in f32 (v5e has no bf16 VPU/EUP).
            acc = jnp.maximum(acc + b_ref[...], 0.0)

            if l == n_layers - 1:
                acc = jnp.tanh(acc)                         # fused final nn.Tanh
                o_ref[0] = acc.reshape(H, W, cout).astype(o_ref.dtype)
            else:
                dst[1:H + 1, 1:W + 1, :cout] = (
                    acc.reshape(H, W, cout).astype(dst.dtype))

    return kernel


def deconv2ds_sequential_forward(x, params, *, eps=1e-5, use_bf16=True):
    """x: (N, C0, H, W) NCHW (like the PyTorch module).
    params: list (forward order) of tuples
       (w_tconv (Cin, Cout, 3, 3), bias (Cout,), gamma, beta, run_mean, run_var).
    The whole layer stack runs inside a single pallas_call."""
    N, C0, H, W = x.shape
    n_layers = len(params)
    out_dtype = x.dtype
    mxu_dtype = jnp.bfloat16 if use_bf16 else jnp.float32

    chans = [int(C0)]
    flat_wb = []
    in_specs = [pl.BlockSpec((1, H, W, C0), lambda n: (n, 0, 0, 0))]
    for (w_t, b, gamma, beta, mean, var) in params:
        cin, cout = int(w_t.shape[0]), int(w_t.shape[1])
        chans.append(cout)
        # ConvTranspose2d(k=3,s=1,p=1) == Conv2d(k=3,s=1,p=1) with swapped
        # channel axes and spatially flipped taps.
        w_conv = jnp.flip(w_t, axis=(2, 3)).transpose(1, 0, 2, 3)    # (cout,cin,3,3)
        # Fold inference-mode BatchNorm into the conv weight / bias.
        scale = gamma / jnp.sqrt(var + eps)
        w_fold = w_conv * scale[:, None, None, None]
        b_fold = (b - mean) * scale + beta
        # Tap-major layout (dy, dx, cin, cout) matching the in-kernel tap loop.
        w_taps = w_fold.transpose(2, 3, 1, 0).reshape(9, cin, cout)
        flat_wb += [w_taps.astype(mxu_dtype),
                    b_fold.reshape(1, cout).astype(jnp.float32)]
        in_specs += [pl.BlockSpec((9, cin, cout), lambda n: (0, 0, 0)),
                     pl.BlockSpec((1, cout), lambda n: (0, 0))]

    cmax = max(chans)
    c_last = chans[-1]

    # Single entry/exit layout change for the whole stack: NCHW -> NHWC -> NCHW.
    x_nhwc = x.transpose(0, 2, 3, 1)

    # Explicit VMEM budget: double-buffered x/out tiles + resident weights/bias
    # + two padded activation scratch buffers (with (8,128) layout padding).
    est = 2 * _vmem_tile_bytes((1, H, W, C0), out_dtype)
    est += 2 * _vmem_tile_bytes((1, H, W, c_last), out_dtype)
    for a in flat_wb:
        est += 2 * _vmem_tile_bytes(a.shape, a.dtype)
    est += 2 * _vmem_tile_bytes((H + 2, W + 2, cmax), jnp.float32)
    vmem_limit = int(max(2 * est, 8 * 1024 * 1024))

    kernel = _make_stack_kernel(H, W, tuple(chans), n_layers, mxu_dtype)

    out_nhwc = pl.pallas_call(
        kernel,
        out_shape=jax.ShapeDtypeStruct((N, H, W, c_last), out_dtype),
        grid_spec=pltpu.PrefetchScalarGridSpec(
            num_scalar_prefetch=0,
            grid=(N,),                       # >= 2 steps -> both v7x TCs busy
            in_specs=in_specs,
            out_specs=pl.BlockSpec((1, H, W, c_last), lambda n: (n, 0, 0, 0)),
            scratch_shapes=[
                pltpu.VMEM((H + 2, W + 2, cmax), jnp.float32),
                pltpu.VMEM((H + 2, W + 2, cmax), jnp.float32),
            ],
        ),
        compiler_params=pltpu.CompilerParams(
            dimension_semantics=("parallel",),
            vmem_limit_bytes=vmem_limit),
    )(x_nhwc, *flat_wb)

    return out_nhwc.transpose(0, 3, 1, 2)


# ---------------------------------------------------------------------------
# Pure-JAX reference (unfused BN, same conv-transpose <-> conv identity)
# ---------------------------------------------------------------------------
def reference_forward(x, params, eps=1e-5):
    out = x
    for (w_t, b, gamma, beta, mean, var) in params:
        Cout = w_t.shape[1]
        w_conv = jnp.flip(w_t, axis=(2, 3)).transpose(1, 0, 2, 3)
        out = jax.lax.conv_general_dilated(
            out, w_conv, window_strides=(1, 1), padding=((1, 1), (1, 1)),
            dimension_numbers=("NCHW", "OIHW", "NCHW"),
            precision=jax.lax.Precision.HIGHEST)
        out = out + b.reshape(1, Cout, 1, 1)
        out = (out - mean.reshape(1, -1, 1, 1)) / jnp.sqrt(
            var.reshape(1, -1, 1, 1) + eps)
        out = out * gamma.reshape(1, -1, 1, 1) + beta.reshape(1, -1, 1, 1)
        out = jnp.maximum(out, 0.0)
    return jnp.tanh(out)


if __name__ == "__main__":
    key = jax.random.PRNGKey(0)

    # full_dim = [4, 8, 16] -> layers: ConvT(16->8)+BN+ReLU, ConvT(8->4)+BN+ReLU, tanh
    full_dim = [4, 8, 16]
    N, H, W = 2, 16, 16
    Cin0 = full_dim[-1]

    dim1 = list(reversed(full_dim[:-1]))   # out channels per layer
    dim2 = list(reversed(full_dim[1:]))    # in channels per layer

    n_layers = len(dim1)
    keys = jax.random.split(key, 1 + 6 * n_layers)
    x = jax.random.normal(keys[0], (N, Cin0, H, W), dtype=jnp.float32)

    params = []
    ki = 1
    for cout, cin in zip(dim1, dim2):
        bound = 1.0 / math.sqrt(cin * 9)
        w_t = jax.random.uniform(keys[ki], (cin, cout, 3, 3),
                                 minval=-bound, maxval=bound, dtype=jnp.float32); ki += 1
        b = jax.random.uniform(keys[ki], (cout,),
                               minval=-bound, maxval=bound, dtype=jnp.float32); ki += 1
        gamma = jax.random.uniform(keys[ki], (cout,),
                                   minval=0.5, maxval=1.5, dtype=jnp.float32); ki += 1
        beta = 0.1 * jax.random.normal(keys[ki], (cout,), dtype=jnp.float32); ki += 1
        mean = 0.1 * jax.random.normal(keys[ki], (cout,), dtype=jnp.float32); ki += 1
        var = jax.random.uniform(keys[ki], (cout,),
                                 minval=0.5, maxval=1.5, dtype=jnp.float32); ki += 1
        params.append((w_t, b, gamma, beta, mean, var))

    ref = reference_forward(x, params)

    # f32 MXU-operand path: tight check against the pure-JAX reference.
    out_f32 = deconv2ds_sequential_forward(x, params, use_bf16=False)
    out_f32 = jax.block_until_ready(out_f32)
    assert out_f32.shape == (N, full_dim[0], H, W)
    assert jnp.allclose(out_f32, ref, atol=1e-3, rtol=1e-3), "f32 mismatch vs reference"

    # Default bf16 MXU-operand path (v6e/v7x native): loose check.
    out_bf16 = deconv2ds_sequential_forward(x, params)
    out_bf16 = jax.block_until_ready(out_bf16)
    assert out_bf16.shape == (N, full_dim[0], H, W)
    assert jnp.allclose(out_bf16, ref, atol=5e-2, rtol=5e-2), "bf16 mismatch vs reference"

    print("KERNEL_OK")
</pallas_src>

<mosaic_0001>
module attributes {stable_mosaic.version = 11 : i64} {
  func.func @kernel(%arg0: i32, %arg1: memref<1x16x16x16xf32, #tpu.memory_space<vmem>>, %arg2: memref<9x16x8xf32, #tpu.memory_space<vmem>>, %arg3: memref<1x8xf32, #tpu.memory_space<vmem>>, %arg4: memref<9x8x4xf32, #tpu.memory_space<vmem>>, %arg5: memref<1x4xf32, #tpu.memory_space<vmem>>, %arg6: memref<1x16x16x4xf32, #tpu.memory_space<vmem>>, %arg7: memref<18x18x16xf32, #tpu.memory_space<vmem>>, %arg8: memref<18x18x16xf32, #tpu.memory_space<vmem>>) attributes {dimension_semantics = [#tpu.dimension_semantics<parallel>], iteration_bounds = array<i64: 2>, scalar_prefetch = 0 : i64, scratch_operands = 2 : i64, tpu.core_type = #tpu.core_type<tc>, window_params = [{transform_indices = @transform_0, window_bounds = array<i64: 1, 16, 16, 16>}, {pipeline_mode = #tpu.pipeline_mode<synchronous>, transform_indices = @transform_1, window_bounds = array<i64: 9, 16, 8>}, {pipeline_mode = #tpu.pipeline_mode<synchronous>, transform_indices = @transform_2, window_bounds = array<i64: 1, 8>}, {pipeline_mode = #tpu.pipeline_mode<synchronous>, transform_indices = @transform_3, window_bounds = array<i64: 9, 8, 4>}, {pipeline_mode = #tpu.pipeline_mode<synchronous>, transform_indices = @transform_4, window_bounds = array<i64: 1, 4>}, {transform_indices = @transform_5, window_bounds = array<i64: 1, 16, 16, 4>}]} {
    %cst = arith.constant 0.000000e+00 : f32
    %0 = vector.broadcast %cst : f32 to vector<18x18x16xf32>
    %c0 = arith.constant 0 : index
    %c0_0 = arith.constant 0 : index
    %c0_1 = arith.constant 0 : index
    %1 = vector.load %arg7[%c0, %c0_0, %c0_1] : memref<18x18x16xf32, #tpu.memory_space<vmem>>, vector<18x18x16xf32>
    tpu.vector_store %arg7[%c0, %c0_0, %c0_1], %0 {strides = array<i32>} : memref<18x18x16xf32, #tpu.memory_space<vmem>>, vector<18x18x16xf32>,
    %cst_2 = arith.constant 0.000000e+00 : f32
    %2 = vector.broadcast %cst_2 : f32 to vector<18x18x16xf32>
    %c0_3 = arith.constant 0 : index
    %c0_4 = arith.constant 0 : index
    %c0_5 = arith.constant 0 : index
    %3 = vector.load %arg8[%c0_3, %c0_4, %c0_5] : memref<18x18x16xf32, #tpu.memory_space<vmem>>, vector<18x18x16xf32>
    tpu.vector_store %arg8[%c0_3, %c0_4, %c0_5], %2 {strides = array<i32>} : memref<18x18x16xf32, #tpu.memory_space<vmem>>, vector<18x18x16xf32>,
    %c0_6 = arith.constant 0 : index
    %c0_7 = arith.constant 0 : index
    %c0_8 = arith.constant 0 : index
    %c0_9 = arith.constant 0 : index
    %4 = vector.load %arg1[%c0_6, %c0_7, %c0_8, %c0_9] : memref<1x16x16x16xf32, #tpu.memory_space<vmem>>, vector<1x16x16x16xf32>
    %5 = vector.shape_cast %4 : vector<1x16x16x16xf32> to vector<16x16x16xf32>
    %c1 = arith.constant 1 : index
    %c1_10 = arith.constant 1 : index
    %c0_11 = arith.constant 0 : index
    %6 = vector.load %arg7[%c1, %c1_10, %c0_11] : memref<18x18x16xf32, #tpu.memory_space<vmem>>, vector<16x16x16xf32>
    tpu.vector_store %arg7[%c1, %c1_10, %c0_11], %5 {strides = array<i32>} : memref<18x18x16xf32, #tpu.memory_space<vmem>>, vector<16x16x16xf32>,
    %cst_12 = arith.constant 0.000000e+00 : f32
    %7 = vector.broadcast %cst_12 : f32 to vector<256x8xf32>
    %c0_13 = arith.constant 0 : index
    %c0_14 = arith.constant 0 : index
    %c0_15 = arith.constant 0 : index
    %8 = vector.load %arg7[%c0_13, %c0_14, %c0_15] : memref<18x18x16xf32, #tpu.memory_space<vmem>>, vector<16x16x16xf32>
    %9 = vector.shape_cast %8 : vector<16x16x16xf32> to vector<256x16xf32>
    %c0_16 = arith.constant 0 : index
    %c0_17 = arith.constant 0 : index
    %c0_18 = arith.constant 0 : index
    %10 = vector.load %arg2[%c0_16, %c0_17, %c0_18] : memref<9x16x8xf32, #tpu.memory_space<vmem>>, vector<1x16x8xf32>
    %11 = vector.shape_cast %10 : vector<1x16x8xf32> to vector<16x8xf32>
    %cst_19 = arith.constant dense<0.000000e+00> : vector<256x8xf32>
    %12 = tpu.matmul %9, %11, %cst_19 {dimension_numbers = #tpu.dot_dimension_numbers<[1], [0], [0], [1], [0, 0, 1, 1], [], []>} : vector<256x16xf32>, vector<16x8xf32>, vector<256x8xf32> -> vector<256x8xf32>
    %13 = arith.addf %7, %12 : vector<256x8xf32>
    %c0_20 = arith.constant 0 : index
    %c1_21 = arith.constant 1 : index
    %c0_22 = arith.constant 0 : index
    %14 = vector.load %arg7[%c0_20, %c1_21, %c0_22] : memref<18x18x16xf32, #tpu.memory_space<vmem>>, vector<16x16x16xf32>
    %15 = vector.shape_cast %14 : vector<16x16x16xf32> to vector<256x16xf32>
    %c1_23 = arith.constant 1 : index
    %c0_24 = arith.constant 0 : index
    %c0_25 = arith.constant 0 : index
    %16 = vector.load %arg2[%c1_23, %c0_24, %c0_25] : memref<9x16x8xf32, #tpu.memory_space<vmem>>, vector<1x16x8xf32>
    %17 = vector.shape_cast %16 : vector<1x16x8xf32> to vector<16x8xf32>
    %cst_26 = arith.constant dense<0.000000e+00> : vector<256x8xf32>
    %18 = tpu.matmul %15, %17, %cst_26 {dimension_numbers = #tpu.dot_dimension_numbers<[1], [0], [0], [1], [0, 0, 1, 1], [], []>} : vector<256x16xf32>, vector<16x8xf32>, vector<256x8xf32> -> vector<256x8xf32>
    %19 = arith.addf %13, %18 : vector<256x8xf32>
    %c0_27 = arith.constant 0 : index
    %c2 = arith.constant 2 : index
    %c0_28 = arith.constant 0 : index
    %20 = vector.load %arg7[%c0_27, %c2, %c0_28] : memref<18x18x16xf32, #tpu.memory_space<vmem>>, vector<16x16x16xf32>
    %21 = vector.shape_cast %20 : vector<16x16x16xf32> to vector<256x16xf32>
    %c2_29 = arith.constant 2 : index
    %c0_30 = arith.constant 0 : index
    %c0_31 = arith.constant 0 : index
    %22 = vector.load %arg2[%c2_29, %c0_30, %c0_31] : memref<9x16x8xf32, #tpu.memory_space<vmem>>, vector<1x16x8xf32>
    %23 = vector.shape_cast %22 : vector<1x16x8xf32> to vector<16x8xf32>
    %cst_32 = arith.constant dense<0.000000e+00> : vector<256x8xf32>
    %24 = tpu.matmul %21, %23, %cst_32 {dimension_numbers = #tpu.dot_dimension_numbers<[1], [0], [0], [1], [0, 0, 1, 1], [], []>} : vector<256x16xf32>, vector<16x8xf32>, vector<256x8xf32> -> vector<256x8xf32>
    %25 = arith.addf %19, %24 : vector<256x8xf32>
    %c1_33 = arith.constant 1 : index
    %c0_34 = arith.constant 0 : index
    %c0_35 = arith.constant 0 : index
    %26 = vector.load %arg7[%c1_33, %c0_34, %c0_35] : memref<18x18x16xf32, #tpu.memory_space<vmem>>, vector<16x16x16xf32>
    %27 = vector.shape_cast %26 : vector<16x16x16xf32> to vector<256x16xf32>
    %c3 = arith.constant 3 : index
    %c0_36 = arith.constant 0 : index
    %c0_37 = arith.constant 0 : index
    %28 = vector.load %arg2[%c3, %c0_36, %c0_37] : memref<9x16x8xf32, #tpu.memory_space<vmem>>, vector<1x16x8xf32>
    %29 = vector.shape_cast %28 : vector<1x16x8xf32> to vector<16x8xf32>
    %cst_38 = arith.constant dense<0.000000e+00> : vector<256x8xf32>
    %30 = tpu.matmul %27, %29, %cst_38 {dimension_numbers = #tpu.dot_dimension_numbers<[1], [0], [0], [1], [0, 0, 1, 1], [], []>} : vector<256x16xf32>, vector<16x8xf32>, vector<256x8xf32> -> vector<256x8xf32>
    %31 = arith.addf %25, %30 : vector<256x8xf32>
    %c1_39 = arith.constant 1 : index
    %c1_40 = arith.constant 1 : index
    %c0_41 = arith.constant 0 : index
    %32 = vector.load %arg7[%c1_39, %c1_40, %c0_41] : memref<18x18x16xf32, #tpu.memory_space<vmem>>, vector<16x16x16xf32>
    %33 = vector.shape_cast %32 : vector<16x16x16xf32> to vector<256x16xf32>
    %c4 = arith.constant 4 : index
    %c0_42 = arith.constant 0 : index
    %c0_43 = arith.constant 0 : index
    %34 = vector.load %arg2[%c4, %c0_42, %c0_43] : memref<9x16x8xf32, #tpu.memory_space<vmem>>, vector<1x16x8xf32>
    %35 = vector.shape_cast %34 : vector<1x16x8xf32> to vector<16x8xf32>
    %cst_44 = arith.constant dense<0.000000e+00> : vector<256x8xf32>
    %36 = tpu.matmul %33, %35, %cst_44 {dimension_numbers = #tpu.dot_dimension_numbers<[1], [0], [0], [1], [0, 0, 1, 1], [], []>} : vector<256x16xf32>, vector<16x8xf32>, vector<256x8xf32> -> vector<256x8xf32>
    %37 = arith.addf %31, %36 : vector<256x8xf32>
    %c1_45 = arith.constant 1 : index
    %c2_46 = arith.constant 2 : index
    %c0_47 = arith.constant 0 : index
    %38 = vector.load %arg7[%c1_45, %c2_46, %c0_47] : memref<18x18x16xf32, #tpu.memory_space<vmem>>, vector<16x16x16xf32>
    %39 = vector.shape_cast %38 : vector<16x16x16xf32> to vector<256x16xf32>
    %c5 = arith.constant 5 : index
    %c0_48 = arith.constant 0 : index
    %c0_49 = arith.constant 0 : index
    %40 = vector.load %arg2[%c5, %c0_48, %c0_49] : memref<9x16x8xf32, #tpu.memory_space<vmem>>, vector<1x16x8xf32>
    %41 = vector.shape_cast %40 : vector<1x16x8xf32> to vector<16x8xf32>
    %cst_50 = arith.constant dense<0.000000e+00> : vector<256x8xf32>
    %42 = tpu.matmul %39, %41, %cst_50 {dimension_numbers = #tpu.dot_dimension_numbers<[1], [0], [0], [1], [0, 0, 1, 1], [], []>} : vector<256x16xf32>, vector<16x8xf32>, vector<256x8xf32> -> vector<256x8xf32>
    %43 = arith.addf %37, %42 : vector<256x8xf32>
    %c2_51 = arith.constant 2 : index
    %c0_52 = arith.constant 0 : index
    %c0_53 = arith.constant 0 : index
    %44 = vector.load %arg7[%c2_51, %c0_52, %c0_53] : memref<18x18x16xf32, #tpu.memory_space<vmem>>, vector<16x16x16xf32>
    %45 = vector.shape_cast %44 : vector<16x16x16xf32> to vector<256x16xf32>
    %c6 = arith.constant 6 : index
    %c0_54 = arith.constant 0 : index
    %c0_55 = arith.constant 0 : index
    %46 = vector.load %arg2[%c6, %c0_54, %c0_55] : memref<9x16x8xf32, #tpu.memory_space<vmem>>, vector<1x16x8xf32>
    %47 = vector.shape_cast %46 : vector<1x16x8xf32> to vector<16x8xf32>
    %cst_56 = arith.constant dense<0.000000e+00> : vector<256x8xf32>
    %48 = tpu.matmul %45, %47, %cst_56 {dimension_numbers = #tpu.dot_dimension_numbers<[1], [0], [0], [1], [0, 0, 1, 1], [], []>} : vector<256x16xf32>, vector<16x8xf32>, vector<256x8xf32> -> vector<256x8xf32>
    %49 = arith.addf %43, %48 : vector<256x8xf32>
    %c2_57 = arith.constant 2 : index
    %c1_58 = arith.constant 1 : index
    %c0_59 = arith.constant 0 : index
    %50 = vector.load %arg7[%c2_57, %c1_58, %c0_59] : memref<18x18x16xf32, #tpu.memory_space<vmem>>, vector<16x16x16xf32>
    %51 = vector.shape_cast %50 : vector<16x16x16xf32> to vector<256x16xf32>
    %c7 = arith.constant 7 : index
    %c0_60 = arith.constant 0 : index
    %c0_61 = arith.constant 0 : index
    %52 = vector.load %arg2[%c7, %c0_60, %c0_61] : memref<9x16x8xf32, #tpu.memory_space<vmem>>, vector<1x16x8xf32>
    %53 = vector.shape_cast %52 : vector<1x16x8xf32> to vector<16x8xf32>
    %cst_62 = arith.constant dense<0.000000e+00> : vector<256x8xf32>
    %54 = tpu.matmul %51, %53, %cst_62 {dimension_numbers = #tpu.dot_dimension_numbers<[1], [0], [0], [1], [0, 0, 1, 1], [], []>} : vector<256x16xf32>, vector<16x8xf32>, vector<256x8xf32> -> vector<256x8xf32>
    %55 = arith.addf %49, %54 : vector<256x8xf32>
    %c2_63 = arith.constant 2 : index
    %c2_64 = arith.constant 2 : index
    %c0_65 = arith.constant 0 : index
    %56 = vector.load %arg7[%c2_63, %c2_64, %c0_65] : memref<18x18x16xf32, #tpu.memory_space<vmem>>, vector<16x16x16xf32>
    %57 = vector.shape_cast %56 : vector<16x16x16xf32> to vector<256x16xf32>
    %c8 = arith.constant 8 : index
    %c0_66 = arith.constant 0 : index
    %c0_67 = arith.constant 0 : index
    %58 = vector.load %arg2[%c8, %c0_66, %c0_67] : memref<9x16x8xf32, #tpu.memory_space<vmem>>, vector<1x16x8xf32>
    %59 = vector.shape_cast %58 : vector<1x16x8xf32> to vector<16x8xf32>
    %cst_68 = arith.constant dense<0.000000e+00> : vector<256x8xf32>
    %60 = tpu.matmul %57, %59, %cst_68 {dimension_numbers = #tpu.dot_dimension_numbers<[1], [0], [0], [1], [0, 0, 1, 1], [], []>} : vector<256x16xf32>, vector<16x8xf32>, vector<256x8xf32> -> vector<256x8xf32>
    %61 = arith.addf %55, %60 : vector<256x8xf32>
    %c0_69 = arith.constant 0 : index
    %c0_70 = arith.constant 0 : index
    %62 = vector.load %arg3[%c0_69, %c0_70] : memref<1x8xf32, #tpu.memory_space<vmem>>, vector<1x8xf32>
    %63 = vector.broadcast %62 : vector<1x8xf32> to vector<256x8xf32>
    %64 = arith.addf %61, %63 : vector<256x8xf32>
    %cst_71 = arith.constant 0.000000e+00 : f32
    %65 = vector.broadcast %cst_71 : f32 to vector<256x8xf32>
    %66 = arith.maximumf %64, %65 : vector<256x8xf32>
    %67 = vector.shape_cast %66 : vector<256x8xf32> to vector<16x16x8xf32>
    %c1_72 = arith.constant 1 : index
    %c1_73 = arith.constant 1 : index
    %c0_74 = arith.constant 0 : index
    %68 = vector.load %arg8[%c1_72, %c1_73, %c0_74] : memref<18x18x16xf32, #tpu.memory_space<vmem>>, vector<16x16x8xf32>
    tpu.vector_store %arg8[%c1_72, %c1_73, %c0_74], %67 {strides = array<i32>} : memref<18x18x16xf32, #tpu.memory_space<vmem>>, vector<16x16x8xf32>,
    %cst_75 = arith.constant 0.000000e+00 : f32
    %69 = vector.broadcast %cst_75 : f32 to vector<256x4xf32>
    %c0_76 = arith.constant 0 : index
    %c0_77 = arith.constant 0 : index
    %c0_78 = arith.constant 0 : index
    %70 = vector.load %arg8[%c0_76, %c0_77, %c0_78] : memref<18x18x16xf32, #tpu.memory_space<vmem>>, vector<16x16x8xf32>
    %71 = vector.shape_cast %70 : vector<16x16x8xf32> to vector<256x8xf32>
    %c0_79 = arith.constant 0 : index
    %c0_80 = arith.constant 0 : index
    %c0_81 = arith.constant 0 : index
    %72 = vector.load %arg4[%c0_79, %c0_80, %c0_81] : memref<9x8x4xf32, #tpu.memory_space<vmem>>, vector<1x8x4xf32>
    %73 = vector.shape_cast %72 : vector<1x8x4xf32> to vector<8x4xf32>
    %cst_82 = arith.constant dense<0.000000e+00> : vector<256x4xf32>
    %74 = tpu.matmul %71, %73, %cst_82 {dimension_numbers = #tpu.dot_dimension_numbers<[1], [0], [0], [1], [0, 0, 1, 1], [], []>} : vector<256x8xf32>, vector<8x4xf32>, vector<256x4xf32> -> vector<256x4xf32>
    %75 = arith.addf %69, %74 : vector<256x4xf32>
    %c0_83 = arith.constant 0 : index
    %c1_84 = arith.constant 1 : index
    %c0_85 = arith.constant 0 : index
    %76 = vector.load %arg8[%c0_83, %c1_84, %c0_85] : memref<18x18x16xf32, #tpu.memory_space<vmem>>, vector<16x16x8xf32>
    %77 = vector.shape_cast %76 : vector<16x16x8xf32> to vector<256x8xf32>
    %c1_86 = arith.constant 1 : index
    %c0_87 = arith.constant 0 : index
    %c0_88 = arith.constant 0 : index
    %78 = vector.load %arg4[%c1_86, %c0_87, %c0_88] : memref<9x8x4xf32, #tpu.memory_space<vmem>>, vector<1x8x4xf32>
    %79 = vector.shape_cast %78 : vector<1x8x4xf32> to vector<8x4xf32>
    %cst_89 = arith.constant dense<0.000000e+00> : vector<256x4xf32>
    %80 = tpu.matmul %77, %79, %cst_89 {dimension_numbers = #tpu.dot_dimension_numbers<[1], [0], [0], [1], [0, 0, 1, 1], [], []>} : vector<256x8xf32>, vector<8x4xf32>, vector<256x4xf32> -> vector<256x4xf32>
    %81 = arith.addf %75, %80 : vector<256x4xf32>
    %c0_90 = arith.constant 0 : index
    %c2_91 = arith.constant 2 : index
    %c0_92 = arith.constant 0 : index
    %82 = vector.load %arg8[%c0_90, %c2_91, %c0_92] : memref<18x18x16xf32, #tpu.memory_space<vmem>>, vector<16x16x8xf32>
    %83 = vector.shape_cast %82 : vector<16x16x8xf32> to vector<256x8xf32>
    %c2_93 = arith.constant 2 : index
    %c0_94 = arith.constant 0 : index
    %c0_95 = arith.constant 0 : index
    %84 = vector.load %arg4[%c2_93, %c0_94, %c0_95] : memref<9x8x4xf32, #tpu.memory_space<vmem>>, vector<1x8x4xf32>
    %85 = vector.shape_cast %84 : vector<1x8x4xf32> to vector<8x4xf32>
    %cst_96 = arith.constant dense<0.000000e+00> : vector<256x4xf32>
    %86 = tpu.matmul %83, %85, %cst_96 {dimension_numbers = #tpu.dot_dimension_numbers<[1], [0], [0], [1], [0, 0, 1, 1], [], []>} : vector<256x8xf32>, vector<8x4xf32>, vector<256x4xf32> -> vector<256x4xf32>
    %87 = arith.addf %81, %86 : vector<256x4xf32>
    %c1_97 = arith.constant 1 : index
    %c0_98 = arith.constant 0 : index
    %c0_99 = arith.constant 0 : index
    %88 = vector.load %arg8[%c1_97, %c0_98, %c0_99] : memref<18x18x16xf32, #tpu.memory_space<vmem>>, vector<16x16x8xf32>
    %89 = vector.shape_cast %88 : vector<16x16x8xf32> to vector<256x8xf32>
    %c3_100 = arith.constant 3 : index
    %c0_101 = arith.constant 0 : index
    %c0_102 = arith.constant 0 : index
    %90 = vector.load %arg4[%c3_100, %c0_101, %c0_102] : memref<9x8x4xf32, #tpu.memory_space<vmem>>, vector<1x8x4xf32>
    %91 = vector.shape_cast %90 : vector<1x8x4xf32> to vector<8x4xf32>
    %cst_103 = arith.constant dense<0.000000e+00> : vector<256x4xf32>
    %92 = tpu.matmul %89, %91, %cst_103 {dimension_numbers = #tpu.dot_dimension_numbers<[1], [0], [0], [1], [0, 0, 1, 1], [], []>} : vector<256x8xf32>, vector<8x4xf32>, vector<256x4xf32> -> vector<256x4xf32>
    %93 = arith.addf %87, %92 : vector<256x4xf32>
    %c1_104 = arith.constant 1 : index
    %c1_105 = arith.constant 1 : index
    %c0_106 = arith.constant 0 : index
    %94 = vector.load %arg8[%c1_104, %c1_105, %c0_106] : memref<18x18x16xf32, #tpu.memory_space<vmem>>, vector<16x16x8xf32>
    %95 = vector.shape_cast %94 : vector<16x16x8xf32> to vector<256x8xf32>
    %c4_107 = arith.constant 4 : index
    %c0_108 = arith.constant 0 : index
    %c0_109 = arith.constant 0 : index
    %96 = vector.load %arg4[%c4_107, %c0_108, %c0_109] : memref<9x8x4xf32, #tpu.memory_space<vmem>>, vector<1x8x4xf32>
    %97 = vector.shape_cast %96 : vector<1x8x4xf32> to vector<8x4xf32>
    %cst_110 = arith.constant dense<0.000000e+00> : vector<256x4xf32>
    %98 = tpu.matmul %95, %97, %cst_110 {dimension_numbers = #tpu.dot_dimension_numbers<[1], [0], [0], [1], [0, 0, 1, 1], [], []>} : vector<256x8xf32>, vector<8x4xf32>, vector<256x4xf32> -> vector<256x4xf32>
    %99 = arith.addf %93, %98 : vector<256x4xf32>
    %c1_111 = arith.constant 1 : index
    %c2_112 = arith.constant 2 : index
    %c0_113 = arith.constant 0 : index
    %100 = vector.load %arg8[%c1_111, %c2_112, %c0_113] : memref<18x18x16xf32, #tpu.memory_space<vmem>>, vector<16x16x8xf32>
    %101 = vector.shape_cast %100 : vector<16x16x8xf32> to vector<256x8xf32>
    %c5_114 = arith.constant 5 : index
    %c0_115 = arith.constant 0 : index
    %c0_116 = arith.constant 0 : index
    %102 = vector.load %arg4[%c5_114, %c0_115, %c0_116] : memref<9x8x4xf32, #tpu.memory_space<vmem>>, vector<1x8x4xf32>
    %103 = vector.shape_cast %102 : vector<1x8x4xf32> to vector<8x4xf32>
    %cst_117 = arith.constant dense<0.000000e+00> : vector<256x4xf32>
    %104 = tpu.matmul %101, %103, %cst_117 {dimension_numbers = #tpu.dot_dimension_numbers<[1], [0], [0], [1], [0, 0, 1, 1], [], []>} : vector<256x8xf32>, vector<8x4xf32>, vector<256x4xf32> -> vector<256x4xf32>
    %105 = arith.addf %99, %104 : vector<256x4xf32>
    %c2_118 = arith.constant 2 : index
    %c0_119 = arith.constant 0 : index
    %c0_120 = arith.constant 0 : index
    %106 = vector.load %arg8[%c2_118, %c0_119, %c0_120] : memref<18x18x16xf32, #tpu.memory_space<vmem>>, vector<16x16x8xf32>
    %107 = vector.shape_cast %106 : vector<16x16x8xf32> to vector<256x8xf32>
    %c6_121 = arith.constant 6 : index
    %c0_122 = arith.constant 0 : index
    %c0_123 = arith.constant 0 : index
    %108 = vector.load %arg4[%c6_121, %c0_122, %c0_123] : memref<9x8x4xf32, #tpu.memory_space<vmem>>, vector<1x8x4xf32>
    %109 = vector.shape_cast %108 : vector<1x8x4xf32> to vector<8x4xf32>
    %cst_124 = arith.constant dense<0.000000e+00> : vector<256x4xf32>
    %110 = tpu.matmul %107, %109, %cst_124 {dimension_numbers = #tpu.dot_dimension_numbers<[1], [0], [0], [1], [0, 0, 1, 1], [], []>} : vector<256x8xf32>, vector<8x4xf32>, vector<256x4xf32> -> vector<256x4xf32>
    %111 = arith.addf %105, %110 : vector<256x4xf32>
    %c2_125 = arith.constant 2 : index
    %c1_126 = arith.constant 1 : index
    %c0_127 = arith.constant 0 : index
    %112 = vector.load %arg8[%c2_125, %c1_126, %c0_127] : memref<18x18x16xf32, #tpu.memory_space<vmem>>, vector<16x16x8xf32>
    %113 = vector.shape_cast %112 : vector<16x16x8xf32> to vector<256x8xf32>
    %c7_128 = arith.constant 7 : index
    %c0_129 = arith.constant 0 : index
    %c0_130 = arith.constant 0 : index
    %114 = vector.load %arg4[%c7_128, %c0_129, %c0_130] : memref<9x8x4xf32, #tpu.memory_space<vmem>>, vector<1x8x4xf32>
    %115 = vector.shape_cast %114 : vector<1x8x4xf32> to vector<8x4xf32>
    %cst_131 = arith.constant dense<0.000000e+00> : vector<256x4xf32>
    %116 = tpu.matmul %113, %115, %cst_131 {dimension_numbers = #tpu.dot_dimension_numbers<[1], [0], [0], [1], [0, 0, 1, 1], [], []>} : vector<256x8xf32>, vector<8x4xf32>, vector<256x4xf32> -> vector<256x4xf32>
    %117 = arith.addf %111, %116 : vector<256x4xf32>
    %c2_132 = arith.constant 2 : index
    %c2_133 = arith.constant 2 : index
    %c0_134 = arith.constant 0 : index
    %118 = vector.load %arg8[%c2_132, %c2_133, %c0_134] : memref<18x18x16xf32, #tpu.memory_space<vmem>>, vector<16x16x8xf32>
    %119 = vector.shape_cast %118 : vector<16x16x8xf32> to vector<256x8xf32>
    %c8_135 = arith.constant 8 : index
    %c0_136 = arith.constant 0 : index
    %c0_137 = arith.constant 0 : index
    %120 = vector.load %arg4[%c8_135, %c0_136, %c0_137] : memref<9x8x4xf32, #tpu.memory_space<vmem>>, vector<1x8x4xf32>
    %121 = vector.shape_cast %120 : vector<1x8x4xf32> to vector<8x4xf32>
    %cst_138 = arith.constant dense<0.000000e+00> : vector<256x4xf32>
    %122 = tpu.matmul %119, %121, %cst_138 {dimension_numbers = #tpu.dot_dimension_numbers<[1], [0], [0], [1], [0, 0, 1, 1], [], []>} : vector<256x8xf32>, vector<8x4xf32>, vector<256x4xf32> -> vector<256x4xf32>
    %123 = arith.addf %117, %122 : vector<256x4xf32>
    %c0_139 = arith.constant 0 : index
    %c0_140 = arith.constant 0 : index
    %124 = vector.load %arg5[%c0_139, %c0_140] : memref<1x4xf32, #tpu.memory_space<vmem>>, vector<1x4xf32>
    %125 = vector.broadcast %124 : vector<1x4xf32> to vector<256x4xf32>
    %126 = arith.addf %123, %125 : vector<256x4xf32>
    %cst_141 = arith.constant 0.000000e+00 : f32
    %127 = vector.broadcast %cst_141 : f32 to vector<256x4xf32>
    %128 = arith.maximumf %126, %127 : vector<256x4xf32>
    %129 = math.tanh %128 : vector<256x4xf32>
    %130 = vector.shape_cast %129 : vector<256x4xf32> to vector<16x16x4xf32>
    %c0_142 = arith.constant 0 : index
    %c0_143 = arith.constant 0 : index
    %c0_144 = arith.constant 0 : index
    %c0_145 = arith.constant 0 : index
    %131 = vector.load %arg6[%c0_142, %c0_143, %c0_144, %c0_145] : memref<1x16x16x4xf32, #tpu.memory_space<vmem>>, vector<1x16x16x4xf32>
    %132 = vector.shape_cast %131 : vector<1x16x16x4xf32> to vector<16x16x4xf32>
    %133 = vector.shape_cast %130 : vector<16x16x4xf32> to vector<1x16x16x4xf32>
    tpu.vector_store %arg6[%c0_142, %c0_143, %c0_144, %c0_145], %133 {strides = array<i32>} : memref<1x16x16x4xf32, #tpu.memory_space<vmem>>, vector<1x16x16x4xf32>,
    return
  }
  func.func @transform_0(%arg0: i32) -> (i32, i32, i32, i32) {
    %c0_i32 = arith.constant 0 : i32
    %c0_i32_0 = arith.constant 0 : i32
    %c0_i32_1 = arith.constant 0 : i32
    %c0_i32_2 = arith.constant 0 : i32
    return %arg0, %c0_i32, %c0_i32_0, %c0_i32_1 : i32, i32, i32, i32
  }
  func.func @transform_1(%arg0: i32) -> (i32, i32, i32) {
    %c0_i32 = arith.constant 0 : i32
    %c0_i32_0 = arith.constant 0 : i32
    %c0_i32_1 = arith.constant 0 : i32
    %c0_i32_2 = arith.constant 0 : i32
    return %c0_i32, %c0_i32_0, %c0_i32_1 : i32, i32, i32
  }
  func.func @transform_2(%arg0: i32) -> (i32, i32) {
    %c0_i32 = arith.constant 0 : i32
    %c0_i32_0 = arith.constant 0 : i32
    %c0_i32_1 = arith.constant 0 : i32
    return %c0_i32, %c0_i32_0 : i32, i32
  }
  func.func @transform_3(%arg0: i32) -> (i32, i32, i32) {
    %c0_i32 = arith.constant 0 : i32
    %c0_i32_0 = arith.constant 0 : i32
    %c0_i32_1 = arith.constant 0 : i32
    %c0_i32_2 = arith.constant 0 : i32
    return %c0_i32, %c0_i32_0, %c0_i32_1 : i32, i32, i32
  }
  func.func @transform_4(%arg0: i32) -> (i32, i32) {
    %c0_i32 = arith.constant 0 : i32
    %c0_i32_0 = arith.constant 0 : i32
    %c0_i32_1 = arith.constant 0 : i32
    return %c0_i32, %c0_i32_0 : i32, i32
  }
  func.func @transform_5(%arg0: i32) -> (i32, i32, i32, i32) {
    %c0_i32 = arith.constant 0 : i32
    %c0_i32_0 = arith.constant 0 : i32
    %c0_i32_1 = arith.constant 0 : i32
    %c0_i32_2 = arith.constant 0 : i32
    return %arg0, %c0_i32, %c0_i32_0, %c0_i32_1 : i32, i32, i32, i32
  }
}

</mosaic_0001>

<llo_original>
// kernel: tpu_custom_call.1
$region0: #{tpu_custom_call.1}
  #allocation0 [shape = 'u32[]', space=smem, size = 0x4, offset = 0x4, fixed_abs, tag = 'smem constant byte address 0x4 - core index']
  #allocation1 [shape = 'u32[72,128]{1,0:T(1,128)}', space=vmem, size = 0x9000, scoped, tag = 'internal scratch']
  #allocation2 [shape = 'f32[18,18,16]{2,1,0:T(8,128)}', space=vmem, size = 0x36000, scoped, tag = 'scratch operand']
  #allocation3 [shape = 'f32[18,18,16]{2,1,0:T(8,128)}', space=vmem, size = 0x36000, scoped, tag = 'scratch operand']
  %s0 = inlined_call_operand.hbm [shape: f32[2,16,16,16], index: 0, kind: input, shape index: {}]
  %s1 = inlined_call_operand.vmem [shape: f32[9,16,8], index: 1, kind: input, shape index: {}]
  %s2 = inlined_call_operand.vmem [shape: f32[1,8], index: 2, kind: input, shape index: {}]
  %s3 = inlined_call_operand.vmem [shape: f32[9,8,4], index: 3, kind: input, shape index: {}]
  %s4 = inlined_call_operand.vmem [shape: f32[1,4], index: 4, kind: input, shape index: {}]
  %s5 = inlined_call_operand.vmem [shape: f32[2,16,16,4], index: 5, kind: output, shape index: {}]
  %s6 = sld [smem:[#allocation0]]
  $region57: #{tpu_custom_call.1} parent=0
    _
  %s8 = ssub.s32 1, %s6
  %s9 = scalar_select 0, %s8, %s6
  $region1: #{tpu_custom_call.1} parent=0
    #allocation4 [shape = 'u8[262144]{0}', space=vmem, size = 0x40000, scoped, tag = 'input window, operand 0']
    #allocation5 [shape = 's32[2]{0}', space=sflag, size = 0x8, scoped, tag = 'scoped memory for tpu_custom_call.1']
    %10 = vsyncpa [#allocation5], 0
    %s11 = scalar_lea.sflag [#allocation5], 1
    %12 = vsyncpa %s11, 0
    loop: start=0, step=1, limit=4
    $region2: #{tpu_custom_call.1} parent=1 // loop_pre_header
      _
    $region3: #{tpu_custom_call.1} parent=1 // loop_header
      %s14 = sphi 0, %s18
      %p15 = scmp.ge.s32.totalorder %s14, 4
      %s24 = sphi 0, %s26
      %s27 = sphi 0, %s24
      %s28 = sphi 0, %s27
      %s44 = sphi 0, %s28
      %s48 = sphi 0, %s48
      %s50 = sphi 0, %s48
      %s51 = sphi 0, %s50
      %s65 = sphi 0, %s51
      %s69 = sphi 0, %s69
      %s71 = sphi 0, %s69
      %s72 = sphi 0, %s71
      %s86 = sphi 0, %s72
      %s90 = sphi 0, %s90
      %s92 = sphi 0, %s90
      %s93 = sphi 0, %s92
      %s107 = sphi 0, %s93
      %s111 = sphi 0, %s111
      %s113 = sphi 0, %s111
      %s114 = sphi 0, %s113
      %s128 = sphi 0, %s114
      %s134 = sphi 0, %s136
      %s137 = sphi 0, %s134
      %s138 = sphi 0, %s137
      %s154 = sphi 0, %s138
    $region4: #{tpu_custom_call.1} parent=1 // loop_header_branch
      %17 = sbr.rel (%p15) target = $region8
    $region5: #{tpu_custom_call.1} parent=1 // loop_body
      %s19 = ssub.s32 %s14, 1
      %s20 = ssub.s32 %s14, 2
      %s21 = sadd.s32 %s14, 1
      %s22 = ssub.s32 %s14, %s21
      %p23 = scmp.eq.s32.totalorder %s22, 0
      %s25 = sadd.s32 %s24, 1
      %s26 = scalar_select %p23, %s24, %s25
      %p29 = pneg %p23
      %p30 = scmp.eq.s32.totalorder %s14, 1
      %p31 = por %p29, %p30
      %p32 = scmp.ne.s32.totalorder %s24, %s27
      %p33 = scmp.eq.s32.totalorder %s14, 0
      %p34 = por %p32, %p33
      %p35 = scmp.ne.s32.totalorder %s24, %s27
      %p36 = scmp.eq.s32.totalorder %s19, 1
      %p37 = por %p35, %p36
      %p38 = scmp.ne.s32.totalorder %s27, %s28
      %p39 = scmp.eq.s32.totalorder %s19, 0
      %p40 = por %p38, %p39
      %p41 = scmp.ne.s32.totalorder %s27, %s28
      %p42 = scmp.eq.s32.totalorder %s20, 1
      %p43 = por %p41, %p42
      %p45 = scmp.ne.s32.totalorder %s28, %s44
      %p46 = scmp.eq.s32.totalorder %s20, 0
      %p47 = por %p45, %p46
      %s49 = sadd.s32 %s48, 1
      %p52 = scmp.eq.s32.totalorder %s14, 1
      %p53 = scmp.ne.s32.totalorder %s48, %s50
      %p54 = scmp.eq.s32.totalorder %s14, 0
      %p55 = por %p53, %p54
      %p56 = scmp.ne.s32.totalorder %s48, %s50
      %p57 = scmp.eq.s32.totalorder %s19, 1
      %p58 = por %p56, %p57
      %p59 = scmp.ne.s32.totalorder %s50, %s51
      %p60 = scmp.eq.s32.totalorder %s19, 0
      %p61 = por %p59, %p60
      %p62 = scmp.ne.s32.totalorder %s50, %s51
      %p63 = scmp.eq.s32.totalorder %s20, 1
      %p64 = por %p62, %p63
      %p66 = scmp.ne.s32.totalorder %s51, %s65
      %p67 = scmp.eq.s32.totalorder %s20, 0
      %p68 = por %p66, %p67
      %s70 = sadd.s32 %s69, 1
      %p73 = scmp.eq.s32.totalorder %s14, 1
      %p74 = scmp.ne.s32.totalorder %s69, %s71
      %p75 = scmp.eq.s32.totalorder %s14, 0
      %p76 = por %p74, %p75
      %p77 = scmp.ne.s32.totalorder %s69, %s71
      %p78 = scmp.eq.s32.totalorder %s19, 1
      %p79 = por %p77, %p78
      %p80 = scmp.ne.s32.totalorder %s71, %s72
      %p81 = scmp.eq.s32.totalorder %s19, 0
      %p82 = por %p80, %p81
      %p83 = scmp.ne.s32.totalorder %s71, %s72
      %p84 = scmp.eq.s32.totalorder %s20, 1
      %p85 = por %p83, %p84
      %p87 = scmp.ne.s32.totalorder %s72, %s86
      %p88 = scmp.eq.s32.totalorder %s20, 0
      %p89 = por %p87, %p88
      %s91 = sadd.s32 %s90, 1
      %p94 = scmp.eq.s32.totalorder %s14, 1
      %p95 = scmp.ne.s32.totalorder %s90, %s92
      %p96 = scmp.eq.s32.totalorder %s14, 0
      %p97 = por %p95, %p96
      %p98 = scmp.ne.s32.totalorder %s90, %s92
      %p99 = scmp.eq.s32.totalorder %s19, 1
      %p100 = por %p98, %p99
      %p101 = scmp.ne.s32.totalorder %s92, %s93
      %p102 = scmp.eq.s32.totalorder %s19, 0
      %p103 = por %p101, %p102
      %p104 = scmp.ne.s32.totalorder %s92, %s93
      %p105 = scmp.eq.s32.totalorder %s20, 1
      %p106 = por %p104, %p105
      %p108 = scmp.ne.s32.totalorder %s93, %s107
      %p109 = scmp.eq.s32.totalorder %s20, 0
      %p110 = por %p108, %p109
      %s112 = sadd.s32 %s111, 1
      %p115 = scmp.eq.s32.totalorder %s14, 1
      %p116 = scmp.ne.s32.totalorder %s111, %s113
      %p117 = scmp.eq.s32.totalorder %s14, 0
      %p118 = por %p116, %p117
      %p119 = scmp.ne.s32.totalorder %s111, %s113
      %p120 = scmp.eq.s32.totalorder %s19, 1
      %p121 = por %p119, %p120
      %p122 = scmp.ne.s32.totalorder %s113, %s114
      %p123 = scmp.eq.s32.totalorder %s19, 0
      %p124 = por %p122, %p123
      %p125 = scmp.ne.s32.totalorder %s113, %s114
      %p126 = scmp.eq.s32.totalorder %s20, 1
      %p127 = por %p125, %p126
      %p129 = scmp.ne.s32.totalorder %s114, %s128
      %p130 = scmp.eq.s32.totalorder %s20, 0
      %p131 = por %p129, %p130
      %s132 = ssub.s32 %s14, %s21
      %p133 = scmp.eq.s32.totalorder %s132, 0
      %s135 = sadd.s32 %s134, 1
      %s136 = scalar_select %p133, %s134, %s135
      %p139 = pneg %p133
      %p140 = scmp.eq.s32.totalorder %s14, 1
      %p141 = por %p139, %p140
      %p142 = scmp.ne.s32.totalorder %s134, %s137
      %p143 = scmp.eq.s32.totalorder %s14, 0
      %p144 = por %p142, %p143
      %p145 = scmp.ne.s32.totalorder %s134, %s137
      %p146 = scmp.eq.s32.totalorder %s19, 1
      %p147 = por %p145, %p146
      %p148 = scmp.ne.s32.totalorder %s137, %s138
      %p149 = scmp.eq.s32.totalorder %s19, 0
      %p150 = por %p148, %p149
      %p151 = scmp.ne.s32.totalorder %s137, %s138
      %p152 = scmp.eq.s32.totalorder %s20, 1
      %p153 = por %p151, %p152
      %p155 = scmp.ne.s32.totalorder %s138, %s154
      %p156 = scmp.eq.s32.totalorder %s20, 0
      %p157 = por %p155, %p156
      %p158 = scmp.le.s32.totalorder 1, %s14
      %p159 = scmp.lt.s32.totalorder %s14, 3
      %p160 = pnand %p158, %p159
      %p161 = pneg %p160
      // Predicated region
      $region9: #{tpu_custom_call.1} parent=5 // pred_check
        _
      $region10: #{tpu_custom_call.1} parent=5 // pred_check_branch
        %163 = sbr.rel (%p160) target = $region12
      $region11: #{tpu_custom_call.1} parent=5 // pred_region
        %s164 = ssub.s32 %s14, 1
        // Predicated region
        $region13: #{tpu_custom_call.1} parent=11 // pred_check
          %p165 = pneg %p61
        $region14: #{tpu_custom_call.1} parent=11 // pred_check_branch
          %167 = sbr.rel (%p165) target = $region16
        $region15: #{tpu_custom_call.1} parent=11 // pred_region
          _
        $region16: #{tpu_custom_call.1} parent=11 // pred_fallthru
          _
        // Predicated region
        $region17: #{tpu_custom_call.1} parent=11 // pred_check
          %p168 = pneg %p82
        $region18: #{tpu_custom_call.1} parent=11 // pred_check_branch
          %170 = sbr.rel (%p168) target = $region20
        $region19: #{tpu_custom_call.1} parent=11 // pred_region
          _
        $region20: #{tpu_custom_call.1} parent=11 // pred_fallthru
          _
        // Predicated region
        $region21: #{tpu_custom_call.1} parent=11 // pred_check
          %p171 = pneg %p103
        $region22: #{tpu_custom_call.1} parent=11 // pred_check_branch
          %173 = sbr.rel (%p171) target = $region24
        $region23: #{tpu_custom_call.1} parent=11 // pred_region
          _
        $region24: #{tpu_custom_call.1} parent=11 // pred_fallthru
          _
        // Predicated region
        $region25: #{tpu_custom_call.1} parent=11 // pred_check
          %p174 = pneg %p124
        $region26: #{tpu_custom_call.1} parent=11 // pred_check_branch
          %176 = sbr.rel (%p174) target = $region28
        $region27: #{tpu_custom_call.1} parent=11 // pred_region
          _
        $region28: #{tpu_custom_call.1} parent=11 // pred_fallthru
          _
      $region12: #{tpu_custom_call.1} parent=5 // pred_fallthru
        _
      %p177 = scmp.lt.s32.totalorder %s14, 2
      // Predicated region
      $region29: #{tpu_custom_call.1} parent=5 // pred_check
        %p178 = pneg %p177
      $region30: #{tpu_custom_call.1} parent=5 // pred_check_branch
        %180 = sbr.rel (%p178) target = $region32
      $region31: #{tpu_custom_call.1} parent=5 // pred_region
        // Predicated region
        $region33: #{tpu_custom_call.1} parent=31 // pred_check
          %p181 = pneg %p34
        $region34: #{tpu_custom_call.1} parent=31 // pred_check_branch
          %183 = sbr.rel (%p181) target = $region36
        $region35: #{tpu_custom_call.1} parent=31 // pred_region
          %s184 = sand.u32 %s24, 1
          %s185 = scalar_lea.sflag [#allocation5], %s184
          %s186 = sand.u32 %s24, 1
          %s187 = smul.addr %s186, 256
          %s188 = scalar_lea.vmem [#allocation4], %s187
          %190 = vsyncadd %s185, 0
          %s191 = smul.addr %s14, 32
          %s192 = smul.addr %s191, 8
          %s193 = scalar_lea.hbm %s0, %s192
          %s194 = sshll.u32 %s193, 4
          %s195 = int_to_ptr.hbm [resolvable:$true] %s194
          %s196 = sshll.u32 %s188, 4
          %s197 = int_to_ptr.vmem [resolvable:$true] %s196
          %202 = dma.hbm_to_vmem [thread:$0]  %s195, 4096, %s197, %s185, 128, 128, 8
        $region36: #{tpu_custom_call.1} parent=31 // pred_fallthru
          _
      $region32: #{tpu_custom_call.1} parent=5 // pred_fallthru
        _
      %p203 = scmp.le.s32.totalorder 1, %s14
      %p204 = scmp.lt.s32.totalorder %s14, 3
      %p205 = pnand %p203, %p204
      %p206 = pneg %p205
      // Predicated region
      $region37: #{tpu_custom_call.1} parent=5 // pred_check
        _
      $region38: #{tpu_custom_call.1} parent=5 // pred_check_branch
        %208 = sbr.rel (%p205) target = $region40
      $region39: #{tpu_custom_call.1} parent=5 // pred_region
        %s209 = ssub.s32 %s14, 1
        %s210 = sand.u32 %s27, 1
        %s211 = scalar_lea.sflag [#allocation5], %s210
        %s212 = sand.u32 %s27, 1
        %s213 = smul.addr %s212, 256
        %s214 = scalar_lea.vmem [#allocation4], %s213
        // Predicated region
        $region41: #{tpu_custom_call.1} parent=39 // pred_check
          %p215 = pneg %p40
        $region42: #{tpu_custom_call.1} parent=39 // pred_check_branch
          %217 = sbr.rel (%p215) target = $region44
        $region43: #{tpu_custom_call.1} parent=39 // pred_region
          %219 = dma.done %s211, 4096
        $region44: #{tpu_custom_call.1} parent=39 // pred_fallthru
          _
        %s220 = sand.u32 %s27, 1
        %s221 = scalar_lea.sflag [#allocation5], %s220
        %s222 = sand.u32 %s27, 1
        %s223 = smul.addr %s222, 256
        %s224 = scalar_lea.vmem [#allocation4], %s223
        %p225 = pneg %p40
        %p226 = pneg %p37
        %p227 = pneg %p61
        %p228 = pneg %p58
        %p229 = pneg %p82
        %p230 = pneg %p79
        %p231 = pneg %p103
        %p232 = pneg %p100
        %p233 = pneg %p124
        %p234 = pneg %p121
        %p235 = pneg %p150
        %p236 = pneg %p147
        %p237 = scmp.lt.s32.totalorder %s19, 1
        %s238 = scalar_select %p237, %s19, 1
        %s239 = smul.addr %s238, 32
        %s240 = smul.addr %s239, 8
        %s241 = scalar_lea.vmem %s5, %s240
        %p242 = scmp.lt.s32.totalorder %s19, 1
        %s243 = scalar_select %p242, %s19, 1
        %s244 = smul.addr %s243, 32
        %s245 = smul.addr %s244, 8
        %s246 = scalar_lea.vmem %s5, %s245
        %vm247 = vcmask 130048
        %248 = vst.msk [vmem:[#allocation2] sm:$0xff] %vm247, 0.0
        %249 = vst.msk [vmem:[#allocation2 + $0x8] sm:$0xff] %vm247, 0.0
        %vm250 = vcmask 123904
        %251 = vst.msk [vmem:[#allocation2 + $0x10] sm:$0x3] %vm250, 0.0
        %252 = vst.msk [vmem:[#allocation2 + $0x18] sm:$0xff] %vm247, 0.0
        %253 = vst.msk [vmem:[#allocation2 + $0x20] sm:$0xff] %vm247, 0.0
        %254 = vst.msk [vmem:[#allocation2 + $0x28] sm:$0x3] %vm250, 0.0
        %255 = vst.msk [vmem:[#allocation2 + $0x30] sm:$0xff] %vm247, 0.0
        %256 = vst.msk [vmem:[#allocation2 + $0x38] sm:$0xff] %vm247, 0.0
        %257 = vst.msk [vmem:[#allocation2 + $0x40] sm:$0x3] %vm250, 0.0
        %258 = vst.msk [vmem:[#allocation2 + $0x48] sm:$0xff] %vm247, 0.0
        %259 = vst.msk [vmem:[#allocation2 + $0x50] sm:$0xff] %vm247, 0.0
        %260 = vst.msk [vmem:[#allocation2 + $0x58] sm:$0x3] %vm250, 0.0
        %261 = vst.msk [vmem:[#allocation2 + $0x60] sm:$0xff] %vm247, 0.0
        %262 = vst.msk [vmem:[#allocation2 + $0x68] sm:$0xff] %vm247, 0.0
        %263 = vst.msk [vmem:[#allocation2 + $0x70] sm:$0x3] %vm250, 0.0
        %264 = vst.msk [vmem:[#allocation2 + $0x78] sm:$0xff] %vm247, 0.0
        %265 = vst.msk [vmem:[#allocation2 + $0x80] sm:$0xff] %vm247, 0.0
        %266 = vst.msk [vmem:[#allocation2 + $0x88] sm:$0x3] %vm250, 0.0
        %267 = vst.msk [vmem:[#allocation2 + $0x90] sm:$0xff] %vm247, 0.0
        %268 = vst.msk [vmem:[#allocation2 + $0x98] sm:$0xff] %vm247, 0.0
        %269 = vst.msk [vmem:[#allocation2 + $0xa0] sm:$0x3] %vm250, 0.0
        %270 = vst.msk [vmem:[#allocation2 + $0xa8] sm:$0xff] %vm247, 0.0
        %271 = vst.msk [vmem:[#allocation2 + $0xb0] sm:$0xff] %vm247, 0.0
        %272 = vst.msk [vmem:[#allocation2 + $0xb8] sm:$0x3] %vm250, 0.0
        %273 = vst.msk [vmem:[#allocation2 + $0xc0] sm:$0xff] %vm247, 0.0
        %274 = vst.msk [vmem:[#allocation2 + $0xc8] sm:$0xff] %vm247, 0.0
        %275 = vst.msk [vmem:[#allocation2 + $0xd0] sm:$0x3] %vm250, 0.0
        %276 = vst.msk [vmem:[#allocation2 + $0xd8] sm:$0xff] %vm247, 0.0
        %277 = vst.msk [vmem:[#allocation2 + $0xe0] sm:$0xff] %vm247, 0.0
        %278 = vst.msk [vmem:[#allocation2 + $0xe8] sm:$0x3] %vm250, 0.0
        %279 = vst.msk [vmem:[#allocation2 + $0xf0] sm:$0xff] %vm247, 0.0
        %280 = vst.msk [vmem:[#allocation2 + $0xf8] sm:$0xff] %vm247, 0.0
        %281 = vst.msk [vmem:[#allocation2 + $0x100] sm:$0x3] %vm250, 0.0
        %282 = vst.msk [vmem:[#allocation2 + $0x108] sm:$0xff] %vm247, 0.0
        %283 = vst.msk [vmem:[#allocation2 + $0x110] sm:$0xff] %vm247, 0.0
        %284 = vst.msk [vmem:[#allocation2 + $0x118] sm:$0x3] %vm250, 0.0
        %285 = vst.msk [vmem:[#allocation2 + $0x120] sm:$0xff] %vm247, 0.0
        %286 = vst.msk [vmem:[#allocation2 + $0x128] sm:$0xff] %vm247, 0.0
        %287 = vst.msk [vmem:[#allocation2 + $0x130] sm:$0x3] %vm250, 0.0
        %288 = vst.msk [vmem:[#allocation2 + $0x138] sm:$0xff] %vm247, 0.0
        %289 = vst.msk [vmem:[#allocation2 + $0x140] sm:$0xff] %vm247, 0.0
        %290 = vst.msk [vmem:[#allocation2 + $0x148] sm:$0x3] %vm250, 0.0
        %291 = vst.msk [vmem:[#allocation2 + $0x150] sm:$0xff] %vm247, 0.0
        %292 = vst.msk [vmem:[#allocation2 + $0x158] sm:$0xff] %vm247, 0.0
        %293 = vst.msk [vmem:[#allocation2 + $0x160] sm:$0x3] %vm250, 0.0
        %294 = vst.msk [vmem:[#allocation2 + $0x168] sm:$0xff] %vm247, 0.0
        %295 = vst.msk [vmem:[#allocation2 + $0x170] sm:$0xff] %vm247, 0.0
        %296 = vst.msk [vmem:[#allocation2 + $0x178] sm:$0x3] %vm250, 0.0
        %297 = vst.msk [vmem:[#allocation2 + $0x180] sm:$0xff] %vm247, 0.0
        %298 = vst.msk [vmem:[#allocation2 + $0x188] sm:$0xff] %vm247, 0.0
        %299 = vst.msk [vmem:[#allocation2 + $0x190] sm:$0x3] %vm250, 0.0
        %300 = vst.msk [vmem:[#allocation2 + $0x198] sm:$0xff] %vm247, 0.0
        %301 = vst.msk [vmem:[#allocation2 + $0x1a0] sm:$0xff] %vm247, 0.0
        %302 = vst.msk [vmem:[#allocation2 + $0x1a8] sm:$0x3] %vm250, 0.0
        %303 = vst.msk [vmem:[#allocation3] sm:$0xff] %vm247, 0.0
        %304 = vst.msk [vmem:[#allocation3 + $0x8] sm:$0xff] %vm247, 0.0
        %305 = vst.msk [vmem:[#allocation3 + $0x10] sm:$0x3] %vm250, 0.0
        %306 = vst.msk [vmem:[#allocation3 + $0x18] sm:$0xff] %vm247, 0.0
        %307 = vst.msk [vmem:[#allocation3 + $0x20] sm:$0xff] %vm247, 0.0
        %308 = vst.msk [vmem:[#allocation3 + $0x28] sm:$0x3] %vm250, 0.0
        %309 = vst.msk [vmem:[#allocation3 + $0x30] sm:$0xff] %vm247, 0.0
        %310 = vst.msk [vmem:[#allocation3 + $0x38] sm:$0xff] %vm247, 0.0
        %311 = vst.msk [vmem:[#allocation3 + $0x40] sm:$0x3] %vm250, 0.0
        %312 = vst.msk [vmem:[#allocation3 + $0x48] sm:$0xff] %vm247, 0.0
        %313 = vst.msk [vmem:[#allocation3 + $0x50] sm:$0xff] %vm247, 0.0
        %314 = vst.msk [vmem:[#allocation3 + $0x58] sm:$0x3] %vm250, 0.0
        %315 = vst.msk [vmem:[#allocation3 + $0x60] sm:$0xff] %vm247, 0.0
        %316 = vst.msk [vmem:[#allocation3 + $0x68] sm:$0xff] %vm247, 0.0
        %317 = vst.msk [vmem:[#allocation3 + $0x70] sm:$0x3] %vm250, 0.0
        %318 = vst.msk [vmem:[#allocation3 + $0x78] sm:$0xff] %vm247, 0.0
        %319 = vst.msk [vmem:[#allocation3 + $0x80] sm:$0xff] %vm247, 0.0
        %320 = vst.msk [vmem:[#allocation3 + $0x88] sm:$0x3] %vm250, 0.0
        %321 = vst.msk [vmem:[#allocation3 + $0x90] sm:$0xff] %vm247, 0.0
        %322 = vst.msk [vmem:[#allocation3 + $0x98] sm:$0xff] %vm247, 0.0
        %323 = vst.msk [vmem:[#allocation3 + $0xa0] sm:$0x3] %vm250, 0.0
        %324 = vst.msk [vmem:[#allocation3 + $0xa8] sm:$0xff] %vm247, 0.0
        %325 = vst.msk [vmem:[#allocation3 + $0xb0] sm:$0xff] %vm247, 0.0
        %326 = vst.msk [vmem:[#allocation3 + $0xb8] sm:$0x3] %vm250, 0.0
        %327 = vst.msk [vmem:[#allocation3 + $0xc0] sm:$0xff] %vm247, 0.0
        %328 = vst.msk [vmem:[#allocation3 + $0xc8] sm:$0xff] %vm247, 0.0
        %329 = vst.msk [vmem:[#allocation3 + $0xd0] sm:$0x3] %vm250, 0.0
        %330 = vst.msk [vmem:[#allocation3 + $0xd8] sm:$0xff] %vm247, 0.0
        %331 = vst.msk [vmem:[#allocation3 + $0xe0] sm:$0xff] %vm247, 0.0
        %332 = vst.msk [vmem:[#allocation3 + $0xe8] sm:$0x3] %vm250, 0.0
        %333 = vst.msk [vmem:[#allocation3 + $0xf0] sm:$0xff] %vm247, 0.0
        %334 = vst.msk [vmem:[#allocation3 + $0xf8] sm:$0xff] %vm247, 0.0
        %335 = vst.msk [vmem:[#allocation3 + $0x100] sm:$0x3] %vm250, 0.0
        %336 = vst.msk [vmem:[#allocation3 + $0x108] sm:$0xff] %vm247, 0.0
        %337 = vst.msk [vmem:[#allocation3 + $0x110] sm:$0xff] %vm247, 0.0
        %338 = vst.msk [vmem:[#allocation3 + $0x118] sm:$0x3] %vm250, 0.0
        %339 = vst.msk [vmem:[#allocation3 + $0x120] sm:$0xff] %vm247, 0.0
        %340 = vst.msk [vmem:[#allocation3 + $0x128] sm:$0xff] %vm247, 0.0
        %341 = vst.msk [vmem:[#allocation3 + $0x130] sm:$0x3] %vm250, 0.0
        %342 = vst.msk [vmem:[#allocation3 + $0x138] sm:$0xff] %vm247, 0.0
        %343 = vst.msk [vmem:[#allocation3 + $0x140] sm:$0xff] %vm247, 0.0
        %344 = vst.msk [vmem:[#allocation3 + $0x148] sm:$0x3] %vm250, 0.0
        %345 = vst.msk [vmem:[#allocation3 + $0x150] sm:$0xff] %vm247, 0.0
        %346 = vst.msk [vmem:[#allocation3 + $0x158] sm:$0xff] %vm247, 0.0
        %347 = vst.msk [vmem:[#allocation3 + $0x160] sm:$0x3] %vm250, 0.0
        %348 = vst.msk [vmem:[#allocation3 + $0x168] sm:$0xff] %vm247, 0.0
        %349 = vst.msk [vmem:[#allocation3 + $0x170] sm:$0xff] %vm247, 0.0
        %350 = vst.msk [vmem:[#allocation3 + $0x178] sm:$0x3] %vm250, 0.0
        %351 = vst.msk [vmem:[#allocation3 + $0x180] sm:$0xff] %vm247, 0.0
        %352 = vst.msk [vmem:[#allocation3 + $0x188] sm:$0xff] %vm247, 0.0
        %353 = vst.msk [vmem:[#allocation3 + $0x190] sm:$0x3] %vm250, 0.0
        %354 = vst.msk [vmem:[#allocation3 + $0x198] sm:$0xff] %vm247, 0.0
        %355 = vst.msk [vmem:[#allocation3 + $0x1a0] sm:$0xff] %vm247, 0.0
        %356 = vst.msk [vmem:[#allocation3 + $0x1a8] sm:$0x3] %vm250, 0.0
        %v357 = vld [vmem:[%s214] sm:$0xff]
        %v358 = vld [vmem:[%s214 + $0x8] sm:$0xff]
        %v359 = vld [vmem:[%s214 + $0x10] sm:$0xff]
        %v360 = vld [vmem:[%s214 + $0x18] sm:$0xff]
        %v361 = vld [vmem:[%s214 + $0x20] sm:$0xff]
        %v362 = vld [vmem:[%s214 + $0x28] sm:$0xff]
        %v363 = vld [vmem:[%s214 + $0x30] sm:$0xff]
        %v364 = vld [vmem:[%s214 + $0x38] sm:$0xff]
        %v365 = vld [vmem:[%s214 + $0x40] sm:$0xff]
        %v366 = vld [vmem:[%s214 + $0x48] sm:$0xff]
        %v367 = vld [vmem:[%s214 + $0x50] sm:$0xff]
        %v368 = vld [vmem:[%s214 + $0x58] sm:$0xff]
        %v369 = vld [vmem:[%s214 + $0x60] sm:$0xff]
        %v370 = vld [vmem:[%s214 + $0x68] sm:$0xff]
        %v371 = vld [vmem:[%s214 + $0x70] sm:$0xff]
        %v372 = vld [vmem:[%s214 + $0x78] sm:$0xff]
        %v373 = vld [vmem:[%s214 + $0x80] sm:$0xff]
        %v374 = vld [vmem:[%s214 + $0x88] sm:$0xff]
        %v375 = vld [vmem:[%s214 + $0x90] sm:$0xff]
        %v376 = vld [vmem:[%s214 + $0x98] sm:$0xff]
        %v377 = vld [vmem:[%s214 + $0xa0] sm:$0xff]
        %v378 = vld [vmem:[%s214 + $0xa8] sm:$0xff]
        %v379 = vld [vmem:[%s214 + $0xb0] sm:$0xff]
        %v380 = vld [vmem:[%s214 + $0xb8] sm:$0xff]
        %v381 = vld [vmem:[%s214 + $0xc0] sm:$0xff]
        %v382 = vld [vmem:[%s214 + $0xc8] sm:$0xff]
        %v383 = vld [vmem:[%s214 + $0xd0] sm:$0xff]
        %v384 = vld [vmem:[%s214 + $0xd8] sm:$0xff]
        %v385 = vld [vmem:[%s214 + $0xe0] sm:$0xff]
        %v386 = vld [vmem:[%s214 + $0xe8] sm:$0xff]
        %v387 = vld [vmem:[%s214 + $0xf0] sm:$0xff]
        %v388 = vld [vmem:[%s214 + $0xf8] sm:$0xff]
        %s389 = scalar_lea.vmem [#allocation2], 24
        %390 = vst.msk [vmem:[%s389 + $0x1] sm:$0xff] %vm247, %v357
        %391 = vst.msk [vmem:[%s389 + $0x9] sm:$0xff] %vm247, %v358
        %392 = vst.msk [vmem:[%s389 + $0x19] sm:$0xff] %vm247, %v359
        %393 = vst.msk [vmem:[%s389 + $0x21] sm:$0xff] %vm247, %v360
        %394 = vst.msk [vmem:[%s389 + $0x31] sm:$0xff] %vm247, %v361
        %395 = vst.msk [vmem:[%s389 + $0x39] sm:$0xff] %vm247, %v362
        %396 = vst.msk [vmem:[%s389 + $0x49] sm:$0xff] %vm247, %v363
        %397 = vst.msk [vmem:[%s389 + $0x51] sm:$0xff] %vm247, %v364
        %398 = vst.msk [vmem:[%s389 + $0x61] sm:$0xff] %vm247, %v365
        %399 = vst.msk [vmem:[%s389 + $0x69] sm:$0xff] %vm247, %v366
        %400 = vst.msk [vmem:[%s389 + $0x79] sm:$0xff] %vm247, %v367
        %401 = vst.msk [vmem:[%s389 + $0x81] sm:$0xff] %vm247, %v368
        %402 = vst.msk [vmem:[%s389 + $0x91] sm:$0xff] %vm247, %v369
        %403 = vst.msk [vmem:[%s389 + $0x99] sm:$0xff] %vm247, %v370
        %404 = vst.msk [vmem:[%s389 + $0xa9] sm:$0xff] %vm247, %v371
        %405 = vst.msk [vmem:[%s389 + $0xb1] sm:$0xff] %vm247, %v372
        %406 = vst.msk [vmem:[%s389 + $0xc1] sm:$0xff] %vm247, %v373
        %407 = vst.msk [vmem:[%s389 + $0xc9] sm:$0xff] %vm247, %v374
        %408 = vst.msk [vmem:[%s389 + $0xd9] sm:$0xff] %vm247, %v375
        %409 = vst.msk [vmem:[%s389 + $0xe1] sm:$0xff] %vm247, %v376
        %410 = vst.msk [vmem:[%s389 + $0xf1] sm:$0xff] %vm247, %v377
        %411 = vst.msk [vmem:[%s389 + $0xf9] sm:$0xff] %vm247, %v378
        %412 = vst.msk [vmem:[%s389 + $0x109] sm:$0xff] %vm247, %v379
        %413 = vst.msk [vmem:[%s389 + $0x111] sm:$0xff] %vm247, %v380
        %414 = vst.msk [vmem:[%s389 + $0x121] sm:$0xff] %vm247, %v381
        %415 = vst.msk [vmem:[%s389 + $0x129] sm:$0xff] %vm247, %v382
        %416 = vst.msk [vmem:[%s389 + $0x139] sm:$0xff] %vm247, %v383
        %417 = vst.msk [vmem:[%s389 + $0x141] sm:$0xff] %vm247, %v384
        %418 = vst.msk [vmem:[%s389 + $0x151] sm:$0xff] %vm247, %v385
        %419 = vst.msk [vmem:[%s389 + $0x159] sm:$0xff] %vm247, %v386
        %420 = vst.msk [vmem:[%s389 + $0x169] sm:$0xff] %vm247, %v387
        %421 = vst.msk [vmem:[%s389 + $0x171] sm:$0xff] %vm247, %v388
        %v422 = vld [vmem:[#allocation2] sm:$0xff]
        %v423 = vld [vmem:[#allocation2 + $0x8] sm:$0xff]
        %v424 = vld [vmem:[#allocation2 + $0x18] sm:$0xff]
        %v425 = vld [vmem:[#allocation2 + $0x20] sm:$0xff]
        %v426 = vld [vmem:[#allocation2 + $0x30] sm:$0xff]
        %v427 = vld [vmem:[#allocation2 + $0x38] sm:$0xff]
        %v428 = vld [vmem:[#allocation2 + $0x48] sm:$0xff]
        %v429 = vld [vmem:[#allocation2 + $0x50] sm:$0xff]
        %v430 = vld [vmem:[#allocation2 + $0x60] sm:$0xff]
        %v431 = vld [vmem:[#allocation2 + $0x68] sm:$0xff]
        %v432 = vld [vmem:[#allocation2 + $0x78] sm:$0xff]
        %v433 = vld [vmem:[#allocation2 + $0x80] sm:$0xff]
        %v434 = vld [vmem:[#allocation2 + $0x90] sm:$0xff]
        %v435 = vld [vmem:[#allocation2 + $0x98] sm:$0xff]
        %v436 = vld [vmem:[#allocation2 + $0xa8] sm:$0xff]
        %v437 = vld [vmem:[#allocation2 + $0xb0] sm:$0xff]
        %v438 = vld [vmem:[#allocation2 + $0xc0] sm:$0xff]
        %v439 = vld [vmem:[#allocation2 + $0xc8] sm:$0xff]
        %v440 = vld [vmem:[#allocation2 + $0xd8] sm:$0xff]
        %v441 = vld [vmem:[#allocation2 + $0xe0] sm:$0xff]
        %v442 = vld [vmem:[#allocation2 + $0xf0] sm:$0xff]
        %v443 = vld [vmem:[#allocation2 + $0xf8] sm:$0xff]
        %v444 = vld [vmem:[#allocation2 + $0x108] sm:$0xff]
        %v445 = vld [vmem:[#allocation2 + $0x110] sm:$0xff]
        %v446 = vld [vmem:[#allocation2 + $0x120] sm:$0xff]
        %v447 = vld [vmem:[#allocation2 + $0x128] sm:$0xff]
        %v448 = vld [vmem:[#allocation2 + $0x138] sm:$0xff]
        %v449 = vld [vmem:[#allocation2 + $0x140] sm:$0xff]
        %v450 = vld [vmem:[#allocation2 + $0x150] sm:$0xff]
        %v451 = vld [vmem:[#allocation2 + $0x158] sm:$0xff]
        %v452 = vld [vmem:[#allocation2 + $0x168] sm:$0xff]
        %v453 = vld [vmem:[#allocation2 + $0x170] sm:$0xff]
        %v454 = vld [vmem:[%s1] sm:$0xff]
        %v455 = vld [vmem:[%s1 + $0x8] sm:$0xff]
        %v456 = vld [vmem:[#allocation2 + $0x1] sm:$0xff]
        %v457 = vld [vmem:[#allocation2 + $0x9] sm:$0xff]
        %v458 = vld [vmem:[#allocation2 + $0x19] sm:$0xff]
        %v459 = vld [vmem:[#allocation2 + $0x21] sm:$0xff]
        %v460 = vld [vmem:[#allocation2 + $0x31] sm:$0xff]
        %v461 = vld [vmem:[#allocation2 + $0x39] sm:$0xff]
        %v462 = vld [vmem:[#allocation2 + $0x49] sm:$0xff]
        %v463 = vld [vmem:[#allocation2 + $0x51] sm:$0xff]
        %v464 = vld [vmem:[#allocation2 + $0x61] sm:$0xff]
        %v465 = vld [vmem:[#allocation2 + $0x69] sm:$0xff]
        %v466 = vld [vmem:[#allocation2 + $0x79] sm:$0xff]
        %v467 = vld [vmem:[#allocation2 + $0x81] sm:$0xff]
        %v468 = vld [vmem:[#allocation2 + $0x91] sm:$0xff]
        %v469 = vld [vmem:[#allocation2 + $0x99] sm:$0xff]
        %v470 = vld [vmem:[#allocation2 + $0xa9] sm:$0xff]
        %v471 = vld [vmem:[#allocation2 + $0xb1] sm:$0xff]
        %v472 = vld [vmem:[#allocation2 + $0xc1] sm:$0xff]
        %v473 = vld [vmem:[#allocation2 + $0xc9] sm:$0xff]
        %v474 = vld [vmem:[#allocation2 + $0xd9] sm:$0xff]
        %v475 = vld [vmem:[#allocation2 + $0xe1] sm:$0xff]
        %v476 = vld [vmem:[#allocation2 + $0xf1] sm:$0xff]
        %v477 = vld [vmem:[#allocation2 + $0xf9] sm:$0xff]
        %v478 = vld [vmem:[#allocation2 + $0x109] sm:$0xff]
        %v479 = vld [vmem:[#allocation2 + $0x111] sm:$0xff]
        %v480 = vld [vmem:[#allocation2 + $0x121] sm:$0xff]
        %v481 = vld [vmem:[#allocation2 + $0x129] sm:$0xff]
        %v482 = vld [vmem:[#allocation2 + $0x139] sm:$0xff]
        %v483 = vld [vmem:[#allocation2 + $0x141] sm:$0xff]
        %v484 = vld [vmem:[#allocation2 + $0x151] sm:$0xff]
        %v485 = vld [vmem:[#allocation2 + $0x159] sm:$0xff]
        %v486 = vld [vmem:[#allocation2 + $0x169] sm:$0xff]
        %v487 = vld [vmem:[#allocation2 + $0x171] sm:$0xff]
        %s488 = scalar_lea.vmem %s1, 16
        %v489 = vld [vmem:[%s488] sm:$0xff]
        %v490 = vld [vmem:[%s488 + $0x8] sm:$0xff]
        %v492 = vsel %vm247, %v456, 0
        %v495 = vsel %vm247, %v457, 0
        %v498 = vsel %vm247, %v458, 0
        %v501 = vsel %vm247, %v459, 0
        %v504 = vsel %vm247, %v460, 0
        %v507 = vsel %vm247, %v461, 0
        %v510 = vsel %vm247, %v462, 0
        %v513 = vsel %vm247, %v463, 0
        %v516 = vsel %vm247, %v464, 0
        %v519 = vsel %vm247, %v465, 0
        %v522 = vsel %vm247, %v466, 0
        %v525 = vsel %vm247, %v467, 0
        %v528 = vsel %vm247, %v468, 0
        %v531 = vsel %vm247, %v469, 0
        %v534 = vsel %vm247, %v470, 0
        %v537 = vsel %vm247, %v471, 0
        %v540 = vsel %vm247, %v472, 0
        %v543 = vsel %vm247, %v473, 0
        %v546 = vsel %vm247, %v474, 0
        %v549 = vsel %vm247, %v475, 0
        %v552 = vsel %vm247, %v476, 0
        %v555 = vsel %vm247, %v477, 0
        %v558 = vsel %vm247, %v478, 0
        %v561 = vsel %vm247, %v479, 0
        %v564 = vsel %vm247, %v480, 0
        %v567 = vsel %vm247, %v481, 0
        %v570 = vsel %vm247, %v482, 0
        %v573 = vsel %vm247, %v483, 0
        %v576 = vsel %vm247, %v484, 0
        %v579 = vsel %vm247, %v485, 0
        %v582 = vsel %vm247, %v486, 0
        %v585 = vsel %vm247, %v487, 0
        %587 = vmatpush.msra.mxu0 0.0
        %588 = vmatpush.msra.mxu0 0.0
        %589 = vmatpush.msra.mxu0 0.0
        %590 = vmatpush.msra.mxu0 0.0
        %591 = vmatpush.msra.mxu0 0.0
        %592 = vmatpush.msra.mxu0 0.0
        %593 = vmatpush.msra.mxu0 0.0
        %594 = vmatpush.msra.mxu0 0.0
        %595 = vmatpush.msra.mxu0 0.0
        %596 = vmatpush.msra.mxu0 0.0
        %597 = vmatpush.msra.mxu0 0.0
        %598 = vmatpush.msra.mxu0 0.0
        %599 = vmatpush.msra.mxu0 0.0
        %600 = vmatpush.msra.mxu0 0.0
        %601 = vmatpush.msra.mxu0 %v490
        %602 = vmatpush.msra.mxu0 %v489
        %603 = vmatmul.f32.gmra.mxu0 %v492
        %v604 = vpop.f32.mrf.mxu0
        %v605 = vadd.f32 0.0, %v604
        %606 = vmatmul.f32.gmra.mxu0 %v495
        %v607 = vpop.f32.mrf.mxu0
        %v608 = vadd.f32 0.0, %v607
        %609 = vmatmul.f32.gmra.mxu0 %v498
        %v610 = vpop.f32.mrf.mxu0
        %v611 = vadd.f32 0.0, %v610
        %612 = vmatmul.f32.gmra.mxu0 %v501
        %v613 = vpop.f32.mrf.mxu0
        %v614 = vadd.f32 0.0, %v613
        %615 = vmatmul.f32.gmra.mxu0 %v504
        %v616 = vpop.f32.mrf.mxu0
        %v617 = vadd.f32 0.0, %v616
        %618 = vmatmul.f32.gmra.mxu0 %v507
        %v619 = vpop.f32.mrf.mxu0
        %v620 = vadd.f32 0.0, %v619
        %621 = vmatmul.f32.gmra.mxu0 %v510
        %v622 = vpop.f32.mrf.mxu0
        %v623 = vadd.f32 0.0, %v622
        %624 = vmatmul.f32.gmra.mxu0 %v513
        %v625 = vpop.f32.mrf.mxu0
        %v626 = vadd.f32 0.0, %v625
        %627 = vmatmul.f32.gmra.mxu0 %v516
        %v628 = vpop.f32.mrf.mxu0
        %v629 = vadd.f32 0.0, %v628
        %630 = vmatmul.f32.gmra.mxu0 %v519
        %v631 = vpop.f32.mrf.mxu0
        %v632 = vadd.f32 0.0, %v631
        %633 = vmatmul.f32.gmra.mxu0 %v522
        %v634 = vpop.f32.mrf.mxu0
        %v635 = vadd.f32 0.0, %v634
        %636 = vmatmul.f32.gmra.mxu0 %v525
        %v637 = vpop.f32.mrf.mxu0
        %v638 = vadd.f32 0.0, %v637
        %639 = vmatmul.f32.gmra.mxu0 %v528
        %v640 = vpop.f32.mrf.mxu0
        %v641 = vadd.f32 0.0, %v640
        %642 = vmatmul.f32.gmra.mxu0 %v531
        %v643 = vpop.f32.mrf.mxu0
        %v644 = vadd.f32 0.0, %v643
        %645 = vmatmul.f32.gmra.mxu0 %v534
        %v646 = vpop.f32.mrf.mxu0
        %v647 = vadd.f32 0.0, %v646
        %648 = vmatmul.f32.gmra.mxu0 %v537
        %v649 = vpop.f32.mrf.mxu0
        %v650 = vadd.f32 0.0, %v649
        %651 = vmatmul.f32.gmra.mxu0 %v540
        %v652 = vpop.f32.mrf.mxu0
        %v653 = vadd.f32 0.0, %v652
        %654 = vmatmul.f32.gmra.mxu0 %v543
        %v655 = vpop.f32.mrf.mxu0
        %v656 = vadd.f32 0.0, %v655
        %657 = vmatmul.f32.gmra.mxu0 %v546
        %v658 = vpop.f32.mrf.mxu0
        %v659 = vadd.f32 0.0, %v658
        %660 = vmatmul.f32.gmra.mxu0 %v549
        %v661 = vpop.f32.mrf.mxu0
        %v662 = vadd.f32 0.0, %v661
        %663 = vmatmul.f32.gmra.mxu0 %v552
        %v664 = vpop.f32.mrf.mxu0
        %v665 = vadd.f32 0.0, %v664
        %666 = vmatmul.f32.gmra.mxu0 %v555
        %v667 = vpop.f32.mrf.mxu0
        %v668 = vadd.f32 0.0, %v667
        %669 = vmatmul.f32.gmra.mxu0 %v558
        %v670 = vpop.f32.mrf.mxu0
        %v671 = vadd.f32 0.0, %v670
        %672 = vmatmul.f32.gmra.mxu0 %v561
        %v673 = vpop.f32.mrf.mxu0
        %v674 = vadd.f32 0.0, %v673
        %675 = vmatmul.f32.gmra.mxu0 %v564
        %v676 = vpop.f32.mrf.mxu0
        %v677 = vadd.f32 0.0, %v676
        %678 = vmatmul.f32.gmra.mxu0 %v567
        %v679 = vpop.f32.mrf.mxu0
        %v680 = vadd.f32 0.0, %v679
        %681 = vmatmul.f32.gmra.mxu0 %v570
        %v682 = vpop.f32.mrf.mxu0
        %v683 = vadd.f32 0.0, %v682
        %684 = vmatmul.f32.gmra.mxu0 %v573
        %v685 = vpop.f32.mrf.mxu0
        %v686 = vadd.f32 0.0, %v685
        %687 = vmatmul.f32.gmra.mxu0 %v576
        %v688 = vpop.f32.mrf.mxu0
        %v689 = vadd.f32 0.0, %v688
        %690 = vmatmul.f32.gmra.mxu0 %v579
        %v691 = vpop.f32.mrf.mxu0
        %v692 = vadd.f32 0.0, %v691
        %693 = vmatmul.f32.gmra.mxu0 %v582
        %v694 = vpop.f32.mrf.mxu0
        %v695 = vadd.f32 0.0, %v694
        %696 = vmatmul.f32.gmra.mxu0 %v585
        %v697 = vpop.f32.mrf.mxu0
        %v698 = vadd.f32 0.0, %v697
        %699 = vdwg.mxu0
        %v701 = vsel %vm247, %v422, 0
        %v704 = vsel %vm247, %v423, 0
        %v707 = vsel %vm247, %v424, 0
        %v710 = vsel %vm247, %v425, 0
        %v713 = vsel %vm247, %v426, 0
        %v716 = vsel %vm247, %v427, 0
        %v719 = vsel %vm247, %v428, 0
        %v722 = vsel %vm247, %v429, 0
        %v725 = vsel %vm247, %v430, 0
        %v728 = vsel %vm247, %v431, 0
        %v731 = vsel %vm247, %v432, 0
        %v734 = vsel %vm247, %v433, 0
        %v737 = vsel %vm247, %v434, 0
        %v740 = vsel %vm247, %v435, 0
        %v743 = vsel %vm247, %v436, 0
        %v746 = vsel %vm247, %v437, 0
        %v749 = vsel %vm247, %v438, 0
        %v752 = vsel %vm247, %v439, 0
        %v755 = vsel %vm247, %v440, 0
        %v758 = vsel %vm247, %v441, 0
        %v761 = vsel %vm247, %v442, 0
        %v764 = vsel %vm247, %v443, 0
        %v767 = vsel %vm247, %v444, 0
        %v770 = vsel %vm247, %v445, 0
        %v773 = vsel %vm247, %v446, 0
        %v776 = vsel %vm247, %v447, 0
        %v779 = vsel %vm247, %v448, 0
        %v782 = vsel %vm247, %v449, 0
        %v785 = vsel %vm247, %v450, 0
        %v788 = vsel %vm247, %v451, 0
        %v791 = vsel %vm247, %v452, 0
        %v794 = vsel %vm247, %v453, 0
        %796 = vmatpush.msra.mxu0 0.0
        %797 = vmatpush.msra.mxu0 0.0
        %798 = vmatpush.msra.mxu0 0.0
        %799 = vmatpush.msra.mxu0 0.0
        %800 = vmatpush.msra.mxu0 0.0
        %801 = vmatpush.msra.mxu0 0.0
        %802 = vmatpush.msra.mxu0 0.0
        %803 = vmatpush.msra.mxu0 0.0
        %804 = vmatpush.msra.mxu0 0.0
        %805 = vmatpush.msra.mxu0 0.0
        %806 = vmatpush.msra.mxu0 0.0
        %807 = vmatpush.msra.mxu0 0.0
        %808 = vmatpush.msra.mxu0 0.0
        %809 = vmatpush.msra.mxu0 0.0
        %810 = vmatpush.msra.mxu0 %v455
        %811 = vmatpush.msra.mxu0 %v454
        %812 = vmatmul.f32.gmra.mxu0 %v701
        %v813 = vpop.f32.mrf.mxu0
        %v814 = vadd.f32 %v605, %v813
        %815 = vmatmul.f32.gmra.mxu0 %v704
        %v816 = vpop.f32.mrf.mxu0
        %v817 = vadd.f32 %v608, %v816
        %818 = vmatmul.f32.gmra.mxu0 %v707
        %v819 = vpop.f32.mrf.mxu0
        %v820 = vadd.f32 %v611, %v819
        %821 = vmatmul.f32.gmra.mxu0 %v710
        %v822 = vpop.f32.mrf.mxu0
        %v823 = vadd.f32 %v614, %v822
        %824 = vmatmul.f32.gmra.mxu0 %v713
        %v825 = vpop.f32.mrf.mxu0
        %v826 = vadd.f32 %v617, %v825
        %827 = vmatmul.f32.gmra.mxu0 %v716
        %v828 = vpop.f32.mrf.mxu0
        %v829 = vadd.f32 %v620, %v828
        %830 = vmatmul.f32.gmra.mxu0 %v719
        %v831 = vpop.f32.mrf.mxu0
        %v832 = vadd.f32 %v623, %v831
        %833 = vmatmul.f32.gmra.mxu0 %v722
        %v834 = vpop.f32.mrf.mxu0
        %v835 = vadd.f32 %v626, %v834
        %836 = vmatmul.f32.gmra.mxu0 %v725
        %v837 = vpop.f32.mrf.mxu0
        %v838 = vadd.f32 %v629, %v837
        %839 = vmatmul.f32.gmra.mxu0 %v728
        %v840 = vpop.f32.mrf.mxu0
        %v841 = vadd.f32 %v632, %v840
        %842 = vmatmul.f32.gmra.mxu0 %v731
        %v843 = vpop.f32.mrf.mxu0
        %v844 = vadd.f32 %v635, %v843
        %845 = vmatmul.f32.gmra.mxu0 %v734
        %v846 = vpop.f32.mrf.mxu0
        %v847 = vadd.f32 %v638, %v846
        %848 = vmatmul.f32.gmra.mxu0 %v737
        %v849 = vpop.f32.mrf.mxu0
        %v850 = vadd.f32 %v641, %v849
        %851 = vmatmul.f32.gmra.mxu0 %v740
        %v852 = vpop.f32.mrf.mxu0
        %v853 = vadd.f32 %v644, %v852
        %854 = vmatmul.f32.gmra.mxu0 %v743
        %v855 = vpop.f32.mrf.mxu0
        %v856 = vadd.f32 %v647, %v855
        %857 = vmatmul.f32.gmra.mxu0 %v746
        %v858 = vpop.f32.mrf.mxu0
        %v859 = vadd.f32 %v650, %v858
        %860 = vmatmul.f32.gmra.mxu0 %v749
        %v861 = vpop.f32.mrf.mxu0
        %v862 = vadd.f32 %v653, %v861
        %863 = vmatmul.f32.gmra.mxu0 %v752
        %v864 = vpop.f32.mrf.mxu0
        %v865 = vadd.f32 %v656, %v864
        %866 = vmatmul.f32.gmra.mxu0 %v755
        %v867 = vpop.f32.mrf.mxu0
        %v868 = vadd.f32 %v659, %v867
        %869 = vmatmul.f32.gmra.mxu0 %v758
        %v870 = vpop.f32.mrf.mxu0
        %v871 = vadd.f32 %v662, %v870
        %872 = vmatmul.f32.gmra.mxu0 %v761
        %v873 = vpop.f32.mrf.mxu0
        %v874 = vadd.f32 %v665, %v873
        %875 = vmatmul.f32.gmra.mxu0 %v764
        %v876 = vpop.f32.mrf.mxu0
        %v877 = vadd.f32 %v668, %v876
        %878 = vmatmul.f32.gmra.mxu0 %v767
        %v879 = vpop.f32.mrf.mxu0
        %v880 = vadd.f32 %v671, %v879
        %881 = vmatmul.f32.gmra.mxu0 %v770
        %v882 = vpop.f32.mrf.mxu0
        %v883 = vadd.f32 %v674, %v882
        %884 = vmatmul.f32.gmra.mxu0 %v773
        %v885 = vpop.f32.mrf.mxu0
        %v886 = vadd.f32 %v677, %v885
        %887 = vmatmul.f32.gmra.mxu0 %v776
        %v888 = vpop.f32.mrf.mxu0
        %v889 = vadd.f32 %v680, %v888
        %890 = vmatmul.f32.gmra.mxu0 %v779
        %v891 = vpop.f32.mrf.mxu0
        %v892 = vadd.f32 %v683, %v891
        %893 = vmatmul.f32.gmra.mxu0 %v782
        %v894 = vpop.f32.mrf.mxu0
        %v895 = vadd.f32 %v686, %v894
        %896 = vmatmul.f32.gmra.mxu0 %v785
        %v897 = vpop.f32.mrf.mxu0
        %v898 = vadd.f32 %v689, %v897
        %899 = vmatmul.f32.gmra.mxu0 %v788
        %v900 = vpop.f32.mrf.mxu0
        %v901 = vadd.f32 %v692, %v900
        %902 = vmatmul.f32.gmra.mxu0 %v791
        %v903 = vpop.f32.mrf.mxu0
        %v904 = vadd.f32 %v695, %v903
        %905 = vmatmul.f32.gmra.mxu0 %v794
        %v906 = vpop.f32.mrf.mxu0
        %v907 = vadd.f32 %v698, %v906
        %908 = vdwg.mxu0
        %v909 = vld [vmem:[#allocation2 + $0x2] sm:$0xff]
        %v910 = vld [vmem:[#allocation2 + $0xa] sm:$0xff]
        %v911 = vld [vmem:[#allocation2 + $0x1a] sm:$0xff]
        %v912 = vld [vmem:[#allocation2 + $0x22] sm:$0xff]
        %v913 = vld [vmem:[#allocation2 + $0x32] sm:$0xff]
        %v914 = vld [vmem:[#allocation2 + $0x3a] sm:$0xff]
        %v915 = vld [vmem:[#allocation2 + $0x4a] sm:$0xff]
        %v916 = vld [vmem:[#allocation2 + $0x52] sm:$0xff]
        %v917 = vld [vmem:[#allocation2 + $0x62] sm:$0xff]
        %v918 = vld [vmem:[#allocation2 + $0x6a] sm:$0xff]
        %v919 = vld [vmem:[#allocation2 + $0x7a] sm:$0xff]
        %v920 = vld [vmem:[#allocation2 + $0x82] sm:$0xff]
        %v921 = vld [vmem:[#allocation2 + $0x92] sm:$0xff]
        %v922 = vld [vmem:[#allocation2 + $0x9a] sm:$0xff]
        %v923 = vld [vmem:[#allocation2 + $0xaa] sm:$0xff]
        %v924 = vld [vmem:[#allocation2 + $0xb2] sm:$0xff]
        %v925 = vld [vmem:[#allocation2 + $0xc2] sm:$0xff]
        %v926 = vld [vmem:[#allocation2 + $0xca] sm:$0xff]
        %v927 = vld [vmem:[#allocation2 + $0xda] sm:$0xff]
        %v928 = vld [vmem:[#allocation2 + $0xe2] sm:$0xff]
        %v929 = vld [vmem:[#allocation2 + $0xf2] sm:$0xff]
        %v930 = vld [vmem:[#allocation2 + $0xfa] sm:$0xff]
        %v931 = vld [vmem:[#allocation2 + $0x10a] sm:$0xff]
        %v932 = vld [vmem:[#allocation2 + $0x112] sm:$0xff]
        %v933 = vld [vmem:[#allocation2 + $0x122] sm:$0xff]
        %v934 = vld [vmem:[#allocation2 + $0x12a] sm:$0xff]
        %v935 = vld [vmem:[#allocation2 + $0x13a] sm:$0xff]
        %v936 = vld [vmem:[#allocation2 + $0x142] sm:$0xff]
        %v937 = vld [vmem:[#allocation2 + $0x152] sm:$0xff]
        %v938 = vld [vmem:[#allocation2 + $0x15a] sm:$0xff]
        %v939 = vld [vmem:[#allocation2 + $0x16a] sm:$0xff]
        %v940 = vld [vmem:[#allocation2 + $0x172] sm:$0xff]
        %s941 = scalar_lea.vmem %s1, 32
        %v942 = vld [vmem:[%s941] sm:$0xff]
        %v943 = vld [vmem:[%s941 + $0x8] sm:$0xff]
        %v945 = vsel %vm247, %v909, 0
        %v948 = vsel %vm247, %v910, 0
        %v951 = vsel %vm247, %v911, 0
        %v954 = vsel %vm247, %v912, 0
        %v957 = vsel %vm247, %v913, 0
        %v960 = vsel %vm247, %v914, 0
        %v963 = vsel %vm247, %v915, 0
        %v966 = vsel %vm247, %v916, 0
        %v969 = vsel %vm247, %v917, 0
        %v972 = vsel %vm247, %v918, 0
        %v975 = vsel %vm247, %v919, 0
        %v978 = vsel %vm247, %v920, 0
        %v981 = vsel %vm247, %v921, 0
        %v984 = vsel %vm247, %v922, 0
        %v987 = vsel %vm247, %v923, 0
        %v990 = vsel %vm247, %v924, 0
        %v993 = vsel %vm247, %v925, 0
        %v996 = vsel %vm247, %v926, 0
        %v999 = vsel %vm247, %v927, 0
        %v1002 = vsel %vm247, %v928, 0
        %v1005 = vsel %vm247, %v929, 0
        %v1008 = vsel %vm247, %v930, 0
        %v1011 = vsel %vm247, %v931, 0
        %v1014 = vsel %vm247, %v932, 0
        %v1017 = vsel %vm247, %v933, 0
        %v1020 = vsel %vm247, %v934, 0
        %v1023 = vsel %vm247, %v935, 0
        %v1026 = vsel %vm247, %v936, 0
        %v1029 = vsel %vm247, %v937, 0
        %v1032 = vsel %vm247, %v938, 0
        %v1035 = vsel %vm247, %v939, 0
        %v1038 = vsel %vm247, %v940, 0
        %1040 = vmatpush.msra.mxu0 0.0
        %1041 = vmatpush.msra.mxu0 0.0
        %1042 = vmatpush.msra.mxu0 0.0
        %1043 = vmatpush.msra.mxu0 0.0
        %1044 = vmatpush.msra.mxu0 0.0
        %1045 = vmatpush.msra.mxu0 0.0
        %1046 = vmatpush.msra.mxu0 0.0
        %1047 = vmatpush.msra.mxu0 0.0
        %1048 = vmatpush.msra.mxu0 0.0
        %1049 = vmatpush.msra.mxu0 0.0
        %1050 = vmatpush.msra.mxu0 0.0
        %1051 = vmatpush.msra.mxu0 0.0
        %1052 = vmatpush.msra.mxu0 0.0
        %1053 = vmatpush.msra.mxu0 0.0
        %1054 = vmatpush.msra.mxu0 %v943
        %1055 = vmatpush.msra.mxu0 %v942
        %1056 = vmatmul.f32.gmra.mxu0 %v945
        %v1057 = vpop.f32.mrf.mxu0
        %v1058 = vadd.f32 0.0, %v1057
        %1059 = vmatmul.f32.gmra.mxu0 %v948
        %v1060 = vpop.f32.mrf.mxu0
        %v1061 = vadd.f32 0.0, %v1060
        %1062 = vmatmul.f32.gmra.mxu0 %v951
        %v1063 = vpop.f32.mrf.mxu0
        %v1064 = vadd.f32 0.0, %v1063
        %1065 = vmatmul.f32.gmra.mxu0 %v954
        %v1066 = vpop.f32.mrf.mxu0
        %v1067 = vadd.f32 0.0, %v1066
        %1068 = vmatmul.f32.gmra.mxu0 %v957
        %v1069 = vpop.f32.mrf.mxu0
        %v1070 = vadd.f32 0.0, %v1069
        %1071 = vmatmul.f32.gmra.mxu0 %v960
        %v1072 = vpop.f32.mrf.mxu0
        %v1073 = vadd.f32 0.0, %v1072
        %1074 = vmatmul.f32.gmra.mxu0 %v963
        %v1075 = vpop.f32.mrf.mxu0
        %v1076 = vadd.f32 0.0, %v1075
        %1077 = vmatmul.f32.gmra.mxu0 %v966
        %v1078 = vpop.f32.mrf.mxu0
        %v1079 = vadd.f32 0.0, %v1078
        %1080 = vmatmul.f32.gmra.mxu0 %v969
        %v1081 = vpop.f32.mrf.mxu0
        %v1082 = vadd.f32 0.0, %v1081
        %1083 = vmatmul.f32.gmra.mxu0 %v972
        %v1084 = vpop.f32.mrf.mxu0
        %v1085 = vadd.f32 0.0, %v1084
        %1086 = vmatmul.f32.gmra.mxu0 %v975
        %v1087 = vpop.f32.mrf.mxu0
        %v1088 = vadd.f32 0.0, %v1087
        %1089 = vmatmul.f32.gmra.mxu0 %v978
        %v1090 = vpop.f32.mrf.mxu0
        %v1091 = vadd.f32 0.0, %v1090
        %1092 = vmatmul.f32.gmra.mxu0 %v981
        %v1093 = vpop.f32.mrf.mxu0
        %v1094 = vadd.f32 0.0, %v1093
        %1095 = vmatmul.f32.gmra.mxu0 %v984
        %v1096 = vpop.f32.mrf.mxu0
        %v1097 = vadd.f32 0.0, %v1096
        %1098 = vmatmul.f32.gmra.mxu0 %v987
        %v1099 = vpop.f32.mrf.mxu0
        %v1100 = vadd.f32 0.0, %v1099
        %1101 = vmatmul.f32.gmra.mxu0 %v990
        %v1102 = vpop.f32.mrf.mxu0
        %v1103 = vadd.f32 0.0, %v1102
        %1104 = vmatmul.f32.gmra.mxu0 %v993
        %v1105 = vpop.f32.mrf.mxu0
        %v1106 = vadd.f32 0.0, %v1105
        %1107 = vmatmul.f32.gmra.mxu0 %v996
        %v1108 = vpop.f32.mrf.mxu0
        %v1109 = vadd.f32 0.0, %v1108
        %1110 = vmatmul.f32.gmra.mxu0 %v999
        %v1111 = vpop.f32.mrf.mxu0
        %v1112 = vadd.f32 0.0, %v1111
        %1113 = vmatmul.f32.gmra.mxu0 %v1002
        %v1114 = vpop.f32.mrf.mxu0
        %v1115 = vadd.f32 0.0, %v1114
        %1116 = vmatmul.f32.gmra.mxu0 %v1005
        %v1117 = vpop.f32.mrf.mxu0
        %v1118 = vadd.f32 0.0, %v1117
        %1119 = vmatmul.f32.gmra.mxu0 %v1008
        %v1120 = vpop.f32.mrf.mxu0
        %v1121 = vadd.f32 0.0, %v1120
        %1122 = vmatmul.f32.gmra.mxu0 %v1011
        %v1123 = vpop.f32.mrf.mxu0
        %v1124 = vadd.f32 0.0, %v1123
        %1125 = vmatmul.f32.gmra.mxu0 %v1014
        %v1126 = vpop.f32.mrf.mxu0
        %v1127 = vadd.f32 0.0, %v1126
        %1128 = vmatmul.f32.gmra.mxu0 %v1017
        %v1129 = vpop.f32.mrf.mxu0
        %v1130 = vadd.f32 0.0, %v1129
        %1131 = vmatmul.f32.gmra.mxu0 %v1020
        %v1132 = vpop.f32.mrf.mxu0
        %v1133 = vadd.f32 0.0, %v1132
        %1134 = vmatmul.f32.gmra.mxu0 %v1023
        %v1135 = vpop.f32.mrf.mxu0
        %v1136 = vadd.f32 0.0, %v1135
        %1137 = vmatmul.f32.gmra.mxu0 %v1026
        %v1138 = vpop.f32.mrf.mxu0
        %v1139 = vadd.f32 0.0, %v1138
        %1140 = vmatmul.f32.gmra.mxu0 %v1029
        %v1141 = vpop.f32.mrf.mxu0
        %v1142 = vadd.f32 0.0, %v1141
        %1143 = vmatmul.f32.gmra.mxu0 %v1032
        %v1144 = vpop.f32.mrf.mxu0
        %v1145 = vadd.f32 0.0, %v1144
        %1146 = vmatmul.f32.gmra.mxu0 %v1035
        %v1147 = vpop.f32.mrf.mxu0
        %v1148 = vadd.f32 0.0, %v1147
        %1149 = vmatmul.f32.gmra.mxu0 %v1038
        %v1150 = vpop.f32.mrf.mxu0
        %v1151 = vadd.f32 0.0, %v1150
        %1152 = vdwg.mxu0
        %v1153 = vadd.f32 %v814, %v1058
        %v1154 = vadd.f32 %v817, %v1061
        %v1155 = vadd.f32 %v820, %v1064
        %v1156 = vadd.f32 %v823, %v1067
        %v1157 = vadd.f32 %v826, %v1070
        %v1158 = vadd.f32 %v829, %v1073
        %v1159 = vadd.f32 %v832, %v1076
        %v1160 = vadd.f32 %v835, %v1079
        %v1161 = vadd.f32 %v838, %v1082
        %v1162 = vadd.f32 %v841, %v1085
        %v1163 = vadd.f32 %v844, %v1088
        %v1164 = vadd.f32 %v847, %v1091
        %v1165 = vadd.f32 %v850, %v1094
        %v1166 = vadd.f32 %v853, %v1097
        %v1167 = vadd.f32 %v856, %v1100
        %v1168 = vadd.f32 %v859, %v1103
        %v1169 = vadd.f32 %v862, %v1106
        %v1170 = vadd.f32 %v865, %v1109
        %v1171 = vadd.f32 %v868, %v1112
        %v1172 = vadd.f32 %v871, %v1115
        %v1173 = vadd.f32 %v874, %v1118
        %v1174 = vadd.f32 %v877, %v1121
        %v1175 = vadd.f32 %v880, %v1124
        %v1176 = vadd.f32 %v883, %v1127
        %v1177 = vadd.f32 %v886, %v1130
        %v1178 = vadd.f32 %v889, %v1133
        %v1179 = vadd.f32 %v892, %v1136
        %v1180 = vadd.f32 %v895, %v1139
        %v1181 = vadd.f32 %v898, %v1142
        %v1182 = vadd.f32 %v901, %v1145
        %v1183 = vadd.f32 %v904, %v1148
        %v1184 = vadd.f32 %v907, %v1151
        %v1185 = vld [vmem:[%s389] sm:$0xff]
        %v1186 = vld [vmem:[%s389 + $0x8] sm:$0xff]
        %v1187 = vld [vmem:[%s389 + $0x18] sm:$0xff]
        %v1188 = vld [vmem:[%s389 + $0x20] sm:$0xff]
        %v1189 = vld [vmem:[%s389 + $0x30] sm:$0xff]
        %v1190 = vld [vmem:[%s389 + $0x38] sm:$0xff]
        %v1191 = vld [vmem:[%s389 + $0x48] sm:$0xff]
        %v1192 = vld [vmem:[%s389 + $0x50] sm:$0xff]
        %v1193 = vld [vmem:[%s389 + $0x60] sm:$0xff]
        %v1194 = vld [vmem:[%s389 + $0x68] sm:$0xff]
        %v1195 = vld [vmem:[%s389 + $0x78] sm:$0xff]
        %v1196 = vld [vmem:[%s389 + $0x80] sm:$0xff]
        %v1197 = vld [vmem:[%s389 + $0x90] sm:$0xff]
        %v1198 = vld [vmem:[%s389 + $0x98] sm:$0xff]
        %v1199 = vld [vmem:[%s389 + $0xa8] sm:$0xff]
        %v1200 = vld [vmem:[%s389 + $0xb0] sm:$0xff]
        %v1201 = vld [vmem:[%s389 + $0xc0] sm:$0xff]
        %v1202 = vld [vmem:[%s389 + $0xc8] sm:$0xff]
        %v1203 = vld [vmem:[%s389 + $0xd8] sm:$0xff]
        %v1204 = vld [vmem:[%s389 + $0xe0] sm:$0xff]
        %v1205 = vld [vmem:[%s389 + $0xf0] sm:$0xff]
        %v1206 = vld [vmem:[%s389 + $0xf8] sm:$0xff]
        %v1207 = vld [vmem:[%s389 + $0x108] sm:$0xff]
        %v1208 = vld [vmem:[%s389 + $0x110] sm:$0xff]
        %v1209 = vld [vmem:[%s389 + $0x120] sm:$0xff]
        %v1210 = vld [vmem:[%s389 + $0x128] sm:$0xff]
        %v1211 = vld [vmem:[%s389 + $0x138] sm:$0xff]
        %v1212 = vld [vmem:[%s389 + $0x140] sm:$0xff]
        %v1213 = vld [vmem:[%s389 + $0x150] sm:$0xff]
        %v1214 = vld [vmem:[%s389 + $0x158] sm:$0xff]
        %v1215 = vld [vmem:[%s389 + $0x168] sm:$0xff]
        %v1216 = vld [vmem:[%s389 + $0x170] sm:$0xff]
        %s1217 = scalar_lea.vmem %s1, 48
        %v1218 = vld [vmem:[%s1217] sm:$0xff]
        %v1219 = vld [vmem:[%s1217 + $0x8] sm:$0xff]
        %v1221 = vsel %vm247, %v1185, 0
        %v1224 = vsel %vm247, %v1186, 0
        %v1227 = vsel %vm247, %v1187, 0
        %v1230 = vsel %vm247, %v1188, 0
        %v1233 = vsel %vm247, %v1189, 0
        %v1236 = vsel %vm247, %v1190, 0
        %v1239 = vsel %vm247, %v1191, 0
        %v1242 = vsel %vm247, %v1192, 0
        %v1245 = vsel %vm247, %v1193, 0
        %v1248 = vsel %vm247, %v1194, 0
        %v1251 = vsel %vm247, %v1195, 0
        %v1254 = vsel %vm247, %v1196, 0
        %v1257 = vsel %vm247, %v1197, 0
        %v1260 = vsel %vm247, %v1198, 0
        %v1263 = vsel %vm247, %v1199, 0
        %v1266 = vsel %vm247, %v1200, 0
        %v1269 = vsel %vm247, %v1201, 0
        %v1272 = vsel %vm247, %v1202, 0
        %v1275 = vsel %vm247, %v1203, 0
        %v1278 = vsel %vm247, %v1204, 0
        %v1281 = vsel %vm247, %v1205, 0
        %v1284 = vsel %vm247, %v1206, 0
        %v1287 = vsel %vm247, %v1207, 0
        %v1290 = vsel %vm247, %v1208, 0
        %v1293 = vsel %vm247, %v1209, 0
        %v1296 = vsel %vm247, %v1210, 0
        %v1299 = vsel %vm247, %v1211, 0
        %v1302 = vsel %vm247, %v1212, 0
        %v1305 = vsel %vm247, %v1213, 0
        %v1308 = vsel %vm247, %v1214, 0
        %v1311 = vsel %vm247, %v1215, 0
        %v1314 = vsel %vm247, %v1216, 0
        %1316 = vmatpush.msra.mxu0 0.0
        %1317 = vmatpush.msra.mxu0 0.0
        %1318 = vmatpush.msra.mxu0 0.0
        %1319 = vmatpush.msra.mxu0 0.0
        %1320 = vmatpush.msra.mxu0 0.0
        %1321 = vmatpush.msra.mxu0 0.0
        %1322 = vmatpush.msra.mxu0 0.0
        %1323 = vmatpush.msra.mxu0 0.0
        %1324 = vmatpush.msra.mxu0 0.0
        %1325 = vmatpush.msra.mxu0 0.0
        %1326 = vmatpush.msra.mxu0 0.0
        %1327 = vmatpush.msra.mxu0 0.0
        %1328 = vmatpush.msra.mxu0 0.0
        %1329 = vmatpush.msra.mxu0 0.0
        %1330 = vmatpush.msra.mxu0 %v1219
        %1331 = vmatpush.msra.mxu0 %v1218
        %1332 = vmatmul.f32.gmra.mxu0 %v1221
        %v1333 = vpop.f32.mrf.mxu0
        %v1334 = vadd.f32 0.0, %v1333
        %1335 = vmatmul.f32.gmra.mxu0 %v1224
        %v1336 = vpop.f32.mrf.mxu0
        %v1337 = vadd.f32 0.0, %v1336
        %1338 = vmatmul.f32.gmra.mxu0 %v1227
        %v1339 = vpop.f32.mrf.mxu0
        %v1340 = vadd.f32 0.0, %v1339
        %1341 = vmatmul.f32.gmra.mxu0 %v1230
        %v1342 = vpop.f32.mrf.mxu0
        %v1343 = vadd.f32 0.0, %v1342
        %1344 = vmatmul.f32.gmra.mxu0 %v1233
        %v1345 = vpop.f32.mrf.mxu0
        %v1346 = vadd.f32 0.0, %v1345
        %1347 = vmatmul.f32.gmra.mxu0 %v1236
        %v1348 = vpop.f32.mrf.mxu0
        %v1349 = vadd.f32 0.0, %v1348
        %1350 = vmatmul.f32.gmra.mxu0 %v1239
        %v1351 = vpop.f32.mrf.mxu0
        %v1352 = vadd.f32 0.0, %v1351
        %1353 = vmatmul.f32.gmra.mxu0 %v1242
        %v1354 = vpop.f32.mrf.mxu0
        %v1355 = vadd.f32 0.0, %v1354
        %1356 = vmatmul.f32.gmra.mxu0 %v1245
        %v1357 = vpop.f32.mrf.mxu0
        %v1358 = vadd.f32 0.0, %v1357
        %1359 = vmatmul.f32.gmra.mxu0 %v1248
        %v1360 = vpop.f32.mrf.mxu0
        %v1361 = vadd.f32 0.0, %v1360
        %1362 = vmatmul.f32.gmra.mxu0 %v1251
        %v1363 = vpop.f32.mrf.mxu0
        %v1364 = vadd.f32 0.0, %v1363
        %1365 = vmatmul.f32.gmra.mxu0 %v1254
        %v1366 = vpop.f32.mrf.mxu0
        %v1367 = vadd.f32 0.0, %v1366
        %1368 = vmatmul.f32.gmra.mxu0 %v1257
        %v1369 = vpop.f32.mrf.mxu0
        %v1370 = vadd.f32 0.0, %v1369
        %1371 = vmatmul.f32.gmra.mxu0 %v1260
        %v1372 = vpop.f32.mrf.mxu0
        %v1373 = vadd.f32 0.0, %v1372
        %1374 = vmatmul.f32.gmra.mxu0 %v1263
        %v1375 = vpop.f32.mrf.mxu0
        %v1376 = vadd.f32 0.0, %v1375
        %1377 = vmatmul.f32.gmra.mxu0 %v1266
        %v1378 = vpop.f32.mrf.mxu0
        %v1379 = vadd.f32 0.0, %v1378
        %1380 = vmatmul.f32.gmra.mxu0 %v1269
        %v1381 = vpop.f32.mrf.mxu0
        %v1382 = vadd.f32 0.0, %v1381
        %1383 = vmatmul.f32.gmra.mxu0 %v1272
        %v1384 = vpop.f32.mrf.mxu0
        %v1385 = vadd.f32 0.0, %v1384
        %1386 = vmatmul.f32.gmra.mxu0 %v1275
        %v1387 = vpop.f32.mrf.mxu0
        %v1388 = vadd.f32 0.0, %v1387
        %1389 = vmatmul.f32.gmra.mxu0 %v1278
        %v1390 = vpop.f32.mrf.mxu0
        %v1391 = vadd.f32 0.0, %v1390
        %1392 = vmatmul.f32.gmra.mxu0 %v1281
        %v1393 = vpop.f32.mrf.mxu0
        %v1394 = vadd.f32 0.0, %v1393
        %1395 = vmatmul.f32.gmra.mxu0 %v1284
        %v1396 = vpop.f32.mrf.mxu0
        %v1397 = vadd.f32 0.0, %v1396
        %1398 = vmatmul.f32.gmra.mxu0 %v1287
        %v1399 = vpop.f32.mrf.mxu0
        %v1400 = vadd.f32 0.0, %v1399
        %1401 = vmatmul.f32.gmra.mxu0 %v1290
        %v1402 = vpop.f32.mrf.mxu0
        %v1403 = vadd.f32 0.0, %v1402
        %1404 = vmatmul.f32.gmra.mxu0 %v1293
        %v1405 = vpop.f32.mrf.mxu0
        %v1406 = vadd.f32 0.0, %v1405
        %1407 = vmatmul.f32.gmra.mxu0 %v1296
        %v1408 = vpop.f32.mrf.mxu0
        %v1409 = vadd.f32 0.0, %v1408
        %1410 = vmatmul.f32.gmra.mxu0 %v1299
        %v1411 = vpop.f32.mrf.mxu0
        %v1412 = vadd.f32 0.0, %v1411
        %1413 = vmatmul.f32.gmra.mxu0 %v1302
        %v1414 = vpop.f32.mrf.mxu0
        %v1415 = vadd.f32 0.0, %v1414
        %1416 = vmatmul.f32.gmra.mxu0 %v1305
        %v1417 = vpop.f32.mrf.mxu0
        %v1418 = vadd.f32 0.0, %v1417
        %1419 = vmatmul.f32.gmra.mxu0 %v1308
        %v1420 = vpop.f32.mrf.mxu0
        %v1421 = vadd.f32 0.0, %v1420
        %1422 = vmatmul.f32.gmra.mxu0 %v1311
        %v1423 = vpop.f32.mrf.mxu0
        %v1424 = vadd.f32 0.0, %v1423
        %1425 = vmatmul.f32.gmra.mxu0 %v1314
        %v1426 = vpop.f32.mrf.mxu0
        %v1427 = vadd.f32 0.0, %v1426
        %1428 = vdwg.mxu0
        %v1429 = vadd.f32 %v1153, %v1334
        %v1430 = vadd.f32 %v1154, %v1337
        %v1431 = vadd.f32 %v1155, %v1340
        %v1432 = vadd.f32 %v1156, %v1343
        %v1433 = vadd.f32 %v1157, %v1346
        %v1434 = vadd.f32 %v1158, %v1349
        %v1435 = vadd.f32 %v1159, %v1352
        %v1436 = vadd.f32 %v1160, %v1355
        %v1437 = vadd.f32 %v1161, %v1358
        %v1438 = vadd.f32 %v1162, %v1361
        %v1439 = vadd.f32 %v1163, %v1364
        %v1440 = vadd.f32 %v1164, %v1367
        %v1441 = vadd.f32 %v1165, %v1370
        %v1442 = vadd.f32 %v1166, %v1373
        %v1443 = vadd.f32 %v1167, %v1376
        %v1444 = vadd.f32 %v1168, %v1379
        %v1445 = vadd.f32 %v1169, %v1382
        %v1446 = vadd.f32 %v1170, %v1385
        %v1447 = vadd.f32 %v1171, %v1388
        %v1448 = vadd.f32 %v1172, %v1391
        %v1449 = vadd.f32 %v1173, %v1394
        %v1450 = vadd.f32 %v1174, %v1397
        %v1451 = vadd.f32 %v1175, %v1400
        %v1452 = vadd.f32 %v1176, %v1403
        %v1453 = vadd.f32 %v1177, %v1406
        %v1454 = vadd.f32 %v1178, %v1409
        %v1455 = vadd.f32 %v1179, %v1412
        %v1456 = vadd.f32 %v1180, %v1415
        %v1457 = vadd.f32 %v1181, %v1418
        %v1458 = vadd.f32 %v1182, %v1421
        %v1459 = vadd.f32 %v1183, %v1424
        %v1460 = vadd.f32 %v1184, %v1427
        %v1461 = vld [vmem:[%s389 + $0x1] sm:$0xff]
        %v1462 = vld [vmem:[%s389 + $0x9] sm:$0xff]
        %v1463 = vld [vmem:[%s389 + $0x19] sm:$0xff]
        %v1464 = vld [vmem:[%s389 + $0x21] sm:$0xff]
        %v1465 = vld [vmem:[%s389 + $0x31] sm:$0xff]
        %v1466 = vld [vmem:[%s389 + $0x39] sm:$0xff]
        %v1467 = vld [vmem:[%s389 + $0x49] sm:$0xff]
        %v1468 = vld [vmem:[%s389 + $0x51] sm:$0xff]
        %v1469 = vld [vmem:[%s389 + $0x61] sm:$0xff]
        %v1470 = vld [vmem:[%s389 + $0x69] sm:$0xff]
        %v1471 = vld [vmem:[%s389 + $0x79] sm:$0xff]
        %v1472 = vld [vmem:[%s389 + $0x81] sm:$0xff]
        %v1473 = vld [vmem:[%s389 + $0x91] sm:$0xff]
        %v1474 = vld [vmem:[%s389 + $0x99] sm:$0xff]
        %v1475 = vld [vmem:[%s389 + $0xa9] sm:$0xff]
        %v1476 = vld [vmem:[%s389 + $0xb1] sm:$0xff]
        %v1477 = vld [vmem:[%s389 + $0xc1] sm:$0xff]
        %v1478 = vld [vmem:[%s389 + $0xc9] sm:$0xff]
        %v1479 = vld [vmem:[%s389 + $0xd9] sm:$0xff]
        %v1480 = vld [vmem:[%s389 + $0xe1] sm:$0xff]
        %v1481 = vld [vmem:[%s389 + $0xf1] sm:$0xff]
        %v1482 = vld [vmem:[%s389 + $0xf9] sm:$0xff]
        %v1483 = vld [vmem:[%s389 + $0x109] sm:$0xff]
        %v1484 = vld [vmem:[%s389 + $0x111] sm:$0xff]
        %v1485 = vld [vmem:[%s389 + $0x121] sm:$0xff]
        %v1486 = vld [vmem:[%s389 + $0x129] sm:$0xff]
        %v1487 = vld [vmem:[%s389 + $0x139] sm:$0xff]
        %v1488 = vld [vmem:[%s389 + $0x141] sm:$0xff]
        %v1489 = vld [vmem:[%s389 + $0x151] sm:$0xff]
        %v1490 = vld [vmem:[%s389 + $0x159] sm:$0xff]
        %v1491 = vld [vmem:[%s389 + $0x169] sm:$0xff]
        %v1492 = vld [vmem:[%s389 + $0x171] sm:$0xff]
        %s1493 = scalar_lea.vmem %s1, 64
        %v1494 = vld [vmem:[%s1493] sm:$0xff]
        %v1495 = vld [vmem:[%s1493 + $0x8] sm:$0xff]
        %v1497 = vsel %vm247, %v1461, 0
        %v1500 = vsel %vm247, %v1462, 0
        %v1503 = vsel %vm247, %v1463, 0
        %v1506 = vsel %vm247, %v1464, 0
        %v1509 = vsel %vm247, %v1465, 0
        %v1512 = vsel %vm247, %v1466, 0
        %v1515 = vsel %vm247, %v1467, 0
        %v1518 = vsel %vm247, %v1468, 0
        %v1521 = vsel %vm247, %v1469, 0
        %v1524 = vsel %vm247, %v1470, 0
        %v1527 = vsel %vm247, %v1471, 0
        %v1530 = vsel %vm247, %v1472, 0
        %v1533 = vsel %vm247, %v1473, 0
        %v1536 = vsel %vm247, %v1474, 0
        %v1539 = vsel %vm247, %v1475, 0
        %v1542 = vsel %vm247, %v1476, 0
        %v1545 = vsel %vm247, %v1477, 0
        %v1548 = vsel %vm247, %v1478, 0
        %v1551 = vsel %vm247, %v1479, 0
        %v1554 = vsel %vm247, %v1480, 0
        %v1557 = vsel %vm247, %v1481, 0
        %v1560 = vsel %vm247, %v1482, 0
        %v1563 = vsel %vm247, %v1483, 0
        %v1566 = vsel %vm247, %v1484, 0
        %v1569 = vsel %vm247, %v1485, 0
        %v1572 = vsel %vm247, %v1486, 0
        %v1575 = vsel %vm247, %v1487, 0
        %v1578 = vsel %vm247, %v1488, 0
        %v1581 = vsel %vm247, %v1489, 0
        %v1584 = vsel %vm247, %v1490, 0
        %v1587 = vsel %vm247, %v1491, 0
        %v1590 = vsel %vm247, %v1492, 0
        %1592 = vmatpush.msra.mxu0 0.0
        %1593 = vmatpush.msra.mxu0 0.0
        %1594 = vmatpush.msra.mxu0 0.0
        %1595 = vmatpush.msra.mxu0 0.0
        %1596 = vmatpush.msra.mxu0 0.0
        %1597 = vmatpush.msra.mxu0 0.0
        %1598 = vmatpush.msra.mxu0 0.0
        %1599 = vmatpush.msra.mxu0 0.0
        %1600 = vmatpush.msra.mxu0 0.0
        %1601 = vmatpush.msra.mxu0 0.0
        %1602 = vmatpush.msra.mxu0 0.0
        %1603 = vmatpush.msra.mxu0 0.0
        %1604 = vmatpush.msra.mxu0 0.0
        %1605 = vmatpush.msra.mxu0 0.0
        %1606 = vmatpush.msra.mxu0 %v1495
        %1607 = vmatpush.msra.mxu0 %v1494
        %1608 = vmatmul.f32.gmra.mxu0 %v1497
        %v1609 = vpop.f32.mrf.mxu0
        %v1610 = vadd.f32 0.0, %v1609
        %1611 = vmatmul.f32.gmra.mxu0 %v1500
        %v1612 = vpop.f32.mrf.mxu0
        %v1613 = vadd.f32 0.0, %v1612
        %1614 = vmatmul.f32.gmra.mxu0 %v1503
        %v1615 = vpop.f32.mrf.mxu0
        %v1616 = vadd.f32 0.0, %v1615
        %1617 = vmatmul.f32.gmra.mxu0 %v1506
        %v1618 = vpop.f32.mrf.mxu0
        %v1619 = vadd.f32 0.0, %v1618
        %1620 = vmatmul.f32.gmra.mxu0 %v1509
        %v1621 = vpop.f32.mrf.mxu0
        %v1622 = vadd.f32 0.0, %v1621
        %1623 = vmatmul.f32.gmra.mxu0 %v1512
        %v1624 = vpop.f32.mrf.mxu0
        %v1625 = vadd.f32 0.0, %v1624
        %1626 = vmatmul.f32.gmra.mxu0 %v1515
        %v1627 = vpop.f32.mrf.mxu0
        %v1628 = vadd.f32 0.0, %v1627
        %1629 = vmatmul.f32.gmra.mxu0 %v1518
        %v1630 = vpop.f32.mrf.mxu0
        %v1631 = vadd.f32 0.0, %v1630
        %1632 = vmatmul.f32.gmra.mxu0 %v1521
        %v1633 = vpop.f32.mrf.mxu0
        %v1634 = vadd.f32 0.0, %v1633
        %1635 = vmatmul.f32.gmra.mxu0 %v1524
        %v1636 = vpop.f32.mrf.mxu0
        %v1637 = vadd.f32 0.0, %v1636
        %1638 = vmatmul.f32.gmra.mxu0 %v1527
        %v1639 = vpop.f32.mrf.mxu0
        %v1640 = vadd.f32 0.0, %v1639
        %1641 = vmatmul.f32.gmra.mxu0 %v1530
        %v1642 = vpop.f32.mrf.mxu0
        %v1643 = vadd.f32 0.0, %v1642
        %1644 = vmatmul.f32.gmra.mxu0 %v1533
        %v1645 = vpop.f32.mrf.mxu0
        %v1646 = vadd.f32 0.0, %v1645
        %1647 = vmatmul.f32.gmra.mxu0 %v1536
        %v1648 = vpop.f32.mrf.mxu0
        %v1649 = vadd.f32 0.0, %v1648
        %1650 = vmatmul.f32.gmra.mxu0 %v1539
        %v1651 = vpop.f32.mrf.mxu0
        %v1652 = vadd.f32 0.0, %v1651
        %1653 = vmatmul.f32.gmra.mxu0 %v1542
        %v1654 = vpop.f32.mrf.mxu0
        %v1655 = vadd.f32 0.0, %v1654
        %1656 = vmatmul.f32.gmra.mxu0 %v1545
        %v1657 = vpop.f32.mrf.mxu0
        %v1658 = vadd.f32 0.0, %v1657
        %1659 = vmatmul.f32.gmra.mxu0 %v1548
        %v1660 = vpop.f32.mrf.mxu0
        %v1661 = vadd.f32 0.0, %v1660
        %1662 = vmatmul.f32.gmra.mxu0 %v1551
        %v1663 = vpop.f32.mrf.mxu0
        %v1664 = vadd.f32 0.0, %v1663
        %1665 = vmatmul.f32.gmra.mxu0 %v1554
        %v1666 = vpop.f32.mrf.mxu0
        %v1667 = vadd.f32 0.0, %v1666
        %1668 = vmatmul.f32.gmra.mxu0 %v1557
        %v1669 = vpop.f32.mrf.mxu0
        %v1670 = vadd.f32 0.0, %v1669
        %1671 = vmatmul.f32.gmra.mxu0 %v1560
        %v1672 = vpop.f32.mrf.mxu0
        %v1673 = vadd.f32 0.0, %v1672
        %1674 = vmatmul.f32.gmra.mxu0 %v1563
        %v1675 = vpop.f32.mrf.mxu0
        %v1676 = vadd.f32 0.0, %v1675
        %1677 = vmatmul.f32.gmra.mxu0 %v1566
        %v1678 = vpop.f32.mrf.mxu0
        %v1679 = vadd.f32 0.0, %v1678
        %1680 = vmatmul.f32.gmra.mxu0 %v1569
        %v1681 = vpop.f32.mrf.mxu0
        %v1682 = vadd.f32 0.0, %v1681
        %1683 = vmatmul.f32.gmra.mxu0 %v1572
        %v1684 = vpop.f32.mrf.mxu0
        %v1685 = vadd.f32 0.0, %v1684
        %1686 = vmatmul.f32.gmra.mxu0 %v1575
        %v1687 = vpop.f32.mrf.mxu0
        %v1688 = vadd.f32 0.0, %v1687
        %1689 = vmatmul.f32.gmra.mxu0 %v1578
        %v1690 = vpop.f32.mrf.mxu0
        %v1691 = vadd.f32 0.0, %v1690
        %1692 = vmatmul.f32.gmra.mxu0 %v1581
        %v1693 = vpop.f32.mrf.mxu0
        %v1694 = vadd.f32 0.0, %v1693
        %1695 = vmatmul.f32.gmra.mxu0 %v1584
        %v1696 = vpop.f32.mrf.mxu0
        %v1697 = vadd.f32 0.0, %v1696
        %1698 = vmatmul.f32.gmra.mxu0 %v1587
        %v1699 = vpop.f32.mrf.mxu0
        %v1700 = vadd.f32 0.0, %v1699
        %1701 = vmatmul.f32.gmra.mxu0 %v1590
        %v1702 = vpop.f32.mrf.mxu0
        %v1703 = vadd.f32 0.0, %v1702
        %1704 = vdwg.mxu0
        %v1705 = vadd.f32 %v1429, %v1610
        %v1706 = vadd.f32 %v1430, %v1613
        %v1707 = vadd.f32 %v1431, %v1616
        %v1708 = vadd.f32 %v1432, %v1619
        %v1709 = vadd.f32 %v1433, %v1622
        %v1710 = vadd.f32 %v1434, %v1625
        %v1711 = vadd.f32 %v1435, %v1628
        %v1712 = vadd.f32 %v1436, %v1631
        %v1713 = vadd.f32 %v1437, %v1634
        %v1714 = vadd.f32 %v1438, %v1637
        %v1715 = vadd.f32 %v1439, %v1640
        %v1716 = vadd.f32 %v1440, %v1643
        %v1717 = vadd.f32 %v1441, %v1646
        %v1718 = vadd.f32 %v1442, %v1649
        %v1719 = vadd.f32 %v1443, %v1652
        %v1720 = vadd.f32 %v1444, %v1655
        %v1721 = vadd.f32 %v1445, %v1658
        %v1722 = vadd.f32 %v1446, %v1661
        %v1723 = vadd.f32 %v1447, %v1664
        %v1724 = vadd.f32 %v1448, %v1667
        %v1725 = vadd.f32 %v1449, %v1670
        %v1726 = vadd.f32 %v1450, %v1673
        %v1727 = vadd.f32 %v1451, %v1676
        %v1728 = vadd.f32 %v1452, %v1679
        %v1729 = vadd.f32 %v1453, %v1682
        %v1730 = vadd.f32 %v1454, %v1685
        %v1731 = vadd.f32 %v1455, %v1688
        %v1732 = vadd.f32 %v1456, %v1691
        %v1733 = vadd.f32 %v1457, %v1694
        %v1734 = vadd.f32 %v1458, %v1697
        %v1735 = vadd.f32 %v1459, %v1700
        %v1736 = vadd.f32 %v1460, %v1703
        %v1737 = vld [vmem:[%s389 + $0x2] sm:$0xff]
        %v1738 = vld [vmem:[%s389 + $0xa] sm:$0xff]
        %v1739 = vld [vmem:[%s389 + $0x1a] sm:$0xff]
        %v1740 = vld [vmem:[%s389 + $0x22] sm:$0xff]
        %v1741 = vld [vmem:[%s389 + $0x32] sm:$0xff]
        %v1742 = vld [vmem:[%s389 + $0x3a] sm:$0xff]
        %v1743 = vld [vmem:[%s389 + $0x4a] sm:$0xff]
        %v1744 = vld [vmem:[%s389 + $0x52] sm:$0xff]
        %v1745 = vld [vmem:[%s389 + $0x62] sm:$0xff]
        %v1746 = vld [vmem:[%s389 + $0x6a] sm:$0xff]
        %v1747 = vld [vmem:[%s389 + $0x7a] sm:$0xff]
        %v1748 = vld [vmem:[%s389 + $0x82] sm:$0xff]
        %v1749 = vld [vmem:[%s389 + $0x92] sm:$0xff]
        %v1750 = vld [vmem:[%s389 + $0x9a] sm:$0xff]
        %v1751 = vld [vmem:[%s389 + $0xaa] sm:$0xff]
        %v1752 = vld [vmem:[%s389 + $0xb2] sm:$0xff]
        %v1753 = vld [vmem:[%s389 + $0xc2] sm:$0xff]
        %v1754 = vld [vmem:[%s389 + $0xca] sm:$0xff]
        %v1755 = vld [vmem:[%s389 + $0xda] sm:$0xff]
        %v1756 = vld [vmem:[%s389 + $0xe2] sm:$0xff]
        %v1757 = vld [vmem:[%s389 + $0xf2] sm:$0xff]
        %v1758 = vld [vmem:[%s389 + $0xfa] sm:$0xff]
        %v1759 = vld [vmem:[%s389 + $0x10a] sm:$0xff]
        %v1760 = vld [vmem:[%s389 + $0x112] sm:$0xff]
        %v1761 = vld [vmem:[%s389 + $0x122] sm:$0xff]
        %v1762 = vld [vmem:[%s389 + $0x12a] sm:$0xff]
        %v1763 = vld [vmem:[%s389 + $0x13a] sm:$0xff]
        %v1764 = vld [vmem:[%s389 + $0x142] sm:$0xff]
        %v1765 = vld [vmem:[%s389 + $0x152] sm:$0xff]
        %v1766 = vld [vmem:[%s389 + $0x15a] sm:$0xff]
        %v1767 = vld [vmem:[%s389 + $0x16a] sm:$0xff]
        %v1768 = vld [vmem:[%s389 + $0x172] sm:$0xff]
        %s1769 = scalar_lea.vmem %s1, 80
        %v1770 = vld [vmem:[%s1769] sm:$0xff]
        %v1771 = vld [vmem:[%s1769 + $0x8] sm:$0xff]
        %v1773 = vsel %vm247, %v1737, 0
        %v1776 = vsel %vm247, %v1738, 0
        %v1779 = vsel %vm247, %v1739, 0
        %v1782 = vsel %vm247, %v1740, 0
        %v1785 = vsel %vm247, %v1741, 0
        %v1788 = vsel %vm247, %v1742, 0
        %v1791 = vsel %vm247, %v1743, 0
        %v1794 = vsel %vm247, %v1744, 0
        %v1797 = vsel %vm247, %v1745, 0
        %v1800 = vsel %vm247, %v1746, 0
        %v1803 = vsel %vm247, %v1747, 0
        %v1806 = vsel %vm247, %v1748, 0
        %v1809 = vsel %vm247, %v1749, 0
        %v1812 = vsel %vm247, %v1750, 0
        %v1815 = vsel %vm247, %v1751, 0
        %v1818 = vsel %vm247, %v1752, 0
        %v1821 = vsel %vm247, %v1753, 0
        %v1824 = vsel %vm247, %v1754, 0
        %v1827 = vsel %vm247, %v1755, 0
        %v1830 = vsel %vm247, %v1756, 0
        %v1833 = vsel %vm247, %v1757, 0
        %v1836 = vsel %vm247, %v1758, 0
        %v1839 = vsel %vm247, %v1759, 0
        %v1842 = vsel %vm247, %v1760, 0
        %v1845 = vsel %vm247, %v1761, 0
        %v1848 = vsel %vm247, %v1762, 0
        %v1851 = vsel %vm247, %v1763, 0
        %v1854 = vsel %vm247, %v1764, 0
        %v1857 = vsel %vm247, %v1765, 0
        %v1860 = vsel %vm247, %v1766, 0
        %v1863 = vsel %vm247, %v1767, 0
        %v1866 = vsel %vm247, %v1768, 0
        %1868 = vmatpush.msra.mxu0 0.0
        %1869 = vmatpush.msra.mxu0 0.0
        %1870 = vmatpush.msra.mxu0 0.0
        %1871 = vmatpush.msra.mxu0 0.0
        %1872 = vmatpush.msra.mxu0 0.0
        %1873 = vmatpush.msra.mxu0 0.0
        %1874 = vmatpush.msra.mxu0 0.0
        %1875 = vmatpush.msra.mxu0 0.0
        %1876 = vmatpush.msra.mxu0 0.0
        %1877 = vmatpush.msra.mxu0 0.0
        %1878 = vmatpush.msra.mxu0 0.0
        %1879 = vmatpush.msra.mxu0 0.0
        %1880 = vmatpush.msra.mxu0 0.0
        %1881 = vmatpush.msra.mxu0 0.0
        %1882 = vmatpush.msra.mxu0 %v1771
        %1883 = vmatpush.msra.mxu0 %v1770
        %1884 = vmatmul.f32.gmra.mxu0 %v1773
        %v1885 = vpop.f32.mrf.mxu0
        %v1886 = vadd.f32 0.0, %v1885
        %1887 = vmatmul.f32.gmra.mxu0 %v1776
        %v1888 = vpop.f32.mrf.mxu0
        %v1889 = vadd.f32 0.0, %v1888
        %1890 = vmatmul.f32.gmra.mxu0 %v1779
        %v1891 = vpop.f32.mrf.mxu0
        %v1892 = vadd.f32 0.0, %v1891
        %1893 = vmatmul.f32.gmra.mxu0 %v1782
        %v1894 = vpop.f32.mrf.mxu0
        %v1895 = vadd.f32 0.0, %v1894
        %1896 = vmatmul.f32.gmra.mxu0 %v1785
        %v1897 = vpop.f32.mrf.mxu0
        %v1898 = vadd.f32 0.0, %v1897
        %1899 = vmatmul.f32.gmra.mxu0 %v1788
        %v1900 = vpop.f32.mrf.mxu0
        %v1901 = vadd.f32 0.0, %v1900
        %1902 = vmatmul.f32.gmra.mxu0 %v1791
        %v1903 = vpop.f32.mrf.mxu0
        %v1904 = vadd.f32 0.0, %v1903
        %1905 = vmatmul.f32.gmra.mxu0 %v1794
        %v1906 = vpop.f32.mrf.mxu0
        %v1907 = vadd.f32 0.0, %v1906
        %1908 = vmatmul.f32.gmra.mxu0 %v1797
        %v1909 = vpop.f32.mrf.mxu0
        %v1910 = vadd.f32 0.0, %v1909
        %1911 = vmatmul.f32.gmra.mxu0 %v1800
        %v1912 = vpop.f32.mrf.mxu0
        %v1913 = vadd.f32 0.0, %v1912
        %1914 = vmatmul.f32.gmra.mxu0 %v1803
        %v1915 = vpop.f32.mrf.mxu0
        %v1916 = vadd.f32 0.0, %v1915
        %1917 = vmatmul.f32.gmra.mxu0 %v1806
        %v1918 = vpop.f32.mrf.mxu0
        %v1919 = vadd.f32 0.0, %v1918
        %1920 = vmatmul.f32.gmra.mxu0 %v1809
        %v1921 = vpop.f32.mrf.mxu0
        %v1922 = vadd.f32 0.0, %v1921
        %1923 = vmatmul.f32.gmra.mxu0 %v1812
        %v1924 = vpop.f32.mrf.mxu0
        %v1925 = vadd.f32 0.0, %v1924
        %1926 = vmatmul.f32.gmra.mxu0 %v1815
        %v1927 = vpop.f32.mrf.mxu0
        %v1928 = vadd.f32 0.0, %v1927
        %1929 = vmatmul.f32.gmra.mxu0 %v1818
        %v1930 = vpop.f32.mrf.mxu0
        %v1931 = vadd.f32 0.0, %v1930
        %1932 = vmatmul.f32.gmra.mxu0 %v1821
        %v1933 = vpop.f32.mrf.mxu0
        %v1934 = vadd.f32 0.0, %v1933
        %1935 = vmatmul.f32.gmra.mxu0 %v1824
        %v1936 = vpop.f32.mrf.mxu0
        %v1937 = vadd.f32 0.0, %v1936
        %1938 = vmatmul.f32.gmra.mxu0 %v1827
        %v1939 = vpop.f32.mrf.mxu0
        %v1940 = vadd.f32 0.0, %v1939
        %1941 = vmatmul.f32.gmra.mxu0 %v1830
        %v1942 = vpop.f32.mrf.mxu0
        %v1943 = vadd.f32 0.0, %v1942
        %1944 = vmatmul.f32.gmra.mxu0 %v1833
        %v1945 = vpop.f32.mrf.mxu0
        %v1946 = vadd.f32 0.0, %v1945
        %1947 = vmatmul.f32.gmra.mxu0 %v1836
        %v1948 = vpop.f32.mrf.mxu0
        %v1949 = vadd.f32 0.0, %v1948
        %1950 = vmatmul.f32.gmra.mxu0 %v1839
        %v1951 = vpop.f32.mrf.mxu0
        %v1952 = vadd.f32 0.0, %v1951
        %1953 = vmatmul.f32.gmra.mxu0 %v1842
        %v1954 = vpop.f32.mrf.mxu0
        %v1955 = vadd.f32 0.0, %v1954
        %1956 = vmatmul.f32.gmra.mxu0 %v1845
        %v1957 = vpop.f32.mrf.mxu0
        %v1958 = vadd.f32 0.0, %v1957
        %1959 = vmatmul.f32.gmra.mxu0 %v1848
        %v1960 = vpop.f32.mrf.mxu0
        %v1961 = vadd.f32 0.0, %v1960
        %1962 = vmatmul.f32.gmra.mxu0 %v1851
        %v1963 = vpop.f32.mrf.mxu0
        %v1964 = vadd.f32 0.0, %v1963
        %1965 = vmatmul.f32.gmra.mxu0 %v1854
        %v1966 = vpop.f32.mrf.mxu0
        %v1967 = vadd.f32 0.0, %v1966
        %1968 = vmatmul.f32.gmra.mxu0 %v1857
        %v1969 = vpop.f32.mrf.mxu0
        %v1970 = vadd.f32 0.0, %v1969
        %1971 = vmatmul.f32.gmra.mxu0 %v1860
        %v1972 = vpop.f32.mrf.mxu0
        %v1973 = vadd.f32 0.0, %v1972
        %1974 = vmatmul.f32.gmra.mxu0 %v1863
        %v1975 = vpop.f32.mrf.mxu0
        %v1976 = vadd.f32 0.0, %v1975
        %1977 = vmatmul.f32.gmra.mxu0 %v1866
        %v1978 = vpop.f32.mrf.mxu0
        %v1979 = vadd.f32 0.0, %v1978
        %1980 = vdwg.mxu0
        %v1981 = vadd.f32 %v1705, %v1886
        %v1982 = vadd.f32 %v1706, %v1889
        %v1983 = vadd.f32 %v1707, %v1892
        %v1984 = vadd.f32 %v1708, %v1895
        %v1985 = vadd.f32 %v1709, %v1898
        %v1986 = vadd.f32 %v1710, %v1901
        %v1987 = vadd.f32 %v1711, %v1904
        %v1988 = vadd.f32 %v1712, %v1907
        %v1989 = vadd.f32 %v1713, %v1910
        %v1990 = vadd.f32 %v1714, %v1913
        %v1991 = vadd.f32 %v1715, %v1916
        %v1992 = vadd.f32 %v1716, %v1919
        %v1993 = vadd.f32 %v1717, %v1922
        %v1994 = vadd.f32 %v1718, %v1925
        %v1995 = vadd.f32 %v1719, %v1928
        %v1996 = vadd.f32 %v1720, %v1931
        %v1997 = vadd.f32 %v1721, %v1934
        %v1998 = vadd.f32 %v1722, %v1937
        %v1999 = vadd.f32 %v1723, %v1940
        %v2000 = vadd.f32 %v1724, %v1943
        %v2001 = vadd.f32 %v1725, %v1946
        %v2002 = vadd.f32 %v1726, %v1949
        %v2003 = vadd.f32 %v1727, %v1952
        %v2004 = vadd.f32 %v1728, %v1955
        %v2005 = vadd.f32 %v1729, %v1958
        %v2006 = vadd.f32 %v1730, %v1961
        %v2007 = vadd.f32 %v1731, %v1964
        %v2008 = vadd.f32 %v1732, %v1967
        %v2009 = vadd.f32 %v1733, %v1970
        %v2010 = vadd.f32 %v1734, %v1973
        %v2011 = vadd.f32 %v1735, %v1976
        %v2012 = vadd.f32 %v1736, %v1979
        %s2013 = scalar_lea.vmem [#allocation2], 48
        %v2014 = vld [vmem:[%s2013] sm:$0xff]
        %v2015 = vld [vmem:[%s2013 + $0x8] sm:$0xff]
        %v2016 = vld [vmem:[%s2013 + $0x18] sm:$0xff]
        %v2017 = vld [vmem:[%s2013 + $0x20] sm:$0xff]
        %v2018 = vld [vmem:[%s2013 + $0x30] sm:$0xff]
        %v2019 = vld [vmem:[%s2013 + $0x38] sm:$0xff]
        %v2020 = vld [vmem:[%s2013 + $0x48] sm:$0xff]
        %v2021 = vld [vmem:[%s2013 + $0x50] sm:$0xff]
        %v2022 = vld [vmem:[%s2013 + $0x60] sm:$0xff]
        %v2023 = vld [vmem:[%s2013 + $0x68] sm:$0xff]
        %v2024 = vld [vmem:[%s2013 + $0x78] sm:$0xff]
        %v2025 = vld [vmem:[%s2013 + $0x80] sm:$0xff]
        %v2026 = vld [vmem:[%s2013 + $0x90] sm:$0xff]
        %v2027 = vld [vmem:[%s2013 + $0x98] sm:$0xff]
        %v2028 = vld [vmem:[%s2013 + $0xa8] sm:$0xff]
        %v2029 = vld [vmem:[%s2013 + $0xb0] sm:$0xff]
        %v2030 = vld [vmem:[%s2013 + $0xc0] sm:$0xff]
        %v2031 = vld [vmem:[%s2013 + $0xc8] sm:$0xff]
        %v2032 = vld [vmem:[%s2013 + $0xd8] sm:$0xff]
        %v2033 = vld [vmem:[%s2013 + $0xe0] sm:$0xff]
        %v2034 = vld [vmem:[%s2013 + $0xf0] sm:$0xff]
        %v2035 = vld [vmem:[%s2013 + $0xf8] sm:$0xff]
        %v2036 = vld [vmem:[%s2013 + $0x108] sm:$0xff]
        %v2037 = vld [vmem:[%s2013 + $0x110] sm:$0xff]
        %v2038 = vld [vmem:[%s2013 + $0x120] sm:$0xff]
        %v2039 = vld [vmem:[%s2013 + $0x128] sm:$0xff]
        %v2040 = vld [vmem:[%s2013 + $0x138] sm:$0xff]
        %v2041 = vld [vmem:[%s2013 + $0x140] sm:$0xff]
        %v2042 = vld [vmem:[%s2013 + $0x150] sm:$0xff]
        %v2043 = vld [vmem:[%s2013 + $0x158] sm:$0xff]
        %v2044 = vld [vmem:[%s2013 + $0x168] sm:$0xff]
        %v2045 = vld [vmem:[%s2013 + $0x170] sm:$0xff]
        %s2046 = scalar_lea.vmem %s1, 96
        %v2047 = vld [vmem:[%s2046] sm:$0xff]
        %v2048 = vld [vmem:[%s2046 + $0x8] sm:$0xff]
        %v2050 = vsel %vm247, %v2014, 0
        %v2053 = vsel %vm247, %v2015, 0
        %v2056 = vsel %vm247, %v2016, 0
        %v2059 = vsel %vm247, %v2017, 0
        %v2062 = vsel %vm247, %v2018, 0
        %v2065 = vsel %vm247, %v2019, 0
        %v2068 = vsel %vm247, %v2020, 0
        %v2071 = vsel %vm247, %v2021, 0
        %v2074 = vsel %vm247, %v2022, 0
        %v2077 = vsel %vm247, %v2023, 0
        %v2080 = vsel %vm247, %v2024, 0
        %v2083 = vsel %vm247, %v2025, 0
        %v2086 = vsel %vm247, %v2026, 0
        %v2089 = vsel %vm247, %v2027, 0
        %v2092 = vsel %vm247, %v2028, 0
        %v2095 = vsel %vm247, %v2029, 0
        %v2098 = vsel %vm247, %v2030, 0
        %v2101 = vsel %vm247, %v2031, 0
        %v2104 = vsel %vm247, %v2032, 0
        %v2107 = vsel %vm247, %v2033, 0
        %v2110 = vsel %vm247, %v2034, 0
        %v2113 = vsel %vm247, %v2035, 0
        %v2116 = vsel %vm247, %v2036, 0
        %v2119 = vsel %vm247, %v2037, 0
        %v2122 = vsel %vm247, %v2038, 0
        %v2125 = vsel %vm247, %v2039, 0
        %v2128 = vsel %vm247, %v2040, 0
        %v2131 = vsel %vm247, %v2041, 0
        %v2134 = vsel %vm247, %v2042, 0
        %v2137 = vsel %vm247, %v2043, 0
        %v2140 = vsel %vm247, %v2044, 0
        %v2143 = vsel %vm247, %v2045, 0
        %2145 = vmatpush.msra.mxu0 0.0
        %2146 = vmatpush.msra.mxu0 0.0
        %2147 = vmatpush.msra.mxu0 0.0
        %2148 = vmatpush.msra.mxu0 0.0
        %2149 = vmatpush.msra.mxu0 0.0
        %2150 = vmatpush.msra.mxu0 0.0
        %2151 = vmatpush.msra.mxu0 0.0
        %2152 = vmatpush.msra.mxu0 0.0
        %2153 = vmatpush.msra.mxu0 0.0
        %2154 = vmatpush.msra.mxu0 0.0
        %2155 = vmatpush.msra.mxu0 0.0
        %2156 = vmatpush.msra.mxu0 0.0
        %2157 = vmatpush.msra.mxu0 0.0
        %2158 = vmatpush.msra.mxu0 0.0
        %2159 = vmatpush.msra.mxu0 %v2048
        %2160 = vmatpush.msra.mxu0 %v2047
        %2161 = vmatmul.f32.gmra.mxu0 %v2050
        %v2162 = vpop.f32.mrf.mxu0
        %v2163 = vadd.f32 0.0, %v2162
        %2164 = vmatmul.f32.gmra.mxu0 %v2053
        %v2165 = vpop.f32.mrf.mxu0
        %v2166 = vadd.f32 0.0, %v2165
        %2167 = vmatmul.f32.gmra.mxu0 %v2056
        %v2168 = vpop.f32.mrf.mxu0
        %v2169 = vadd.f32 0.0, %v2168
        %2170 = vmatmul.f32.gmra.mxu0 %v2059
        %v2171 = vpop.f32.mrf.mxu0
        %v2172 = vadd.f32 0.0, %v2171
        %2173 = vmatmul.f32.gmra.mxu0 %v2062
        %v2174 = vpop.f32.mrf.mxu0
        %v2175 = vadd.f32 0.0, %v2174
        %2176 = vmatmul.f32.gmra.mxu0 %v2065
        %v2177 = vpop.f32.mrf.mxu0
        %v2178 = vadd.f32 0.0, %v2177
        %2179 = vmatmul.f32.gmra.mxu0 %v2068
        %v2180 = vpop.f32.mrf.mxu0
        %v2181 = vadd.f32 0.0, %v2180
        %2182 = vmatmul.f32.gmra.mxu0 %v2071
        %v2183 = vpop.f32.mrf.mxu0
        %v2184 = vadd.f32 0.0, %v2183
        %2185 = vmatmul.f32.gmra.mxu0 %v2074
        %v2186 = vpop.f32.mrf.mxu0
        %v2187 = vadd.f32 0.0, %v2186
        %2188 = vmatmul.f32.gmra.mxu0 %v2077
        %v2189 = vpop.f32.mrf.mxu0
        %v2190 = vadd.f32 0.0, %v2189
        %2191 = vmatmul.f32.gmra.mxu0 %v2080
        %v2192 = vpop.f32.mrf.mxu0
        %v2193 = vadd.f32 0.0, %v2192
        %2194 = vmatmul.f32.gmra.mxu0 %v2083
        %v2195 = vpop.f32.mrf.mxu0
        %v2196 = vadd.f32 0.0, %v2195
        %2197 = vmatmul.f32.gmra.mxu0 %v2086
        %v2198 = vpop.f32.mrf.mxu0
        %v2199 = vadd.f32 0.0, %v2198
        %2200 = vmatmul.f32.gmra.mxu0 %v2089
        %v2201 = vpop.f32.mrf.mxu0
        %v2202 = vadd.f32 0.0, %v2201
        %2203 = vmatmul.f32.gmra.mxu0 %v2092
        %v2204 = vpop.f32.mrf.mxu0
        %v2205 = vadd.f32 0.0, %v2204
        %2206 = vmatmul.f32.gmra.mxu0 %v2095
        %v2207 = vpop.f32.mrf.mxu0
        %v2208 = vadd.f32 0.0, %v2207
        %2209 = vmatmul.f32.gmra.mxu0 %v2098
        %v2210 = vpop.f32.mrf.mxu0
        %v2211 = vadd.f32 0.0, %v2210
        %2212 = vmatmul.f32.gmra.mxu0 %v2101
        %v2213 = vpop.f32.mrf.mxu0
        %v2214 = vadd.f32 0.0, %v2213
        %2215 = vmatmul.f32.gmra.mxu0 %v2104
        %v2216 = vpop.f32.mrf.mxu0
        %v2217 = vadd.f32 0.0, %v2216
        %2218 = vmatmul.f32.gmra.mxu0 %v2107
        %v2219 = vpop.f32.mrf.mxu0
        %v2220 = vadd.f32 0.0, %v2219
        %2221 = vmatmul.f32.gmra.mxu0 %v2110
        %v2222 = vpop.f32.mrf.mxu0
        %v2223 = vadd.f32 0.0, %v2222
        %2224 = vmatmul.f32.gmra.mxu0 %v2113
        %v2225 = vpop.f32.mrf.mxu0
        %v2226 = vadd.f32 0.0, %v2225
        %2227 = vmatmul.f32.gmra.mxu0 %v2116
        %v2228 = vpop.f32.mrf.mxu0
        %v2229 = vadd.f32 0.0, %v2228
        %2230 = vmatmul.f32.gmra.mxu0 %v2119
        %v2231 = vpop.f32.mrf.mxu0
        %v2232 = vadd.f32 0.0, %v2231
        %2233 = vmatmul.f32.gmra.mxu0 %v2122
        %v2234 = vpop.f32.mrf.mxu0
        %v2235 = vadd.f32 0.0, %v2234
        %2236 = vmatmul.f32.gmra.mxu0 %v2125
        %v2237 = vpop.f32.mrf.mxu0
        %v2238 = vadd.f32 0.0, %v2237
        %2239 = vmatmul.f32.gmra.mxu0 %v2128
        %v2240 = vpop.f32.mrf.mxu0
        %v2241 = vadd.f32 0.0, %v2240
        %2242 = vmatmul.f32.gmra.mxu0 %v2131
        %v2243 = vpop.f32.mrf.mxu0
        %v2244 = vadd.f32 0.0, %v2243
        %2245 = vmatmul.f32.gmra.mxu0 %v2134
        %v2246 = vpop.f32.mrf.mxu0
        %v2247 = vadd.f32 0.0, %v2246
        %2248 = vmatmul.f32.gmra.mxu0 %v2137
        %v2249 = vpop.f32.mrf.mxu0
        %v2250 = vadd.f32 0.0, %v2249
        %2251 = vmatmul.f32.gmra.mxu0 %v2140
        %v2252 = vpop.f32.mrf.mxu0
        %v2253 = vadd.f32 0.0, %v2252
        %2254 = vmatmul.f32.gmra.mxu0 %v2143
        %v2255 = vpop.f32.mrf.mxu0
        %v2256 = vadd.f32 0.0, %v2255
        %2257 = vdwg.mxu0
        %v2258 = vadd.f32 %v1981, %v2163
        %v2259 = vadd.f32 %v1982, %v2166
        %v2260 = vadd.f32 %v1983, %v2169
        %v2261 = vadd.f32 %v1984, %v2172
        %v2262 = vadd.f32 %v1985, %v2175
        %v2263 = vadd.f32 %v1986, %v2178
        %v2264 = vadd.f32 %v1987, %v2181
        %v2265 = vadd.f32 %v1988, %v2184
        %v2266 = vadd.f32 %v1989, %v2187
        %v2267 = vadd.f32 %v1990, %v2190
        %v2268 = vadd.f32 %v1991, %v2193
        %v2269 = vadd.f32 %v1992, %v2196
        %v2270 = vadd.f32 %v1993, %v2199
        %v2271 = vadd.f32 %v1994, %v2202
        %v2272 = vadd.f32 %v1995, %v2205
        %v2273 = vadd.f32 %v1996, %v2208
        %v2274 = vadd.f32 %v1997, %v2211
        %v2275 = vadd.f32 %v1998, %v2214
        %v2276 = vadd.f32 %v1999, %v2217
        %v2277 = vadd.f32 %v2000, %v2220
        %v2278 = vadd.f32 %v2001, %v2223
        %v2279 = vadd.f32 %v2002, %v2226
        %v2280 = vadd.f32 %v2003, %v2229
        %v2281 = vadd.f32 %v2004, %v2232
        %v2282 = vadd.f32 %v2005, %v2235
        %v2283 = vadd.f32 %v2006, %v2238
        %v2284 = vadd.f32 %v2007, %v2241
        %v2285 = vadd.f32 %v2008, %v2244
        %v2286 = vadd.f32 %v2009, %v2247
        %v2287 = vadd.f32 %v2010, %v2250
        %v2288 = vadd.f32 %v2011, %v2253
        %v2289 = vadd.f32 %v2012, %v2256
        %v2290 = vld [vmem:[%s2013 + $0x1] sm:$0xff]
        %v2291 = vld [vmem:[%s2013 + $0x9] sm:$0xff]
        %v2292 = vld [vmem:[%s2013 + $0x19] sm:$0xff]
        %v2293 = vld [vmem:[%s2013 + $0x21] sm:$0xff]
        %v2294 = vld [vmem:[%s2013 + $0x31] sm:$0xff]
        %v2295 = vld [vmem:[%s2013 + $0x39] sm:$0xff]
        %v2296 = vld [vmem:[%s2013 + $0x49] sm:$0xff]
        %v2297 = vld [vmem:[%s2013 + $0x51] sm:$0xff]
        %v2298 = vld [vmem:[%s2013 + $0x61] sm:$0xff]
        %v2299 = vld [vmem:[%s2013 + $0x69] sm:$0xff]
        %v2300 = vld [vmem:[%s2013 + $0x79] sm:$0xff]
        %v2301 = vld [vmem:[%s2013 + $0x81] sm:$0xff]
        %v2302 = vld [vmem:[%s2013 + $0x91] sm:$0xff]
        %v2303 = vld [vmem:[%s2013 + $0x99] sm:$0xff]
        %v2304 = vld [vmem:[%s2013 + $0xa9] sm:$0xff]
        %v2305 = vld [vmem:[%s2013 + $0xb1] sm:$0xff]
        %v2306 = vld [vmem:[%s2013 + $0xc1] sm:$0xff]
        %v2307 = vld [vmem:[%s2013 + $0xc9] sm:$0xff]
        %v2308 = vld [vmem:[%s2013 + $0xd9] sm:$0xff]
        %v2309 = vld [vmem:[%s2013 + $0xe1] sm:$0xff]
        %v2310 = vld [vmem:[%s2013 + $0xf1] sm:$0xff]
        %v2311 = vld [vmem:[%s2013 + $0xf9] sm:$0xff]
        %v2312 = vld [vmem:[%s2013 + $0x109] sm:$0xff]
        %v2313 = vld [vmem:[%s2013 + $0x111] sm:$0xff]
        %v2314 = vld [vmem:[%s2013 + $0x121] sm:$0xff]
        %v2315 = vld [vmem:[%s2013 + $0x129] sm:$0xff]
        %v2316 = vld [vmem:[%s2013 + $0x139] sm:$0xff]
        %v2317 = vld [vmem:[%s2013 + $0x141] sm:$0xff]
        %v2318 = vld [vmem:[%s2013 + $0x151] sm:$0xff]
        %v2319 = vld [vmem:[%s2013 + $0x159] sm:$0xff]
        %v2320 = vld [vmem:[%s2013 + $0x169] sm:$0xff]
        %v2321 = vld [vmem:[%s2013 + $0x171] sm:$0xff]
        %s2322 = scalar_lea.vmem %s1, 112
        %v2323 = vld [vmem:[%s2322] sm:$0xff]
        %v2324 = vld [vmem:[%s2322 + $0x8] sm:$0xff]
        %v2326 = vsel %vm247, %v2290, 0
        %v2329 = vsel %vm247, %v2291, 0
        %v2332 = vsel %vm247, %v2292, 0
        %v2335 = vsel %vm247, %v2293, 0
        %v2338 = vsel %vm247, %v2294, 0
        %v2341 = vsel %vm247, %v2295, 0
        %v2344 = vsel %vm247, %v2296, 0
        %v2347 = vsel %vm247, %v2297, 0
        %v2350 = vsel %vm247, %v2298, 0
        %v2353 = vsel %vm247, %v2299, 0
        %v2356 = vsel %vm247, %v2300, 0
        %v2359 = vsel %vm247, %v2301, 0
        %v2362 = vsel %vm247, %v2302, 0
        %v2365 = vsel %vm247, %v2303, 0
        %v2368 = vsel %vm247, %v2304, 0
        %v2371 = vsel %vm247, %v2305, 0
        %v2374 = vsel %vm247, %v2306, 0
        %v2377 = vsel %vm247, %v2307, 0
        %v2380 = vsel %vm247, %v2308, 0
        %v2383 = vsel %vm247, %v2309, 0
        %v2386 = vsel %vm247, %v2310, 0
        %v2389 = vsel %vm247, %v2311, 0
        %v2392 = vsel %vm247, %v2312, 0
        %v2395 = vsel %vm247, %v2313, 0
        %v2398 = vsel %vm247, %v2314, 0
        %v2401 = vsel %vm247, %v2315, 0
        %v2404 = vsel %vm247, %v2316, 0
        %v2407 = vsel %vm247, %v2317, 0
        %v2410 = vsel %vm247, %v2318, 0
        %v2413 = vsel %vm247, %v2319, 0
        %v2416 = vsel %vm247, %v2320, 0
        %v2419 = vsel %vm247, %v2321, 0
        %2421 = vmatpush.msra.mxu0 0.0
        %2422 = vmatpush.msra.mxu0 0.0
        %2423 = vmatpush.msra.mxu0 0.0
        %2424 = vmatpush.msra.mxu0 0.0
        %2425 = vmatpush.msra.mxu0 0.0
        %2426 = vmatpush.msra.mxu0 0.0
        %2427 = vmatpush.msra.mxu0 0.0
        %2428 = vmatpush.msra.mxu0 0.0
        %2429 = vmatpush.msra.mxu0 0.0
        %2430 = vmatpush.msra.mxu0 0.0
        %2431 = vmatpush.msra.mxu0 0.0
        %2432 = vmatpush.msra.mxu0 0.0
        %2433 = vmatpush.msra.mxu0 0.0
        %2434 = vmatpush.msra.mxu0 0.0
        %2435 = vmatpush.msra.mxu0 %v2324
        %2436 = vmatpush.msra.mxu0 %v2323
        %2437 = vmatmul.f32.gmra.mxu0 %v2326
        %v2438 = vpop.f32.mrf.mxu0
        %v2439 = vadd.f32 0.0, %v2438
        %2440 = vmatmul.f32.gmra.mxu0 %v2329
        %v2441 = vpop.f32.mrf.mxu0
        %v2442 = vadd.f32 0.0, %v2441
        %2443 = vmatmul.f32.gmra.mxu0 %v2332
        %v2444 = vpop.f32.mrf.mxu0
        %v2445 = vadd.f32 0.0, %v2444
        %2446 = vmatmul.f32.gmra.mxu0 %v2335
        %v2447 = vpop.f32.mrf.mxu0
        %v2448 = vadd.f32 0.0, %v2447
        %2449 = vmatmul.f32.gmra.mxu0 %v2338
        %v2450 = vpop.f32.mrf.mxu0
        %v2451 = vadd.f32 0.0, %v2450
        %2452 = vmatmul.f32.gmra.mxu0 %v2341
        %v2453 = vpop.f32.mrf.mxu0
        %v2454 = vadd.f32 0.0, %v2453
        %2455 = vmatmul.f32.gmra.mxu0 %v2344
        %v2456 = vpop.f32.mrf.mxu0
        %v2457 = vadd.f32 0.0, %v2456
        %2458 = vmatmul.f32.gmra.mxu0 %v2347
        %v2459 = vpop.f32.mrf.mxu0
        %v2460 = vadd.f32 0.0, %v2459
        %2461 = vmatmul.f32.gmra.mxu0 %v2350
        %v2462 = vpop.f32.mrf.mxu0
        %v2463 = vadd.f32 0.0, %v2462
        %2464 = vmatmul.f32.gmra.mxu0 %v2353
        %v2465 = vpop.f32.mrf.mxu0
        %v2466 = vadd.f32 0.0, %v2465
        %2467 = vmatmul.f32.gmra.mxu0 %v2356
        %v2468 = vpop.f32.mrf.mxu0
        %v2469 = vadd.f32 0.0, %v2468
        %2470 = vmatmul.f32.gmra.mxu0 %v2359
        %v2471 = vpop.f32.mrf.mxu0
        %v2472 = vadd.f32 0.0, %v2471
        %2473 = vmatmul.f32.gmra.mxu0 %v2362
        %v2474 = vpop.f32.mrf.mxu0
        %v2475 = vadd.f32 0.0, %v2474
        %2476 = vmatmul.f32.gmra.mxu0 %v2365
        %v2477 = vpop.f32.mrf.mxu0
        %v2478 = vadd.f32 0.0, %v2477
        %2479 = vmatmul.f32.gmra.mxu0 %v2368
        %v2480 = vpop.f32.mrf.mxu0
        %v2481 = vadd.f32 0.0, %v2480
        %2482 = vmatmul.f32.gmra.mxu0 %v2371
        %v2483 = vpop.f32.mrf.mxu0
        %v2484 = vadd.f32 0.0, %v2483
        %2485 = vmatmul.f32.gmra.mxu0 %v2374
        %v2486 = vpop.f32.mrf.mxu0
        %v2487 = vadd.f32 0.0, %v2486
        %2488 = vmatmul.f32.gmra.mxu0 %v2377
        %v2489 = vpop.f32.mrf.mxu0
        %v2490 = vadd.f32 0.0, %v2489
        %2491 = vmatmul.f32.gmra.mxu0 %v2380
        %v2492 = vpop.f32.mrf.mxu0
        %v2493 = vadd.f32 0.0, %v2492
        %2494 = vmatmul.f32.gmra.mxu0 %v2383
        %v2495 = vpop.f32.mrf.mxu0
        %v2496 = vadd.f32 0.0, %v2495
        %2497 = vmatmul.f32.gmra.mxu0 %v2386
        %v2498 = vpop.f32.mrf.mxu0
        %v2499 = vadd.f32 0.0, %v2498
        %2500 = vmatmul.f32.gmra.mxu0 %v2389
        %v2501 = vpop.f32.mrf.mxu0
        %v2502 = vadd.f32 0.0, %v2501
        %2503 = vmatmul.f32.gmra.mxu0 %v2392
        %v2504 = vpop.f32.mrf.mxu0
        %v2505 = vadd.f32 0.0, %v2504
        %2506 = vmatmul.f32.gmra.mxu0 %v2395
        %v2507 = vpop.f32.mrf.mxu0
        %v2508 = vadd.f32 0.0, %v2507
        %2509 = vmatmul.f32.gmra.mxu0 %v2398
        %v2510 = vpop.f32.mrf.mxu0
        %v2511 = vadd.f32 0.0, %v2510
        %2512 = vmatmul.f32.gmra.mxu0 %v2401
        %v2513 = vpop.f32.mrf.mxu0
        %v2514 = vadd.f32 0.0, %v2513
        %2515 = vmatmul.f32.gmra.mxu0 %v2404
        %v2516 = vpop.f32.mrf.mxu0
        %v2517 = vadd.f32 0.0, %v2516
        %2518 = vmatmul.f32.gmra.mxu0 %v2407
        %v2519 = vpop.f32.mrf.mxu0
        %v2520 = vadd.f32 0.0, %v2519
        %2521 = vmatmul.f32.gmra.mxu0 %v2410
        %v2522 = vpop.f32.mrf.mxu0
        %v2523 = vadd.f32 0.0, %v2522
        %2524 = vmatmul.f32.gmra.mxu0 %v2413
        %v2525 = vpop.f32.mrf.mxu0
        %v2526 = vadd.f32 0.0, %v2525
        %2527 = vmatmul.f32.gmra.mxu0 %v2416
        %v2528 = vpop.f32.mrf.mxu0
        %v2529 = vadd.f32 0.0, %v2528
        %2530 = vmatmul.f32.gmra.mxu0 %v2419
        %v2531 = vpop.f32.mrf.mxu0
        %v2532 = vadd.f32 0.0, %v2531
        %2533 = vdwg.mxu0
        %v2534 = vadd.f32 %v2258, %v2439
        %v2535 = vadd.f32 %v2259, %v2442
        %v2536 = vadd.f32 %v2260, %v2445
        %v2537 = vadd.f32 %v2261, %v2448
        %v2538 = vadd.f32 %v2262, %v2451
        %v2539 = vadd.f32 %v2263, %v2454
        %v2540 = vadd.f32 %v2264, %v2457
        %v2541 = vadd.f32 %v2265, %v2460
        %v2542 = vadd.f32 %v2266, %v2463
        %v2543 = vadd.f32 %v2267, %v2466
        %v2544 = vadd.f32 %v2268, %v2469
        %v2545 = vadd.f32 %v2269, %v2472
        %v2546 = vadd.f32 %v2270, %v2475
        %v2547 = vadd.f32 %v2271, %v2478
        %v2548 = vadd.f32 %v2272, %v2481
        %v2549 = vadd.f32 %v2273, %v2484
        %v2550 = vadd.f32 %v2274, %v2487
        %v2551 = vadd.f32 %v2275, %v2490
        %v2552 = vadd.f32 %v2276, %v2493
        %v2553 = vadd.f32 %v2277, %v2496
        %v2554 = vadd.f32 %v2278, %v2499
        %v2555 = vadd.f32 %v2279, %v2502
        %v2556 = vadd.f32 %v2280, %v2505
        %v2557 = vadd.f32 %v2281, %v2508
        %v2558 = vadd.f32 %v2282, %v2511
        %v2559 = vadd.f32 %v2283, %v2514
        %v2560 = vadd.f32 %v2284, %v2517
        %v2561 = vadd.f32 %v2285, %v2520
        %v2562 = vadd.f32 %v2286, %v2523
        %v2563 = vadd.f32 %v2287, %v2526
        %v2564 = vadd.f32 %v2288, %v2529
        %v2565 = vadd.f32 %v2289, %v2532
        %v2566 = vld [vmem:[%s2013 + $0x2] sm:$0xff]
        %v2567 = vld [vmem:[%s2013 + $0xa] sm:$0xff]
        %v2568 = vld [vmem:[%s2013 + $0x1a] sm:$0xff]
        %v2569 = vld [vmem:[%s2013 + $0x22] sm:$0xff]
        %v2570 = vld [vmem:[%s2013 + $0x32] sm:$0xff]
        %v2571 = vld [vmem:[%s2013 + $0x3a] sm:$0xff]
        %v2572 = vld [vmem:[%s2013 + $0x4a] sm:$0xff]
        %v2573 = vld [vmem:[%s2013 + $0x52] sm:$0xff]
        %v2574 = vld [vmem:[%s2013 + $0x62] sm:$0xff]
        %v2575 = vld [vmem:[%s2013 + $0x6a] sm:$0xff]
        %v2576 = vld [vmem:[%s2013 + $0x7a] sm:$0xff]
        %v2577 = vld [vmem:[%s2013 + $0x82] sm:$0xff]
        %v2578 = vld [vmem:[%s2013 + $0x92] sm:$0xff]
        %v2579 = vld [vmem:[%s2013 + $0x9a] sm:$0xff]
        %v2580 = vld [vmem:[%s2013 + $0xaa] sm:$0xff]
        %v2581 = vld [vmem:[%s2013 + $0xb2] sm:$0xff]
        %v2582 = vld [vmem:[%s2013 + $0xc2] sm:$0xff]
        %v2583 = vld [vmem:[%s2013 + $0xca] sm:$0xff]
        %v2584 = vld [vmem:[%s2013 + $0xda] sm:$0xff]
        %v2585 = vld [vmem:[%s2013 + $0xe2] sm:$0xff]
        %v2586 = vld [vmem:[%s2013 + $0xf2] sm:$0xff]
        %v2587 = vld [vmem:[%s2013 + $0xfa] sm:$0xff]
        %v2588 = vld [vmem:[%s2013 + $0x10a] sm:$0xff]
        %v2589 = vld [vmem:[%s2013 + $0x112] sm:$0xff]
        %v2590 = vld [vmem:[%s2013 + $0x122] sm:$0xff]
        %v2591 = vld [vmem:[%s2013 + $0x12a] sm:$0xff]
        %v2592 = vld [vmem:[%s2013 + $0x13a] sm:$0xff]
        %v2593 = vld [vmem:[%s2013 + $0x142] sm:$0xff]
        %v2594 = vld [vmem:[%s2013 + $0x152] sm:$0xff]
        %v2595 = vld [vmem:[%s2013 + $0x15a] sm:$0xff]
        %v2596 = vld [vmem:[%s2013 + $0x16a] sm:$0xff]
        %v2597 = vld [vmem:[%s2013 + $0x172] sm:$0xff]
        %s2598 = scalar_lea.vmem %s1, 128
        %v2599 = vld [vmem:[%s2598] sm:$0xff]
        %v2600 = vld [vmem:[%s2598 + $0x8] sm:$0xff]
        %v2602 = vsel %vm247, %v2566, 0
        %v2605 = vsel %vm247, %v2567, 0
        %v2608 = vsel %vm247, %v2568, 0
        %v2611 = vsel %vm247, %v2569, 0
        %v2614 = vsel %vm247, %v2570, 0
        %v2617 = vsel %vm247, %v2571, 0
        %v2620 = vsel %vm247, %v2572, 0
        %v2623 = vsel %vm247, %v2573, 0
        %v2626 = vsel %vm247, %v2574, 0
        %v2629 = vsel %vm247, %v2575, 0
        %v2632 = vsel %vm247, %v2576, 0
        %v2635 = vsel %vm247, %v2577, 0
        %v2638 = vsel %vm247, %v2578, 0
        %v2641 = vsel %vm247, %v2579, 0
        %v2644 = vsel %vm247, %v2580, 0
        %v2647 = vsel %vm247, %v2581, 0
        %v2650 = vsel %vm247, %v2582, 0
        %v2653 = vsel %vm247, %v2583, 0
        %v2656 = vsel %vm247, %v2584, 0
        %v2659 = vsel %vm247, %v2585, 0
        %v2662 = vsel %vm247, %v2586, 0
        %v2665 = vsel %vm247, %v2587, 0
        %v2668 = vsel %vm247, %v2588, 0
        %v2671 = vsel %vm247, %v2589, 0
        %v2674 = vsel %vm247, %v2590, 0
        %v2677 = vsel %vm247, %v2591, 0
        %v2680 = vsel %vm247, %v2592, 0
        %v2683 = vsel %vm247, %v2593, 0
        %v2686 = vsel %vm247, %v2594, 0
        %v2689 = vsel %vm247, %v2595, 0
        %v2692 = vsel %vm247, %v2596, 0
        %v2695 = vsel %vm247, %v2597, 0
        %2697 = vmatpush.msra.mxu0 0.0
        %2698 = vmatpush.msra.mxu0 0.0
        %2699 = vmatpush.msra.mxu0 0.0
        %2700 = vmatpush.msra.mxu0 0.0
        %2701 = vmatpush.msra.mxu0 0.0
        %2702 = vmatpush.msra.mxu0 0.0
        %2703 = vmatpush.msra.mxu0 0.0
        %2704 = vmatpush.msra.mxu0 0.0
        %2705 = vmatpush.msra.mxu0 0.0
        %2706 = vmatpush.msra.mxu0 0.0
        %2707 = vmatpush.msra.mxu0 0.0
        %2708 = vmatpush.msra.mxu0 0.0
        %2709 = vmatpush.msra.mxu0 0.0
        %2710 = vmatpush.msra.mxu0 0.0
        %2711 = vmatpush.msra.mxu0 %v2600
        %2712 = vmatpush.msra.mxu0 %v2599
        %2713 = vmatmul.f32.gmra.mxu0 %v2602
        %v2714 = vpop.f32.mrf.mxu0
        %v2715 = vadd.f32 0.0, %v2714
        %2716 = vmatmul.f32.gmra.mxu0 %v2605
        %v2717 = vpop.f32.mrf.mxu0
        %v2718 = vadd.f32 0.0, %v2717
        %2719 = vmatmul.f32.gmra.mxu0 %v2608
        %v2720 = vpop.f32.mrf.mxu0
        %v2721 = vadd.f32 0.0, %v2720
        %2722 = vmatmul.f32.gmra.mxu0 %v2611
        %v2723 = vpop.f32.mrf.mxu0
        %v2724 = vadd.f32 0.0, %v2723
        %2725 = vmatmul.f32.gmra.mxu0 %v2614
        %v2726 = vpop.f32.mrf.mxu0
        %v2727 = vadd.f32 0.0, %v2726
        %2728 = vmatmul.f32.gmra.mxu0 %v2617
        %v2729 = vpop.f32.mrf.mxu0
        %v2730 = vadd.f32 0.0, %v2729
        %2731 = vmatmul.f32.gmra.mxu0 %v2620
        %v2732 = vpop.f32.mrf.mxu0
        %v2733 = vadd.f32 0.0, %v2732
        %2734 = vmatmul.f32.gmra.mxu0 %v2623
        %v2735 = vpop.f32.mrf.mxu0
        %v2736 = vadd.f32 0.0, %v2735
        %2737 = vmatmul.f32.gmra.mxu0 %v2626
        %v2738 = vpop.f32.mrf.mxu0
        %v2739 = vadd.f32 0.0, %v2738
        %2740 = vmatmul.f32.gmra.mxu0 %v2629
        %v2741 = vpop.f32.mrf.mxu0
        %v2742 = vadd.f32 0.0, %v2741
        %2743 = vmatmul.f32.gmra.mxu0 %v2632
        %v2744 = vpop.f32.mrf.mxu0
        %v2745 = vadd.f32 0.0, %v2744
        %2746 = vmatmul.f32.gmra.mxu0 %v2635
        %v2747 = vpop.f32.mrf.mxu0
        %v2748 = vadd.f32 0.0, %v2747
        %2749 = vmatmul.f32.gmra.mxu0 %v2638
        %v2750 = vpop.f32.mrf.mxu0
        %v2751 = vadd.f32 0.0, %v2750
        %2752 = vmatmul.f32.gmra.mxu0 %v2641
        %v2753 = vpop.f32.mrf.mxu0
        %v2754 = vadd.f32 0.0, %v2753
        %2755 = vmatmul.f32.gmra.mxu0 %v2644
        %v2756 = vpop.f32.mrf.mxu0
        %v2757 = vadd.f32 0.0, %v2756
        %2758 = vmatmul.f32.gmra.mxu0 %v2647
        %v2759 = vpop.f32.mrf.mxu0
        %v2760 = vadd.f32 0.0, %v2759
        %2761 = vmatmul.f32.gmra.mxu0 %v2650
        %v2762 = vpop.f32.mrf.mxu0
        %v2763 = vadd.f32 0.0, %v2762
        %2764 = vmatmul.f32.gmra.mxu0 %v2653
        %v2765 = vpop.f32.mrf.mxu0
        %v2766 = vadd.f32 0.0, %v2765
        %2767 = vmatmul.f32.gmra.mxu0 %v2656
        %v2768 = vpop.f32.mrf.mxu0
        %v2769 = vadd.f32 0.0, %v2768
        %2770 = vmatmul.f32.gmra.mxu0 %v2659
        %v2771 = vpop.f32.mrf.mxu0
        %v2772 = vadd.f32 0.0, %v2771
        %2773 = vmatmul.f32.gmra.mxu0 %v2662
        %v2774 = vpop.f32.mrf.mxu0
        %v2775 = vadd.f32 0.0, %v2774
        %2776 = vmatmul.f32.gmra.mxu0 %v2665
        %v2777 = vpop.f32.mrf.mxu0
        %v2778 = vadd.f32 0.0, %v2777
        %2779 = vmatmul.f32.gmra.mxu0 %v2668
        %v2780 = vpop.f32.mrf.mxu0
        %v2781 = vadd.f32 0.0, %v2780
        %2782 = vmatmul.f32.gmra.mxu0 %v2671
        %v2783 = vpop.f32.mrf.mxu0
        %v2784 = vadd.f32 0.0, %v2783
        %2785 = vmatmul.f32.gmra.mxu0 %v2674
        %v2786 = vpop.f32.mrf.mxu0
        %v2787 = vadd.f32 0.0, %v2786
        %2788 = vmatmul.f32.gmra.mxu0 %v2677
        %v2789 = vpop.f32.mrf.mxu0
        %v2790 = vadd.f32 0.0, %v2789
        %2791 = vmatmul.f32.gmra.mxu0 %v2680
        %v2792 = vpop.f32.mrf.mxu0
        %v2793 = vadd.f32 0.0, %v2792
        %2794 = vmatmul.f32.gmra.mxu0 %v2683
        %v2795 = vpop.f32.mrf.mxu0
        %v2796 = vadd.f32 0.0, %v2795
        %2797 = vmatmul.f32.gmra.mxu0 %v2686
        %v2798 = vpop.f32.mrf.mxu0
        %v2799 = vadd.f32 0.0, %v2798
        %2800 = vmatmul.f32.gmra.mxu0 %v2689
        %v2801 = vpop.f32.mrf.mxu0
        %v2802 = vadd.f32 0.0, %v2801
        %2803 = vmatmul.f32.gmra.mxu0 %v2692
        %v2804 = vpop.f32.mrf.mxu0
        %v2805 = vadd.f32 0.0, %v2804
        %2806 = vmatmul.f32.gmra.mxu0 %v2695
        %v2807 = vpop.f32.mrf.mxu0
        %v2808 = vadd.f32 0.0, %v2807
        %2809 = vdwg.mxu0
        %v2810 = vadd.f32 %v2534, %v2715
        %v2811 = vadd.f32 %v2535, %v2718
        %v2812 = vadd.f32 %v2536, %v2721
        %v2813 = vadd.f32 %v2537, %v2724
        %v2814 = vadd.f32 %v2538, %v2727
        %v2815 = vadd.f32 %v2539, %v2730
        %v2816 = vadd.f32 %v2540, %v2733
        %v2817 = vadd.f32 %v2541, %v2736
        %v2818 = vadd.f32 %v2542, %v2739
        %v2819 = vadd.f32 %v2543, %v2742
        %v2820 = vadd.f32 %v2544, %v2745
        %v2821 = vadd.f32 %v2545, %v2748
        %v2822 = vadd.f32 %v2546, %v2751
        %v2823 = vadd.f32 %v2547, %v2754
        %v2824 = vadd.f32 %v2548, %v2757
        %v2825 = vadd.f32 %v2549, %v2760
        %v2826 = vadd.f32 %v2550, %v2763
        %v2827 = vadd.f32 %v2551, %v2766
        %v2828 = vadd.f32 %v2552, %v2769
        %v2829 = vadd.f32 %v2553, %v2772
        %v2830 = vadd.f32 %v2554, %v2775
        %v2831 = vadd.f32 %v2555, %v2778
        %v2832 = vadd.f32 %v2556, %v2781
        %v2833 = vadd.f32 %v2557, %v2784
        %v2834 = vadd.f32 %v2558, %v2787
        %v2835 = vadd.f32 %v2559, %v2790
        %v2836 = vadd.f32 %v2560, %v2793
        %v2837 = vadd.f32 %v2561, %v2796
        %v2838 = vadd.f32 %v2562, %v2799
        %v2839 = vadd.f32 %v2563, %v2802
        %v2840 = vadd.f32 %v2564, %v2805
        %v2841 = vadd.f32 %v2565, %v2808
        %v2842 = vld [vmem:[%s2] sm:$0x1]
        %v2844 = vperm.slane %v2842, 0
        %v2846 = vadd.f32 %v2810, %v2844
        %v2847 = vadd.f32 %v2811, %v2844
        %v2848 = vadd.f32 %v2812, %v2844
        %v2849 = vadd.f32 %v2813, %v2844
        %v2850 = vadd.f32 %v2814, %v2844
        %v2851 = vadd.f32 %v2815, %v2844
        %v2852 = vadd.f32 %v2816, %v2844
        %v2853 = vadd.f32 %v2817, %v2844
        %v2854 = vadd.f32 %v2818, %v2844
        %v2855 = vadd.f32 %v2819, %v2844
        %v2856 = vadd.f32 %v2820, %v2844
        %v2857 = vadd.f32 %v2821, %v2844
        %v2858 = vadd.f32 %v2822, %v2844
        %v2859 = vadd.f32 %v2823, %v2844
        %v2860 = vadd.f32 %v2824, %v2844
        %v2861 = vadd.f32 %v2825, %v2844
        %v2862 = vadd.f32 %v2826, %v2844
        %v2863 = vadd.f32 %v2827, %v2844
        %v2864 = vadd.f32 %v2828, %v2844
        %v2865 = vadd.f32 %v2829, %v2844
        %v2866 = vadd.f32 %v2830, %v2844
        %v2867 = vadd.f32 %v2831, %v2844
        %v2868 = vadd.f32 %v2832, %v2844
        %v2869 = vadd.f32 %v2833, %v2844
        %v2870 = vadd.f32 %v2834, %v2844
        %v2871 = vadd.f32 %v2835, %v2844
        %v2872 = vadd.f32 %v2836, %v2844
        %v2873 = vadd.f32 %v2837, %v2844
        %v2874 = vadd.f32 %v2838, %v2844
        %v2875 = vadd.f32 %v2839, %v2844
        %v2876 = vadd.f32 %v2840, %v2844
        %v2877 = vadd.f32 %v2841, %v2844
        %v2878 = vmax.f32 %v2846, 0.0
        %v2879 = vmax.f32 %v2847, 0.0
        %v2880 = vmax.f32 %v2848, 0.0
        %v2881 = vmax.f32 %v2849, 0.0
        %v2882 = vmax.f32 %v2850, 0.0
        %v2883 = vmax.f32 %v2851, 0.0
        %v2884 = vmax.f32 %v2852, 0.0
        %v2885 = vmax.f32 %v2853, 0.0
        %v2886 = vmax.f32 %v2854, 0.0
        %v2887 = vmax.f32 %v2855, 0.0
        %v2888 = vmax.f32 %v2856, 0.0
        %v2889 = vmax.f32 %v2857, 0.0
        %v2890 = vmax.f32 %v2858, 0.0
        %v2891 = vmax.f32 %v2859, 0.0
        %v2892 = vmax.f32 %v2860, 0.0
        %v2893 = vmax.f32 %v2861, 0.0
        %v2894 = vmax.f32 %v2862, 0.0
        %v2895 = vmax.f32 %v2863, 0.0
        %v2896 = vmax.f32 %v2864, 0.0
        %v2897 = vmax.f32 %v2865, 0.0
        %v2898 = vmax.f32 %v2866, 0.0
        %v2899 = vmax.f32 %v2867, 0.0
        %v2900 = vmax.f32 %v2868, 0.0
        %v2901 = vmax.f32 %v2869, 0.0
        %v2902 = vmax.f32 %v2870, 0.0
        %v2903 = vmax.f32 %v2871, 0.0
        %v2904 = vmax.f32 %v2872, 0.0
        %v2905 = vmax.f32 %v2873, 0.0
        %v2906 = vmax.f32 %v2874, 0.0
        %v2907 = vmax.f32 %v2875, 0.0
        %v2908 = vmax.f32 %v2876, 0.0
        %v2909 = vmax.f32 %v2877, 0.0
        %s2910 = scalar_lea.vmem [#allocation3], 24
        %vm2911 = vcmask 64512
        %2912 = vst.msk [vmem:[%s2910 + $0x1] sm:$0xff] %vm2911, %v2878
        %2913 = vst.msk [vmem:[%s2910 + $0x9] sm:$0xff] %vm2911, %v2879
        %2914 = vst.msk [vmem:[%s2910 + $0x19] sm:$0xff] %vm2911, %v2880
        %2915 = vst.msk [vmem:[%s2910 + $0x21] sm:$0xff] %vm2911, %v2881
        %2916 = vst.msk [vmem:[%s2910 + $0x31] sm:$0xff] %vm2911, %v2882
        %2917 = vst.msk [vmem:[%s2910 + $0x39] sm:$0xff] %vm2911, %v2883
        %2918 = vst.msk [vmem:[%s2910 + $0x49] sm:$0xff] %vm2911, %v2884
        %2919 = vst.msk [vmem:[%s2910 + $0x51] sm:$0xff] %vm2911, %v2885
        %2920 = vst.msk [vmem:[%s2910 + $0x61] sm:$0xff] %vm2911, %v2886
        %2921 = vst.msk [vmem:[%s2910 + $0x69] sm:$0xff] %vm2911, %v2887
        %2922 = vst.msk [vmem:[%s2910 + $0x79] sm:$0xff] %vm2911, %v2888
        %2923 = vst.msk [vmem:[%s2910 + $0x81] sm:$0xff] %vm2911, %v2889
        %2924 = vst.msk [vmem:[%s2910 + $0x91] sm:$0xff] %vm2911, %v2890
        %2925 = vst.msk [vmem:[%s2910 + $0x99] sm:$0xff] %vm2911, %v2891
        %2926 = vst.msk [vmem:[%s2910 + $0xa9] sm:$0xff] %vm2911, %v2892
        %2927 = vst.msk [vmem:[%s2910 + $0xb1] sm:$0xff] %vm2911, %v2893
        %2928 = vst.msk [vmem:[%s2910 + $0xc1] sm:$0xff] %vm2911, %v2894
        %2929 = vst.msk [vmem:[%s2910 + $0xc9] sm:$0xff] %vm2911, %v2895
        %2930 = vst.msk [vmem:[%s2910 + $0xd9] sm:$0xff] %vm2911, %v2896
        %2931 = vst.msk [vmem:[%s2910 + $0xe1] sm:$0xff] %vm2911, %v2897
        %2932 = vst.msk [vmem:[%s2910 + $0xf1] sm:$0xff] %vm2911, %v2898
        %2933 = vst.msk [vmem:[%s2910 + $0xf9] sm:$0xff] %vm2911, %v2899
        %2934 = vst.msk [vmem:[%s2910 + $0x109] sm:$0xff] %vm2911, %v2900
        %2935 = vst.msk [vmem:[%s2910 + $0x111] sm:$0xff] %vm2911, %v2901
        %2936 = vst.msk [vmem:[%s2910 + $0x121] sm:$0xff] %vm2911, %v2902
        %2937 = vst.msk [vmem:[%s2910 + $0x129] sm:$0xff] %vm2911, %v2903
        %2938 = vst.msk [vmem:[%s2910 + $0x139] sm:$0xff] %vm2911, %v2904
        %2939 = vst.msk [vmem:[%s2910 + $0x141] sm:$0xff] %vm2911, %v2905
        %2940 = vst.msk [vmem:[%s2910 + $0x151] sm:$0xff] %vm2911, %v2906
        %2941 = vst.msk [vmem:[%s2910 + $0x159] sm:$0xff] %vm2911, %v2907
        %2942 = vst.msk [vmem:[%s2910 + $0x169] sm:$0xff] %vm2911, %v2908
        %2943 = vst.msk [vmem:[%s2910 + $0x171] sm:$0xff] %vm2911, %v2909
        %v2944 = vld [vmem:[#allocation3] sm:$0xff]
        %v2945 = vld [vmem:[#allocation3 + $0x8] sm:$0xff]
        %v2946 = vld [vmem:[#allocation3 + $0x18] sm:$0xff]
        %v2947 = vld [vmem:[#allocation3 + $0x20] sm:$0xff]
        %v2948 = vld [vmem:[#allocation3 + $0x30] sm:$0xff]
        %v2949 = vld [vmem:[#allocation3 + $0x38] sm:$0xff]
        %v2950 = vld [vmem:[#allocation3 + $0x48] sm:$0xff]
        %v2951 = vld [vmem:[#allocation3 + $0x50] sm:$0xff]
        %v2952 = vld [vmem:[#allocation3 + $0x60] sm:$0xff]
        %v2953 = vld [vmem:[#allocation3 + $0x68] sm:$0xff]
        %v2954 = vld [vmem:[#allocation3 + $0x78] sm:$0xff]
        %v2955 = vld [vmem:[#allocation3 + $0x80] sm:$0xff]
        %v2956 = vld [vmem:[#allocation3 + $0x90] sm:$0xff]
        %v2957 = vld [vmem:[#allocation3 + $0x98] sm:$0xff]
        %v2958 = vld [vmem:[#allocation3 + $0xa8] sm:$0xff]
        %v2959 = vld [vmem:[#allocation3 + $0xb0] sm:$0xff]
        %v2960 = vld [vmem:[#allocation3 + $0xc0] sm:$0xff]
        %v2961 = vld [vmem:[#allocation3 + $0xc8] sm:$0xff]
        %v2962 = vld [vmem:[#allocation3 + $0xd8] sm:$0xff]
        %v2963 = vld [vmem:[#allocation3 + $0xe0] sm:$0xff]
        %v2964 = vld [vmem:[#allocation3 + $0xf0] sm:$0xff]
        %v2965 = vld [vmem:[#allocation3 + $0xf8] sm:$0xff]
        %v2966 = vld [vmem:[#allocation3 + $0x108] sm:$0xff]
        %v2967 = vld [vmem:[#allocation3 + $0x110] sm:$0xff]
        %v2968 = vld [vmem:[#allocation3 + $0x120] sm:$0xff]
        %v2969 = vld [vmem:[#allocation3 + $0x128] sm:$0xff]
        %v2970 = vld [vmem:[#allocation3 + $0x138] sm:$0xff]
        %v2971 = vld [vmem:[#allocation3 + $0x140] sm:$0xff]
        %v2972 = vld [vmem:[#allocation3 + $0x150] sm:$0xff]
        %v2973 = vld [vmem:[#allocation3 + $0x158] sm:$0xff]
        %v2974 = vld [vmem:[#allocation3 + $0x168] sm:$0xff]
        %v2975 = vld [vmem:[#allocation3 + $0x170] sm:$0xff]
        %v2976 = vld [vmem:[%s3] sm:$0xff]
        %v2977 = vld [vmem:[#allocation3 + $0x1] sm:$0xff]
        %v2978 = vld [vmem:[#allocation3 + $0x9] sm:$0xff]
        %v2979 = vld [vmem:[#allocation3 + $0x19] sm:$0xff]
        %v2980 = vld [vmem:[#allocation3 + $0x21] sm:$0xff]
        %v2981 = vld [vmem:[#allocation3 + $0x31] sm:$0xff]
        %v2982 = vld [vmem:[#allocation3 + $0x39] sm:$0xff]
        %v2983 = vld [vmem:[#allocation3 + $0x49] sm:$0xff]
        %v2984 = vld [vmem:[#allocation3 + $0x51] sm:$0xff]
        %v2985 = vld [vmem:[#allocation3 + $0x61] sm:$0xff]
        %v2986 = vld [vmem:[#allocation3 + $0x69] sm:$0xff]
        %v2987 = vld [vmem:[#allocation3 + $0x79] sm:$0xff]
        %v2988 = vld [vmem:[#allocation3 + $0x81] sm:$0xff]
        %v2989 = vld [vmem:[#allocation3 + $0x91] sm:$0xff]
        %v2990 = vld [vmem:[#allocation3 + $0x99] sm:$0xff]
        %v2991 = vld [vmem:[#allocation3 + $0xa9] sm:$0xff]
        %v2992 = vld [vmem:[#allocation3 + $0xb1] sm:$0xff]
        %v2993 = vld [vmem:[#allocation3 + $0xc1] sm:$0xff]
        %v2994 = vld [vmem:[#allocation3 + $0xc9] sm:$0xff]
        %v2995 = vld [vmem:[#allocation3 + $0xd9] sm:$0xff]
        %v2996 = vld [vmem:[#allocation3 + $0xe1] sm:$0xff]
        %v2997 = vld [vmem:[#allocation3 + $0xf1] sm:$0xff]
        %v2998 = vld [vmem:[#allocation3 + $0xf9] sm:$0xff]
        %v2999 = vld [vmem:[#allocation3 + $0x109] sm:$0xff]
        %v3000 = vld [vmem:[#allocation3 + $0x111] sm:$0xff]
        %v3001 = vld [vmem:[#allocation3 + $0x121] sm:$0xff]
        %v3002 = vld [vmem:[#allocation3 + $0x129] sm:$0xff]
        %v3003 = vld [vmem:[#allocation3 + $0x139] sm:$0xff]
        %v3004 = vld [vmem:[#allocation3 + $0x141] sm:$0xff]
        %v3005 = vld [vmem:[#allocation3 + $0x151] sm:$0xff]
        %v3006 = vld [vmem:[#allocation3 + $0x159] sm:$0xff]
        %v3007 = vld [vmem:[#allocation3 + $0x169] sm:$0xff]
        %v3008 = vld [vmem:[#allocation3 + $0x171] sm:$0xff]
        %s3009 = scalar_lea.vmem %s3, 8
        %v3010 = vld [vmem:[%s3009] sm:$0xff]
        %v3012 = vsel %vm2911, %v2977, 0
        %v3015 = vsel %vm2911, %v2978, 0
        %v3018 = vsel %vm2911, %v2979, 0
        %v3021 = vsel %vm2911, %v2980, 0
        %v3024 = vsel %vm2911, %v2981, 0
        %v3027 = vsel %vm2911, %v2982, 0
        %v3030 = vsel %vm2911, %v2983, 0
        %v3033 = vsel %vm2911, %v2984, 0
        %v3036 = vsel %vm2911, %v2985, 0
        %v3039 = vsel %vm2911, %v2986, 0
        %v3042 = vsel %vm2911, %v2987, 0
        %v3045 = vsel %vm2911, %v2988, 0
        %v3048 = vsel %vm2911, %v2989, 0
        %v3051 = vsel %vm2911, %v2990, 0
        %v3054 = vsel %vm2911, %v2991, 0
        %v3057 = vsel %vm2911, %v2992, 0
        %v3060 = vsel %vm2911, %v2993, 0
        %v3063 = vsel %vm2911, %v2994, 0
        %v3066 = vsel %vm2911, %v2995, 0
        %v3069 = vsel %vm2911, %v2996, 0
        %v3072 = vsel %vm2911, %v2997, 0
        %v3075 = vsel %vm2911, %v2998, 0
        %v3078 = vsel %vm2911, %v2999, 0
        %v3081 = vsel %vm2911, %v3000, 0
        %v3084 = vsel %vm2911, %v3001, 0
        %v3087 = vsel %vm2911, %v3002, 0
        %v3090 = vsel %vm2911, %v3003, 0
        %v3093 = vsel %vm2911, %v3004, 0
        %v3096 = vsel %vm2911, %v3005, 0
        %v3099 = vsel %vm2911, %v3006, 0
        %v3102 = vsel %vm2911, %v3007, 0
        %v3105 = vsel %vm2911, %v3008, 0
        %3107 = vmatpush.msra.mxu0 0.0
        %3108 = vmatpush.msra.mxu0 0.0
        %3109 = vmatpush.msra.mxu0 0.0
        %3110 = vmatpush.msra.mxu0 0.0
        %3111 = vmatpush.msra.mxu0 0.0
        %3112 = vmatpush.msra.mxu0 0.0
        %3113 = vmatpush.msra.mxu0 0.0
        %3114 = vmatpush.msra.mxu0 0.0
        %3115 = vmatpush.msra.mxu0 0.0
        %3116 = vmatpush.msra.mxu0 0.0
        %3117 = vmatpush.msra.mxu0 0.0
        %3118 = vmatpush.msra.mxu0 0.0
        %3119 = vmatpush.msra.mxu0 0.0
        %3120 = vmatpush.msra.mxu0 0.0
        %3121 = vmatpush.msra.mxu0 0.0
        %3122 = vmatpush.msra.mxu0 %v3010
        %3123 = vmatmul.f32.gmra.mxu0 %v3012
        %v3124 = vpop.f32.mrf.mxu0
        %v3125 = vadd.f32 0.0, %v3124
        %3126 = vmatmul.f32.gmra.mxu0 %v3015
        %v3127 = vpop.f32.mrf.mxu0
        %v3128 = vadd.f32 0.0, %v3127
        %3129 = vmatmul.f32.gmra.mxu0 %v3018
        %v3130 = vpop.f32.mrf.mxu0
        %v3131 = vadd.f32 0.0, %v3130
        %3132 = vmatmul.f32.gmra.mxu0 %v3021
        %v3133 = vpop.f32.mrf.mxu0
        %v3134 = vadd.f32 0.0, %v3133
        %3135 = vmatmul.f32.gmra.mxu0 %v3024
        %v3136 = vpop.f32.mrf.mxu0
        %v3137 = vadd.f32 0.0, %v3136
        %3138 = vmatmul.f32.gmra.mxu0 %v3027
        %v3139 = vpop.f32.mrf.mxu0
        %v3140 = vadd.f32 0.0, %v3139
        %3141 = vmatmul.f32.gmra.mxu0 %v3030
        %v3142 = vpop.f32.mrf.mxu0
        %v3143 = vadd.f32 0.0, %v3142
        %3144 = vmatmul.f32.gmra.mxu0 %v3033
        %v3145 = vpop.f32.mrf.mxu0
        %v3146 = vadd.f32 0.0, %v3145
        %3147 = vmatmul.f32.gmra.mxu0 %v3036
        %v3148 = vpop.f32.mrf.mxu0
        %v3149 = vadd.f32 0.0, %v3148
        %3150 = vmatmul.f32.gmra.mxu0 %v3039
        %v3151 = vpop.f32.mrf.mxu0
        %v3152 = vadd.f32 0.0, %v3151
        %3153 = vmatmul.f32.gmra.mxu0 %v3042
        %v3154 = vpop.f32.mrf.mxu0
        %v3155 = vadd.f32 0.0, %v3154
        %3156 = vmatmul.f32.gmra.mxu0 %v3045
        %v3157 = vpop.f32.mrf.mxu0
        %v3158 = vadd.f32 0.0, %v3157
        %3159 = vmatmul.f32.gmra.mxu0 %v3048
        %v3160 = vpop.f32.mrf.mxu0
        %v3161 = vadd.f32 0.0, %v3160
        %3162 = vmatmul.f32.gmra.mxu0 %v3051
        %v3163 = vpop.f32.mrf.mxu0
        %v3164 = vadd.f32 0.0, %v3163
        %3165 = vmatmul.f32.gmra.mxu0 %v3054
        %v3166 = vpop.f32.mrf.mxu0
        %v3167 = vadd.f32 0.0, %v3166
        %3168 = vmatmul.f32.gmra.mxu0 %v3057
        %v3169 = vpop.f32.mrf.mxu0
        %v3170 = vadd.f32 0.0, %v3169
        %3171 = vmatmul.f32.gmra.mxu0 %v3060
        %v3172 = vpop.f32.mrf.mxu0
        %v3173 = vadd.f32 0.0, %v3172
        %3174 = vmatmul.f32.gmra.mxu0 %v3063
        %v3175 = vpop.f32.mrf.mxu0
        %v3176 = vadd.f32 0.0, %v3175
        %3177 = vmatmul.f32.gmra.mxu0 %v3066
        %v3178 = vpop.f32.mrf.mxu0
        %v3179 = vadd.f32 0.0, %v3178
        %3180 = vmatmul.f32.gmra.mxu0 %v3069
        %v3181 = vpop.f32.mrf.mxu0
        %v3182 = vadd.f32 0.0, %v3181
        %3183 = vmatmul.f32.gmra.mxu0 %v3072
        %v3184 = vpop.f32.mrf.mxu0
        %v3185 = vadd.f32 0.0, %v3184
        %3186 = vmatmul.f32.gmra.mxu0 %v3075
        %v3187 = vpop.f32.mrf.mxu0
        %v3188 = vadd.f32 0.0, %v3187
        %3189 = vmatmul.f32.gmra.mxu0 %v3078
        %v3190 = vpop.f32.mrf.mxu0
        %v3191 = vadd.f32 0.0, %v3190
        %3192 = vmatmul.f32.gmra.mxu0 %v3081
        %v3193 = vpop.f32.mrf.mxu0
        %v3194 = vadd.f32 0.0, %v3193
        %3195 = vmatmul.f32.gmra.mxu0 %v3084
        %v3196 = vpop.f32.mrf.mxu0
        %v3197 = vadd.f32 0.0, %v3196
        %3198 = vmatmul.f32.gmra.mxu0 %v3087
        %v3199 = vpop.f32.mrf.mxu0
        %v3200 = vadd.f32 0.0, %v3199
        %3201 = vmatmul.f32.gmra.mxu0 %v3090
        %v3202 = vpop.f32.mrf.mxu0
        %v3203 = vadd.f32 0.0, %v3202
        %3204 = vmatmul.f32.gmra.mxu0 %v3093
        %v3205 = vpop.f32.mrf.mxu0
        %v3206 = vadd.f32 0.0, %v3205
        %3207 = vmatmul.f32.gmra.mxu0 %v3096
        %v3208 = vpop.f32.mrf.mxu0
        %v3209 = vadd.f32 0.0, %v3208
        %3210 = vmatmul.f32.gmra.mxu0 %v3099
        %v3211 = vpop.f32.mrf.mxu0
        %v3212 = vadd.f32 0.0, %v3211
        %3213 = vmatmul.f32.gmra.mxu0 %v3102
        %v3214 = vpop.f32.mrf.mxu0
        %v3215 = vadd.f32 0.0, %v3214
        %3216 = vmatmul.f32.gmra.mxu0 %v3105
        %v3217 = vpop.f32.mrf.mxu0
        %v3218 = vadd.f32 0.0, %v3217
        %3219 = vdwg.mxu0
        %v3221 = vsel %vm2911, %v2944, 0
        %v3224 = vsel %vm2911, %v2945, 0
        %v3227 = vsel %vm2911, %v2946, 0
        %v3230 = vsel %vm2911, %v2947, 0
        %v3233 = vsel %vm2911, %v2948, 0
        %v3236 = vsel %vm2911, %v2949, 0
        %v3239 = vsel %vm2911, %v2950, 0
        %v3242 = vsel %vm2911, %v2951, 0
        %v3245 = vsel %vm2911, %v2952, 0
        %v3248 = vsel %vm2911, %v2953, 0
        %v3251 = vsel %vm2911, %v2954, 0
        %v3254 = vsel %vm2911, %v2955, 0
        %v3257 = vsel %vm2911, %v2956, 0
        %v3260 = vsel %vm2911, %v2957, 0
        %v3263 = vsel %vm2911, %v2958, 0
        %v3266 = vsel %vm2911, %v2959, 0
        %v3269 = vsel %vm2911, %v2960, 0
        %v3272 = vsel %vm2911, %v2961, 0
        %v3275 = vsel %vm2911, %v2962, 0
        %v3278 = vsel %vm2911, %v2963, 0
        %v3281 = vsel %vm2911, %v2964, 0
        %v3284 = vsel %vm2911, %v2965, 0
        %v3287 = vsel %vm2911, %v2966, 0
        %v3290 = vsel %vm2911, %v2967, 0
        %v3293 = vsel %vm2911, %v2968, 0
        %v3296 = vsel %vm2911, %v2969, 0
        %v3299 = vsel %vm2911, %v2970, 0
        %v3302 = vsel %vm2911, %v2971, 0
        %v3305 = vsel %vm2911, %v2972, 0
        %v3308 = vsel %vm2911, %v2973, 0
        %v3311 = vsel %vm2911, %v2974, 0
        %v3314 = vsel %vm2911, %v2975, 0
        %3316 = vmatpush.msra.mxu0 0.0
        %3317 = vmatpush.msra.mxu0 0.0
        %3318 = vmatpush.msra.mxu0 0.0
        %3319 = vmatpush.msra.mxu0 0.0
        %3320 = vmatpush.msra.mxu0 0.0
        %3321 = vmatpush.msra.mxu0 0.0
        %3322 = vmatpush.msra.mxu0 0.0
        %3323 = vmatpush.msra.mxu0 0.0
        %3324 = vmatpush.msra.mxu0 0.0
        %3325 = vmatpush.msra.mxu0 0.0
        %3326 = vmatpush.msra.mxu0 0.0
        %3327 = vmatpush.msra.mxu0 0.0
        %3328 = vmatpush.msra.mxu0 0.0
        %3329 = vmatpush.msra.mxu0 0.0
        %3330 = vmatpush.msra.mxu0 0.0
        %3331 = vmatpush.msra.mxu0 %v2976
        %3332 = vmatmul.f32.gmra.mxu0 %v3221
        %v3333 = vpop.f32.mrf.mxu0
        %v3334 = vadd.f32 %v3125, %v3333
        %3335 = vmatmul.f32.gmra.mxu0 %v3224
        %v3336 = vpop.f32.mrf.mxu0
        %v3337 = vadd.f32 %v3128, %v3336
        %3338 = vmatmul.f32.gmra.mxu0 %v3227
        %v3339 = vpop.f32.mrf.mxu0
        %v3340 = vadd.f32 %v3131, %v3339
        %3341 = vmatmul.f32.gmra.mxu0 %v3230
        %v3342 = vpop.f32.mrf.mxu0
        %v3343 = vadd.f32 %v3134, %v3342
        %3344 = vmatmul.f32.gmra.mxu0 %v3233
        %v3345 = vpop.f32.mrf.mxu0
        %v3346 = vadd.f32 %v3137, %v3345
        %3347 = vmatmul.f32.gmra.mxu0 %v3236
        %v3348 = vpop.f32.mrf.mxu0
        %v3349 = vadd.f32 %v3140, %v3348
        %3350 = vmatmul.f32.gmra.mxu0 %v3239
        %v3351 = vpop.f32.mrf.mxu0
        %v3352 = vadd.f32 %v3143, %v3351
        %3353 = vmatmul.f32.gmra.mxu0 %v3242
        %v3354 = vpop.f32.mrf.mxu0
        %v3355 = vadd.f32 %v3146, %v3354
        %3356 = vmatmul.f32.gmra.mxu0 %v3245
        %v3357 = vpop.f32.mrf.mxu0
        %v3358 = vadd.f32 %v3149, %v3357
        %3359 = vmatmul.f32.gmra.mxu0 %v3248
        %v3360 = vpop.f32.mrf.mxu0
        %v3361 = vadd.f32 %v3152, %v3360
        %3362 = vmatmul.f32.gmra.mxu0 %v3251
        %v3363 = vpop.f32.mrf.mxu0
        %v3364 = vadd.f32 %v3155, %v3363
        %3365 = vmatmul.f32.gmra.mxu0 %v3254
        %v3366 = vpop.f32.mrf.mxu0
        %v3367 = vadd.f32 %v3158, %v3366
        %3368 = vmatmul.f32.gmra.mxu0 %v3257
        %v3369 = vpop.f32.mrf.mxu0
        %v3370 = vadd.f32 %v3161, %v3369
        %3371 = vmatmul.f32.gmra.mxu0 %v3260
        %v3372 = vpop.f32.mrf.mxu0
        %v3373 = vadd.f32 %v3164, %v3372
        %3374 = vmatmul.f32.gmra.mxu0 %v3263
        %v3375 = vpop.f32.mrf.mxu0
        %v3376 = vadd.f32 %v3167, %v3375
        %3377 = vmatmul.f32.gmra.mxu0 %v3266
        %v3378 = vpop.f32.mrf.mxu0
        %v3379 = vadd.f32 %v3170, %v3378
        %3380 = vmatmul.f32.gmra.mxu0 %v3269
        %v3381 = vpop.f32.mrf.mxu0
        %v3382 = vadd.f32 %v3173, %v3381
        %3383 = vmatmul.f32.gmra.mxu0 %v3272
        %v3384 = vpop.f32.mrf.mxu0
        %v3385 = vadd.f32 %v3176, %v3384
        %3386 = vmatmul.f32.gmra.mxu0 %v3275
        %v3387 = vpop.f32.mrf.mxu0
        %v3388 = vadd.f32 %v3179, %v3387
        %3389 = vmatmul.f32.gmra.mxu0 %v3278
        %v3390 = vpop.f32.mrf.mxu0
        %v3391 = vadd.f32 %v3182, %v3390
        %3392 = vmatmul.f32.gmra.mxu0 %v3281
        %v3393 = vpop.f32.mrf.mxu0
        %v3394 = vadd.f32 %v3185, %v3393
        %3395 = vmatmul.f32.gmra.mxu0 %v3284
        %v3396 = vpop.f32.mrf.mxu0
        %v3397 = vadd.f32 %v3188, %v3396
        %3398 = vmatmul.f32.gmra.mxu0 %v3287
        %v3399 = vpop.f32.mrf.mxu0
        %v3400 = vadd.f32 %v3191, %v3399
        %3401 = vmatmul.f32.gmra.mxu0 %v3290
        %v3402 = vpop.f32.mrf.mxu0
        %v3403 = vadd.f32 %v3194, %v3402
        %3404 = vmatmul.f32.gmra.mxu0 %v3293
        %v3405 = vpop.f32.mrf.mxu0
        %v3406 = vadd.f32 %v3197, %v3405
        %3407 = vmatmul.f32.gmra.mxu0 %v3296
        %v3408 = vpop.f32.mrf.mxu0
        %v3409 = vadd.f32 %v3200, %v3408
        %3410 = vmatmul.f32.gmra.mxu0 %v3299
        %v3411 = vpop.f32.mrf.mxu0
        %v3412 = vadd.f32 %v3203, %v3411
        %3413 = vmatmul.f32.gmra.mxu0 %v3302
        %v3414 = vpop.f32.mrf.mxu0
        %v3415 = vadd.f32 %v3206, %v3414
        %3416 = vmatmul.f32.gmra.mxu0 %v3305
        %v3417 = vpop.f32.mrf.mxu0
        %v3418 = vadd.f32 %v3209, %v3417
        %3419 = vmatmul.f32.gmra.mxu0 %v3308
        %v3420 = vpop.f32.mrf.mxu0
        %v3421 = vadd.f32 %v3212, %v3420
        %3422 = vmatmul.f32.gmra.mxu0 %v3311
        %v3423 = vpop.f32.mrf.mxu0
        %v3424 = vadd.f32 %v3215, %v3423
        %3425 = vmatmul.f32.gmra.mxu0 %v3314
        %v3426 = vpop.f32.mrf.mxu0
        %v3427 = vadd.f32 %v3218, %v3426
        %3428 = vdwg.mxu0
        %v3429 = vld [vmem:[#allocation3 + $0x2] sm:$0xff]
        %v3430 = vld [vmem:[#allocation3 + $0xa] sm:$0xff]
        %v3431 = vld [vmem:[#allocation3 + $0x1a] sm:$0xff]
        %v3432 = vld [vmem:[#allocation3 + $0x22] sm:$0xff]
        %v3433 = vld [vmem:[#allocation3 + $0x32] sm:$0xff]
        %v3434 = vld [vmem:[#allocation3 + $0x3a] sm:$0xff]
        %v3435 = vld [vmem:[#allocation3 + $0x4a] sm:$0xff]
        %v3436 = vld [vmem:[#allocation3 + $0x52] sm:$0xff]
        %v3437 = vld [vmem:[#allocation3 + $0x62] sm:$0xff]
        %v3438 = vld [vmem:[#allocation3 + $0x6a] sm:$0xff]
        %v3439 = vld [vmem:[#allocation3 + $0x7a] sm:$0xff]
        %v3440 = vld [vmem:[#allocation3 + $0x82] sm:$0xff]
        %v3441 = vld [vmem:[#allocation3 + $0x92] sm:$0xff]
        %v3442 = vld [vmem:[#allocation3 + $0x9a] sm:$0xff]
        %v3443 = vld [vmem:[#allocation3 + $0xaa] sm:$0xff]
        %v3444 = vld [vmem:[#allocation3 + $0xb2] sm:$0xff]
        %v3445 = vld [vmem:[#allocation3 + $0xc2] sm:$0xff]
        %v3446 = vld [vmem:[#allocation3 + $0xca] sm:$0xff]
        %v3447 = vld [vmem:[#allocation3 + $0xda] sm:$0xff]
        %v3448 = vld [vmem:[#allocation3 + $0xe2] sm:$0xff]
        %v3449 = vld [vmem:[#allocation3 + $0xf2] sm:$0xff]
        %v3450 = vld [vmem:[#allocation3 + $0xfa] sm:$0xff]
        %v3451 = vld [vmem:[#allocation3 + $0x10a] sm:$0xff]
        %v3452 = vld [vmem:[#allocation3 + $0x112] sm:$0xff]
        %v3453 = vld [vmem:[#allocation3 + $0x122] sm:$0xff]
        %v3454 = vld [vmem:[#allocation3 + $0x12a] sm:$0xff]
        %v3455 = vld [vmem:[#allocation3 + $0x13a] sm:$0xff]
        %v3456 = vld [vmem:[#allocation3 + $0x142] sm:$0xff]
        %v3457 = vld [vmem:[#allocation3 + $0x152] sm:$0xff]
        %v3458 = vld [vmem:[#allocation3 + $0x15a] sm:$0xff]
        %v3459 = vld [vmem:[#allocation3 + $0x16a] sm:$0xff]
        %v3460 = vld [vmem:[#allocation3 + $0x172] sm:$0xff]
        %s3461 = scalar_lea.vmem %s3, 16
        %v3462 = vld [vmem:[%s3461] sm:$0xff]
        %v3464 = vsel %vm2911, %v3429, 0
        %v3467 = vsel %vm2911, %v3430, 0
        %v3470 = vsel %vm2911, %v3431, 0
        %v3473 = vsel %vm2911, %v3432, 0
        %v3476 = vsel %vm2911, %v3433, 0
        %v3479 = vsel %vm2911, %v3434, 0
        %v3482 = vsel %vm2911, %v3435, 0
        %v3485 = vsel %vm2911, %v3436, 0
        %v3488 = vsel %vm2911, %v3437, 0
        %v3491 = vsel %vm2911, %v3438, 0
        %v3494 = vsel %vm2911, %v3439, 0
        %v3497 = vsel %vm2911, %v3440, 0
        %v3500 = vsel %vm2911, %v3441, 0
        %v3503 = vsel %vm2911, %v3442, 0
        %v3506 = vsel %vm2911, %v3443, 0
        %v3509 = vsel %vm2911, %v3444, 0
        %v3512 = vsel %vm2911, %v3445, 0
        %v3515 = vsel %vm2911, %v3446, 0
        %v3518 = vsel %vm2911, %v3447, 0
        %v3521 = vsel %vm2911, %v3448, 0
        %v3524 = vsel %vm2911, %v3449, 0
        %v3527 = vsel %vm2911, %v3450, 0
        %v3530 = vsel %vm2911, %v3451, 0
        %v3533 = vsel %vm2911, %v3452, 0
        %v3536 = vsel %vm2911, %v3453, 0
        %v3539 = vsel %vm2911, %v3454, 0
        %v3542 = vsel %vm2911, %v3455, 0
        %v3545 = vsel %vm2911, %v3456, 0
        %v3548 = vsel %vm2911, %v3457, 0
        %v3551 = vsel %vm2911, %v3458, 0
        %v3554 = vsel %vm2911, %v3459, 0
        %v3557 = vsel %vm2911, %v3460, 0
        %3559 = vmatpush.msra.mxu0 0.0
        %3560 = vmatpush.msra.mxu0 0.0
        %3561 = vmatpush.msra.mxu0 0.0
        %3562 = vmatpush.msra.mxu0 0.0
        %3563 = vmatpush.msra.mxu0 0.0
        %3564 = vmatpush.msra.mxu0 0.0
        %3565 = vmatpush.msra.mxu0 0.0
        %3566 = vmatpush.msra.mxu0 0.0
        %3567 = vmatpush.msra.mxu0 0.0
        %3568 = vmatpush.msra.mxu0 0.0
        %3569 = vmatpush.msra.mxu0 0.0
        %3570 = vmatpush.msra.mxu0 0.0
        %3571 = vmatpush.msra.mxu0 0.0
        %3572 = vmatpush.msra.mxu0 0.0
        %3573 = vmatpush.msra.mxu0 0.0
        %3574 = vmatpush.msra.mxu0 %v3462
        %3575 = vmatmul.f32.gmra.mxu0 %v3464
        %v3576 = vpop.f32.mrf.mxu0
        %v3577 = vadd.f32 0.0, %v3576
        %3578 = vmatmul.f32.gmra.mxu0 %v3467
        %v3579 = vpop.f32.mrf.mxu0
        %v3580 = vadd.f32 0.0, %v3579
        %3581 = vmatmul.f32.gmra.mxu0 %v3470
        %v3582 = vpop.f32.mrf.mxu0
        %v3583 = vadd.f32 0.0, %v3582
        %3584 = vmatmul.f32.gmra.mxu0 %v3473
        %v3585 = vpop.f32.mrf.mxu0
        %v3586 = vadd.f32 0.0, %v3585
        %3587 = vmatmul.f32.gmra.mxu0 %v3476
        %v3588 = vpop.f32.mrf.mxu0
        %v3589 = vadd.f32 0.0, %v3588
        %3590 = vmatmul.f32.gmra.mxu0 %v3479
        %v3591 = vpop.f32.mrf.mxu0
        %v3592 = vadd.f32 0.0, %v3591
        %3593 = vmatmul.f32.gmra.mxu0 %v3482
        %v3594 = vpop.f32.mrf.mxu0
        %v3595 = vadd.f32 0.0, %v3594
        %3596 = vmatmul.f32.gmra.mxu0 %v3485
        %v3597 = vpop.f32.mrf.mxu0
        %v3598 = vadd.f32 0.0, %v3597
        %3599 = vmatmul.f32.gmra.mxu0 %v3488
        %v3600 = vpop.f32.mrf.mxu0
        %v3601 = vadd.f32 0.0, %v3600
        %3602 = vmatmul.f32.gmra.mxu0 %v3491
        %v3603 = vpop.f32.mrf.mxu0
        %v3604 = vadd.f32 0.0, %v3603
        %3605 = vmatmul.f32.gmra.mxu0 %v3494
        %v3606 = vpop.f32.mrf.mxu0
        %v3607 = vadd.f32 0.0, %v3606
        %3608 = vmatmul.f32.gmra.mxu0 %v3497
        %v3609 = vpop.f32.mrf.mxu0
        %v3610 = vadd.f32 0.0, %v3609
        %3611 = vmatmul.f32.gmra.mxu0 %v3500
        %v3612 = vpop.f32.mrf.mxu0
        %v3613 = vadd.f32 0.0, %v3612
        %3614 = vmatmul.f32.gmra.mxu0 %v3503
        %v3615 = vpop.f32.mrf.mxu0
        %v3616 = vadd.f32 0.0, %v3615
        %3617 = vmatmul.f32.gmra.mxu0 %v3506
        %v3618 = vpop.f32.mrf.mxu0
        %v3619 = vadd.f32 0.0, %v3618
        %3620 = vmatmul.f32.gmra.mxu0 %v3509
        %v3621 = vpop.f32.mrf.mxu0
        %v3622 = vadd.f32 0.0, %v3621
        %3623 = vmatmul.f32.gmra.mxu0 %v3512
        %v3624 = vpop.f32.mrf.mxu0
        %v3625 = vadd.f32 0.0, %v3624
        %3626 = vmatmul.f32.gmra.mxu0 %v3515
        %v3627 = vpop.f32.mrf.mxu0
        %v3628 = vadd.f32 0.0, %v3627
        %3629 = vmatmul.f32.gmra.mxu0 %v3518
        %v3630 = vpop.f32.mrf.mxu0
        %v3631 = vadd.f32 0.0, %v3630
        %3632 = vmatmul.f32.gmra.mxu0 %v3521
        %v3633 = vpop.f32.mrf.mxu0
        %v3634 = vadd.f32 0.0, %v3633
        %3635 = vmatmul.f32.gmra.mxu0 %v3524
        %v3636 = vpop.f32.mrf.mxu0
        %v3637 = vadd.f32 0.0, %v3636
        %3638 = vmatmul.f32.gmra.mxu0 %v3527
        %v3639 = vpop.f32.mrf.mxu0
        %v3640 = vadd.f32 0.0, %v3639
        %3641 = vmatmul.f32.gmra.mxu0 %v3530
        %v3642 = vpop.f32.mrf.mxu0
        %v3643 = vadd.f32 0.0, %v3642
        %3644 = vmatmul.f32.gmra.mxu0 %v3533
        %v3645 = vpop.f32.mrf.mxu0
        %v3646 = vadd.f32 0.0, %v3645
        %3647 = vmatmul.f32.gmra.mxu0 %v3536
        %v3648 = vpop.f32.mrf.mxu0
        %v3649 = vadd.f32 0.0, %v3648
        %3650 = vmatmul.f32.gmra.mxu0 %v3539
        %v3651 = vpop.f32.mrf.mxu0
        %v3652 = vadd.f32 0.0, %v3651
        %3653 = vmatmul.f32.gmra.mxu0 %v3542
        %v3654 = vpop.f32.mrf.mxu0
        %v3655 = vadd.f32 0.0, %v3654
        %3656 = vmatmul.f32.gmra.mxu0 %v3545
        %v3657 = vpop.f32.mrf.mxu0
        %v3658 = vadd.f32 0.0, %v3657
        %3659 = vmatmul.f32.gmra.mxu0 %v3548
        %v3660 = vpop.f32.mrf.mxu0
        %v3661 = vadd.f32 0.0, %v3660
        %3662 = vmatmul.f32.gmra.mxu0 %v3551
        %v3663 = vpop.f32.mrf.mxu0
        %v3664 = vadd.f32 0.0, %v3663
        %3665 = vmatmul.f32.gmra.mxu0 %v3554
        %v3666 = vpop.f32.mrf.mxu0
        %v3667 = vadd.f32 0.0, %v3666
        %3668 = vmatmul.f32.gmra.mxu0 %v3557
        %v3669 = vpop.f32.mrf.mxu0
        %v3670 = vadd.f32 0.0, %v3669
        %3671 = vdwg.mxu0
        %v3672 = vadd.f32 %v3334, %v3577
        %v3673 = vadd.f32 %v3337, %v3580
        %v3674 = vadd.f32 %v3340, %v3583
        %v3675 = vadd.f32 %v3343, %v3586
        %v3676 = vadd.f32 %v3346, %v3589
        %v3677 = vadd.f32 %v3349, %v3592
        %v3678 = vadd.f32 %v3352, %v3595
        %v3679 = vadd.f32 %v3355, %v3598
        %v3680 = vadd.f32 %v3358, %v3601
        %v3681 = vadd.f32 %v3361, %v3604
        %v3682 = vadd.f32 %v3364, %v3607
        %v3683 = vadd.f32 %v3367, %v3610
        %v3684 = vadd.f32 %v3370, %v3613
        %v3685 = vadd.f32 %v3373, %v3616
        %v3686 = vadd.f32 %v3376, %v3619
        %v3687 = vadd.f32 %v3379, %v3622
        %v3688 = vadd.f32 %v3382, %v3625
        %v3689 = vadd.f32 %v3385, %v3628
        %v3690 = vadd.f32 %v3388, %v3631
        %v3691 = vadd.f32 %v3391, %v3634
        %v3692 = vadd.f32 %v3394, %v3637
        %v3693 = vadd.f32 %v3397, %v3640
        %v3694 = vadd.f32 %v3400, %v3643
        %v3695 = vadd.f32 %v3403, %v3646
        %v3696 = vadd.f32 %v3406, %v3649
        %v3697 = vadd.f32 %v3409, %v3652
        %v3698 = vadd.f32 %v3412, %v3655
        %v3699 = vadd.f32 %v3415, %v3658
        %v3700 = vadd.f32 %v3418, %v3661
        %v3701 = vadd.f32 %v3421, %v3664
        %v3702 = vadd.f32 %v3424, %v3667
        %v3703 = vadd.f32 %v3427, %v3670
        %v3704 = vld [vmem:[%s2910] sm:$0xff]
        %v3705 = vld [vmem:[%s2910 + $0x8] sm:$0xff]
        %v3706 = vld [vmem:[%s2910 + $0x18] sm:$0xff]
        %v3707 = vld [vmem:[%s2910 + $0x20] sm:$0xff]
        %v3708 = vld [vmem:[%s2910 + $0x30] sm:$0xff]
        %v3709 = vld [vmem:[%s2910 + $0x38] sm:$0xff]
        %v3710 = vld [vmem:[%s2910 + $0x48] sm:$0xff]
        %v3711 = vld [vmem:[%s2910 + $0x50] sm:$0xff]
        %v3712 = vld [vmem:[%s2910 + $0x60] sm:$0xff]
        %v3713 = vld [vmem:[%s2910 + $0x68] sm:$0xff]
        %v3714 = vld [vmem:[%s2910 + $0x78] sm:$0xff]
        %v3715 = vld [vmem:[%s2910 + $0x80] sm:$0xff]
        %v3716 = vld [vmem:[%s2910 + $0x90] sm:$0xff]
        %v3717 = vld [vmem:[%s2910 + $0x98] sm:$0xff]
        %v3718 = vld [vmem:[%s2910 + $0xa8] sm:$0xff]
        %v3719 = vld [vmem:[%s2910 + $0xb0] sm:$0xff]
        %v3720 = vld [vmem:[%s2910 + $0xc0] sm:$0xff]
        %v3721 = vld [vmem:[%s2910 + $0xc8] sm:$0xff]
        %v3722 = vld [vmem:[%s2910 + $0xd8] sm:$0xff]
        %v3723 = vld [vmem:[%s2910 + $0xe0] sm:$0xff]
        %v3724 = vld [vmem:[%s2910 + $0xf0] sm:$0xff]
        %v3725 = vld [vmem:[%s2910 + $0xf8] sm:$0xff]
        %v3726 = vld [vmem:[%s2910 + $0x108] sm:$0xff]
        %v3727 = vld [vmem:[%s2910 + $0x110] sm:$0xff]
        %v3728 = vld [vmem:[%s2910 + $0x120] sm:$0xff]
        %v3729 = vld [vmem:[%s2910 + $0x128] sm:$0xff]
        %v3730 = vld [vmem:[%s2910 + $0x138] sm:$0xff]
        %v3731 = vld [vmem:[%s2910 + $0x140] sm:$0xff]
        %v3732 = vld [vmem:[%s2910 + $0x150] sm:$0xff]
        %v3733 = vld [vmem:[%s2910 + $0x158] sm:$0xff]
        %v3734 = vld [vmem:[%s2910 + $0x168] sm:$0xff]
        %v3735 = vld [vmem:[%s2910 + $0x170] sm:$0xff]
        %s3736 = scalar_lea.vmem %s3, 24
        %v3737 = vld [vmem:[%s3736] sm:$0xff]
        %v3739 = vsel %vm2911, %v3704, 0
        %v3742 = vsel %vm2911, %v3705, 0
        %v3745 = vsel %vm2911, %v3706, 0
        %v3748 = vsel %vm2911, %v3707, 0
        %v3751 = vsel %vm2911, %v3708, 0
        %v3754 = vsel %vm2911, %v3709, 0
        %v3757 = vsel %vm2911, %v3710, 0
        %v3760 = vsel %vm2911, %v3711, 0
        %v3763 = vsel %vm2911, %v3712, 0
        %v3766 = vsel %vm2911, %v3713, 0
        %v3769 = vsel %vm2911, %v3714, 0
        %v3772 = vsel %vm2911, %v3715, 0
        %v3775 = vsel %vm2911, %v3716, 0
        %v3778 = vsel %vm2911, %v3717, 0
        %v3781 = vsel %vm2911, %v3718, 0
        %v3784 = vsel %vm2911, %v3719, 0
        %v3787 = vsel %vm2911, %v3720, 0
        %v3790 = vsel %vm2911, %v3721, 0
        %v3793 = vsel %vm2911, %v3722, 0
        %v3796 = vsel %vm2911, %v3723, 0
        %v3799 = vsel %vm2911, %v3724, 0
        %v3802 = vsel %vm2911, %v3725, 0
        %v3805 = vsel %vm2911, %v3726, 0
        %v3808 = vsel %vm2911, %v3727, 0
        %v3811 = vsel %vm2911, %v3728, 0
        %v3814 = vsel %vm2911, %v3729, 0
        %v3817 = vsel %vm2911, %v3730, 0
        %v3820 = vsel %vm2911, %v3731, 0
        %v3823 = vsel %vm2911, %v3732, 0
        %v3826 = vsel %vm2911, %v3733, 0
        %v3829 = vsel %vm2911, %v3734, 0
        %v3832 = vsel %vm2911, %v3735, 0
        %3834 = vmatpush.msra.mxu0 0.0
        %3835 = vmatpush.msra.mxu0 0.0
        %3836 = vmatpush.msra.mxu0 0.0
        %3837 = vmatpush.msra.mxu0 0.0
        %3838 = vmatpush.msra.mxu0 0.0
        %3839 = vmatpush.msra.mxu0 0.0
        %3840 = vmatpush.msra.mxu0 0.0
        %3841 = vmatpush.msra.mxu0 0.0
        %3842 = vmatpush.msra.mxu0 0.0
        %3843 = vmatpush.msra.mxu0 0.0
        %3844 = vmatpush.msra.mxu0 0.0
        %3845 = vmatpush.msra.mxu0 0.0
        %3846 = vmatpush.msra.mxu0 0.0
        %3847 = vmatpush.msra.mxu0 0.0
        %3848 = vmatpush.msra.mxu0 0.0
        %3849 = vmatpush.msra.mxu0 %v3737
        %3850 = vmatmul.f32.gmra.mxu0 %v3739
        %v3851 = vpop.f32.mrf.mxu0
        %v3852 = vadd.f32 0.0, %v3851
        %3853 = vmatmul.f32.gmra.mxu0 %v3742
        %v3854 = vpop.f32.mrf.mxu0
        %v3855 = vadd.f32 0.0, %v3854
        %3856 = vmatmul.f32.gmra.mxu0 %v3745
        %v3857 = vpop.f32.mrf.mxu0
        %v3858 = vadd.f32 0.0, %v3857
        %3859 = vmatmul.f32.gmra.mxu0 %v3748
        %v3860 = vpop.f32.mrf.mxu0
        %v3861 = vadd.f32 0.0, %v3860
        %3862 = vmatmul.f32.gmra.mxu0 %v3751
        %v3863 = vpop.f32.mrf.mxu0
        %v3864 = vadd.f32 0.0, %v3863
        %3865 = vmatmul.f32.gmra.mxu0 %v3754
        %v3866 = vpop.f32.mrf.mxu0
        %v3867 = vadd.f32 0.0, %v3866
        %3868 = vmatmul.f32.gmra.mxu0 %v3757
        %v3869 = vpop.f32.mrf.mxu0
        %v3870 = vadd.f32 0.0, %v3869
        %3871 = vmatmul.f32.gmra.mxu0 %v3760
        %v3872 = vpop.f32.mrf.mxu0
        %v3873 = vadd.f32 0.0, %v3872
        %3874 = vmatmul.f32.gmra.mxu0 %v3763
        %v3875 = vpop.f32.mrf.mxu0
        %v3876 = vadd.f32 0.0, %v3875
        %3877 = vmatmul.f32.gmra.mxu0 %v3766
        %v3878 = vpop.f32.mrf.mxu0
        %v3879 = vadd.f32 0.0, %v3878
        %3880 = vmatmul.f32.gmra.mxu0 %v3769
        %v3881 = vpop.f32.mrf.mxu0
        %v3882 = vadd.f32 0.0, %v3881
        %3883 = vmatmul.f32.gmra.mxu0 %v3772
        %v3884 = vpop.f32.mrf.mxu0
        %v3885 = vadd.f32 0.0, %v3884
        %3886 = vmatmul.f32.gmra.mxu0 %v3775
        %v3887 = vpop.f32.mrf.mxu0
        %v3888 = vadd.f32 0.0, %v3887
        %3889 = vmatmul.f32.gmra.mxu0 %v3778
        %v3890 = vpop.f32.mrf.mxu0
        %v3891 = vadd.f32 0.0, %v3890
        %3892 = vmatmul.f32.gmra.mxu0 %v3781
        %v3893 = vpop.f32.mrf.mxu0
        %v3894 = vadd.f32 0.0, %v3893
        %3895 = vmatmul.f32.gmra.mxu0 %v3784
        %v3896 = vpop.f32.mrf.mxu0
        %v3897 = vadd.f32 0.0, %v3896
        %3898 = vmatmul.f32.gmra.mxu0 %v3787
        %v3899 = vpop.f32.mrf.mxu0
        %v3900 = vadd.f32 0.0, %v3899
        %3901 = vmatmul.f32.gmra.mxu0 %v3790
        %v3902 = vpop.f32.mrf.mxu0
        %v3903 = vadd.f32 0.0, %v3902
        %3904 = vmatmul.f32.gmra.mxu0 %v3793
        %v3905 = vpop.f32.mrf.mxu0
        %v3906 = vadd.f32 0.0, %v3905
        %3907 = vmatmul.f32.gmra.mxu0 %v3796
        %v3908 = vpop.f32.mrf.mxu0
        %v3909 = vadd.f32 0.0, %v3908
        %3910 = vmatmul.f32.gmra.mxu0 %v3799
        %v3911 = vpop.f32.mrf.mxu0
        %v3912 = vadd.f32 0.0, %v3911
        %3913 = vmatmul.f32.gmra.mxu0 %v3802
        %v3914 = vpop.f32.mrf.mxu0
        %v3915 = vadd.f32 0.0, %v3914
        %3916 = vmatmul.f32.gmra.mxu0 %v3805
        %v3917 = vpop.f32.mrf.mxu0
        %v3918 = vadd.f32 0.0, %v3917
        %3919 = vmatmul.f32.gmra.mxu0 %v3808
        %v3920 = vpop.f32.mrf.mxu0
        %v3921 = vadd.f32 0.0, %v3920
        %3922 = vmatmul.f32.gmra.mxu0 %v3811
        %v3923 = vpop.f32.mrf.mxu0
        %v3924 = vadd.f32 0.0, %v3923
        %3925 = vmatmul.f32.gmra.mxu0 %v3814
        %v3926 = vpop.f32.mrf.mxu0
        %v3927 = vadd.f32 0.0, %v3926
        %3928 = vmatmul.f32.gmra.mxu0 %v3817
        %v3929 = vpop.f32.mrf.mxu0
        %v3930 = vadd.f32 0.0, %v3929
        %3931 = vmatmul.f32.gmra.mxu0 %v3820
        %v3932 = vpop.f32.mrf.mxu0
        %v3933 = vadd.f32 0.0, %v3932
        %3934 = vmatmul.f32.gmra.mxu0 %v3823
        %v3935 = vpop.f32.mrf.mxu0
        %v3936 = vadd.f32 0.0, %v3935
        %3937 = vmatmul.f32.gmra.mxu0 %v3826
        %v3938 = vpop.f32.mrf.mxu0
        %v3939 = vadd.f32 0.0, %v3938
        %3940 = vmatmul.f32.gmra.mxu0 %v3829
        %v3941 = vpop.f32.mrf.mxu0
        %v3942 = vadd.f32 0.0, %v3941
        %3943 = vmatmul.f32.gmra.mxu0 %v3832
        %v3944 = vpop.f32.mrf.mxu0
        %v3945 = vadd.f32 0.0, %v3944
        %3946 = vdwg.mxu0
        %v3947 = vadd.f32 %v3672, %v3852
        %v3948 = vadd.f32 %v3673, %v3855
        %v3949 = vadd.f32 %v3674, %v3858
        %v3950 = vadd.f32 %v3675, %v3861
        %v3951 = vadd.f32 %v3676, %v3864
        %v3952 = vadd.f32 %v3677, %v3867
        %v3953 = vadd.f32 %v3678, %v3870
        %v3954 = vadd.f32 %v3679, %v3873
        %v3955 = vadd.f32 %v3680, %v3876
        %v3956 = vadd.f32 %v3681, %v3879
        %v3957 = vadd.f32 %v3682, %v3882
        %v3958 = vadd.f32 %v3683, %v3885
        %v3959 = vadd.f32 %v3684, %v3888
        %v3960 = vadd.f32 %v3685, %v3891
        %v3961 = vadd.f32 %v3686, %v3894
        %v3962 = vadd.f32 %v3687, %v3897
        %v3963 = vadd.f32 %v3688, %v3900
        %v3964 = vadd.f32 %v3689, %v3903
        %v3965 = vadd.f32 %v3690, %v3906
        %v3966 = vadd.f32 %v3691, %v3909
        %v3967 = vadd.f32 %v3692, %v3912
        %v3968 = vadd.f32 %v3693, %v3915
        %v3969 = vadd.f32 %v3694, %v3918
        %v3970 = vadd.f32 %v3695, %v3921
        %v3971 = vadd.f32 %v3696, %v3924
        %v3972 = vadd.f32 %v3697, %v3927
        %v3973 = vadd.f32 %v3698, %v3930
        %v3974 = vadd.f32 %v3699, %v3933
        %v3975 = vadd.f32 %v3700, %v3936
        %v3976 = vadd.f32 %v3701, %v3939
        %v3977 = vadd.f32 %v3702, %v3942
        %v3978 = vadd.f32 %v3703, %v3945
        %v3979 = vld [vmem:[%s2910 + $0x1] sm:$0xff]
        %v3980 = vld [vmem:[%s2910 + $0x9] sm:$0xff]
        %v3981 = vld [vmem:[%s2910 + $0x19] sm:$0xff]
        %v3982 = vld [vmem:[%s2910 + $0x21] sm:$0xff]
        %v3983 = vld [vmem:[%s2910 + $0x31] sm:$0xff]
        %v3984 = vld [vmem:[%s2910 + $0x39] sm:$0xff]
        %v3985 = vld [vmem:[%s2910 + $0x49] sm:$0xff]
        %v3986 = vld [vmem:[%s2910 + $0x51] sm:$0xff]
        %v3987 = vld [vmem:[%s2910 + $0x61] sm:$0xff]
        %v3988 = vld [vmem:[%s2910 + $0x69] sm:$0xff]
        %v3989 = vld [vmem:[%s2910 + $0x79] sm:$0xff]
        %v3990 = vld [vmem:[%s2910 + $0x81] sm:$0xff]
        %v3991 = vld [vmem:[%s2910 + $0x91] sm:$0xff]
        %v3992 = vld [vmem:[%s2910 + $0x99] sm:$0xff]
        %v3993 = vld [vmem:[%s2910 + $0xa9] sm:$0xff]
        %v3994 = vld [vmem:[%s2910 + $0xb1] sm:$0xff]
        %v3995 = vld [vmem:[%s2910 + $0xc1] sm:$0xff]
        %v3996 = vld [vmem:[%s2910 + $0xc9] sm:$0xff]
        %v3997 = vld [vmem:[%s2910 + $0xd9] sm:$0xff]
        %v3998 = vld [vmem:[%s2910 + $0xe1] sm:$0xff]
        %v3999 = vld [vmem:[%s2910 + $0xf1] sm:$0xff]
        %v4000 = vld [vmem:[%s2910 + $0xf9] sm:$0xff]
        %v4001 = vld [vmem:[%s2910 + $0x109] sm:$0xff]
        %v4002 = vld [vmem:[%s2910 + $0x111] sm:$0xff]
        %v4003 = vld [vmem:[%s2910 + $0x121] sm:$0xff]
        %v4004 = vld [vmem:[%s2910 + $0x129] sm:$0xff]
        %v4005 = vld [vmem:[%s2910 + $0x139] sm:$0xff]
        %v4006 = vld [vmem:[%s2910 + $0x141] sm:$0xff]
        %v4007 = vld [vmem:[%s2910 + $0x151] sm:$0xff]
        %v4008 = vld [vmem:[%s2910 + $0x159] sm:$0xff]
        %v4009 = vld [vmem:[%s2910 + $0x169] sm:$0xff]
        %v4010 = vld [vmem:[%s2910 + $0x171] sm:$0xff]
        %s4011 = scalar_lea.vmem %s3, 32
        %v4012 = vld [vmem:[%s4011] sm:$0xff]
        %v4014 = vsel %vm2911, %v3979, 0
        %v4017 = vsel %vm2911, %v3980, 0
        %v4020 = vsel %vm2911, %v3981, 0
        %v4023 = vsel %vm2911, %v3982, 0
        %v4026 = vsel %vm2911, %v3983, 0
        %v4029 = vsel %vm2911, %v3984, 0
        %v4032 = vsel %vm2911, %v3985, 0
        %v4035 = vsel %vm2911, %v3986, 0
        %v4038 = vsel %vm2911, %v3987, 0
        %v4041 = vsel %vm2911, %v3988, 0
        %v4044 = vsel %vm2911, %v3989, 0
        %v4047 = vsel %vm2911, %v3990, 0
        %v4050 = vsel %vm2911, %v3991, 0
        %v4053 = vsel %vm2911, %v3992, 0
        %v4056 = vsel %vm2911, %v3993, 0
        %v4059 = vsel %vm2911, %v3994, 0
        %v4062 = vsel %vm2911, %v3995, 0
        %v4065 = vsel %vm2911, %v3996, 0
        %v4068 = vsel %vm2911, %v3997, 0
        %v4071 = vsel %vm2911, %v3998, 0
        %v4074 = vsel %vm2911, %v3999, 0
        %v4077 = vsel %vm2911, %v4000, 0
        %v4080 = vsel %vm2911, %v4001, 0
        %v4083 = vsel %vm2911, %v4002, 0
        %v4086 = vsel %vm2911, %v4003, 0
        %v4089 = vsel %vm2911, %v4004, 0
        %v4092 = vsel %vm2911, %v4005, 0
        %v4095 = vsel %vm2911, %v4006, 0
        %v4098 = vsel %vm2911, %v4007, 0
        %v4101 = vsel %vm2911, %v4008, 0
        %v4104 = vsel %vm2911, %v4009, 0
        %v4107 = vsel %vm2911, %v4010, 0
        %4109 = vmatpush.msra.mxu0 0.0
        %4110 = vmatpush.msra.mxu0 0.0
        %4111 = vmatpush.msra.mxu0 0.0
        %4112 = vmatpush.msra.mxu0 0.0
        %4113 = vmatpush.msra.mxu0 0.0
        %4114 = vmatpush.msra.mxu0 0.0
        %4115 = vmatpush.msra.mxu0 0.0
        %4116 = vmatpush.msra.mxu0 0.0
        %4117 = vmatpush.msra.mxu0 0.0
        %4118 = vmatpush.msra.mxu0 0.0
        %4119 = vmatpush.msra.mxu0 0.0
        %4120 = vmatpush.msra.mxu0 0.0
        %4121 = vmatpush.msra.mxu0 0.0
        %4122 = vmatpush.msra.mxu0 0.0
        %4123 = vmatpush.msra.mxu0 0.0
        %4124 = vmatpush.msra.mxu0 %v4012
        %4125 = vmatmul.f32.gmra.mxu0 %v4014
        %v4126 = vpop.f32.mrf.mxu0
        %v4127 = vadd.f32 0.0, %v4126
        %4128 = vmatmul.f32.gmra.mxu0 %v4017
        %v4129 = vpop.f32.mrf.mxu0
        %v4130 = vadd.f32 0.0, %v4129
        %4131 = vmatmul.f32.gmra.mxu0 %v4020
        %v4132 = vpop.f32.mrf.mxu0
        %v4133 = vadd.f32 0.0, %v4132
        %4134 = vmatmul.f32.gmra.mxu0 %v4023
        %v4135 = vpop.f32.mrf.mxu0
        %v4136 = vadd.f32 0.0, %v4135
        %4137 = vmatmul.f32.gmra.mxu0 %v4026
        %v4138 = vpop.f32.mrf.mxu0
        %v4139 = vadd.f32 0.0, %v4138
        %4140 = vmatmul.f32.gmra.mxu0 %v4029
        %v4141 = vpop.f32.mrf.mxu0
        %v4142 = vadd.f32 0.0, %v4141
        %4143 = vmatmul.f32.gmra.mxu0 %v4032
        %v4144 = vpop.f32.mrf.mxu0
        %v4145 = vadd.f32 0.0, %v4144
        %4146 = vmatmul.f32.gmra.mxu0 %v4035
        %v4147 = vpop.f32.mrf.mxu0
        %v4148 = vadd.f32 0.0, %v4147
        %4149 = vmatmul.f32.gmra.mxu0 %v4038
        %v4150 = vpop.f32.mrf.mxu0
        %v4151 = vadd.f32 0.0, %v4150
        %4152 = vmatmul.f32.gmra.mxu0 %v4041
        %v4153 = vpop.f32.mrf.mxu0
        %v4154 = vadd.f32 0.0, %v4153
        %4155 = vmatmul.f32.gmra.mxu0 %v4044
        %v4156 = vpop.f32.mrf.mxu0
        %v4157 = vadd.f32 0.0, %v4156
        %4158 = vmatmul.f32.gmra.mxu0 %v4047
        %v4159 = vpop.f32.mrf.mxu0
        %v4160 = vadd.f32 0.0, %v4159
        %4161 = vmatmul.f32.gmra.mxu0 %v4050
        %v4162 = vpop.f32.mrf.mxu0
        %v4163 = vadd.f32 0.0, %v4162
        %4164 = vmatmul.f32.gmra.mxu0 %v4053
        %v4165 = vpop.f32.mrf.mxu0
        %v4166 = vadd.f32 0.0, %v4165
        %4167 = vmatmul.f32.gmra.mxu0 %v4056
        %v4168 = vpop.f32.mrf.mxu0
        %v4169 = vadd.f32 0.0, %v4168
        %4170 = vmatmul.f32.gmra.mxu0 %v4059
        %v4171 = vpop.f32.mrf.mxu0
        %v4172 = vadd.f32 0.0, %v4171
        %4173 = vmatmul.f32.gmra.mxu0 %v4062
        %v4174 = vpop.f32.mrf.mxu0
        %v4175 = vadd.f32 0.0, %v4174
        %4176 = vmatmul.f32.gmra.mxu0 %v4065
        %v4177 = vpop.f32.mrf.mxu0
        %v4178 = vadd.f32 0.0, %v4177
        %4179 = vmatmul.f32.gmra.mxu0 %v4068
        %v4180 = vpop.f32.mrf.mxu0
        %v4181 = vadd.f32 0.0, %v4180
        %4182 = vmatmul.f32.gmra.mxu0 %v4071
        %v4183 = vpop.f32.mrf.mxu0
        %v4184 = vadd.f32 0.0, %v4183
        %4185 = vmatmul.f32.gmra.mxu0 %v4074
        %v4186 = vpop.f32.mrf.mxu0
        %v4187 = vadd.f32 0.0, %v4186
        %4188 = vmatmul.f32.gmra.mxu0 %v4077
        %v4189 = vpop.f32.mrf.mxu0
        %v4190 = vadd.f32 0.0, %v4189
        %4191 = vmatmul.f32.gmra.mxu0 %v4080
        %v4192 = vpop.f32.mrf.mxu0
        %v4193 = vadd.f32 0.0, %v4192
        %4194 = vmatmul.f32.gmra.mxu0 %v4083
        %v4195 = vpop.f32.mrf.mxu0
        %v4196 = vadd.f32 0.0, %v4195
        %4197 = vmatmul.f32.gmra.mxu0 %v4086
        %v4198 = vpop.f32.mrf.mxu0
        %v4199 = vadd.f32 0.0, %v4198
        %4200 = vmatmul.f32.gmra.mxu0 %v4089
        %v4201 = vpop.f32.mrf.mxu0
        %v4202 = vadd.f32 0.0, %v4201
        %4203 = vmatmul.f32.gmra.mxu0 %v4092
        %v4204 = vpop.f32.mrf.mxu0
        %v4205 = vadd.f32 0.0, %v4204
        %4206 = vmatmul.f32.gmra.mxu0 %v4095
        %v4207 = vpop.f32.mrf.mxu0
        %v4208 = vadd.f32 0.0, %v4207
        %4209 = vmatmul.f32.gmra.mxu0 %v4098
        %v4210 = vpop.f32.mrf.mxu0
        %v4211 = vadd.f32 0.0, %v4210
        %4212 = vmatmul.f32.gmra.mxu0 %v4101
        %v4213 = vpop.f32.mrf.mxu0
        %v4214 = vadd.f32 0.0, %v4213
        %4215 = vmatmul.f32.gmra.mxu0 %v4104
        %v4216 = vpop.f32.mrf.mxu0
        %v4217 = vadd.f32 0.0, %v4216
        %4218 = vmatmul.f32.gmra.mxu0 %v4107
        %v4219 = vpop.f32.mrf.mxu0
        %v4220 = vadd.f32 0.0, %v4219
        %4221 = vdwg.mxu0
        %v4222 = vadd.f32 %v3947, %v4127
        %v4223 = vadd.f32 %v3948, %v4130
        %v4224 = vadd.f32 %v3949, %v4133
        %v4225 = vadd.f32 %v3950, %v4136
        %v4226 = vadd.f32 %v3951, %v4139
        %v4227 = vadd.f32 %v3952, %v4142
        %v4228 = vadd.f32 %v3953, %v4145
        %v4229 = vadd.f32 %v3954, %v4148
        %v4230 = vadd.f32 %v3955, %v4151
        %v4231 = vadd.f32 %v3956, %v4154
        %v4232 = vadd.f32 %v3957, %v4157
        %v4233 = vadd.f32 %v3958, %v4160
        %v4234 = vadd.f32 %v3959, %v4163
        %v4235 = vadd.f32 %v3960, %v4166
        %v4236 = vadd.f32 %v3961, %v4169
        %v4237 = vadd.f32 %v3962, %v4172
        %v4238 = vadd.f32 %v3963, %v4175
        %v4239 = vadd.f32 %v3964, %v4178
        %v4240 = vadd.f32 %v3965, %v4181
        %v4241 = vadd.f32 %v3966, %v4184
        %v4242 = vadd.f32 %v3967, %v4187
        %v4243 = vadd.f32 %v3968, %v4190
        %v4244 = vadd.f32 %v3969, %v4193
        %v4245 = vadd.f32 %v3970, %v4196
        %v4246 = vadd.f32 %v3971, %v4199
        %v4247 = vadd.f32 %v3972, %v4202
        %v4248 = vadd.f32 %v3973, %v4205
        %v4249 = vadd.f32 %v3974, %v4208
        %v4250 = vadd.f32 %v3975, %v4211
        %v4251 = vadd.f32 %v3976, %v4214
        %v4252 = vadd.f32 %v3977, %v4217
        %v4253 = vadd.f32 %v3978, %v4220
        %v4254 = vld [vmem:[%s2910 + $0x2] sm:$0xff]
        %v4255 = vld [vmem:[%s2910 + $0xa] sm:$0xff]
        %v4256 = vld [vmem:[%s2910 + $0x1a] sm:$0xff]
        %v4257 = vld [vmem:[%s2910 + $0x22] sm:$0xff]
        %v4258 = vld [vmem:[%s2910 + $0x32] sm:$0xff]
        %v4259 = vld [vmem:[%s2910 + $0x3a] sm:$0xff]
        %v4260 = vld [vmem:[%s2910 + $0x4a] sm:$0xff]
        %v4261 = vld [vmem:[%s2910 + $0x52] sm:$0xff]
        %v4262 = vld [vmem:[%s2910 + $0x62] sm:$0xff]
        %v4263 = vld [vmem:[%s2910 + $0x6a] sm:$0xff]
        %v4264 = vld [vmem:[%s2910 + $0x7a] sm:$0xff]
        %v4265 = vld [vmem:[%s2910 + $0x82] sm:$0xff]
        %v4266 = vld [vmem:[%s2910 + $0x92] sm:$0xff]
        %v4267 = vld [vmem:[%s2910 + $0x9a] sm:$0xff]
        %v4268 = vld [vmem:[%s2910 + $0xaa] sm:$0xff]
        %v4269 = vld [vmem:[%s2910 + $0xb2] sm:$0xff]
        %v4270 = vld [vmem:[%s2910 + $0xc2] sm:$0xff]
        %v4271 = vld [vmem:[%s2910 + $0xca] sm:$0xff]
        %v4272 = vld [vmem:[%s2910 + $0xda] sm:$0xff]
        %v4273 = vld [vmem:[%s2910 + $0xe2] sm:$0xff]
        %v4274 = vld [vmem:[%s2910 + $0xf2] sm:$0xff]
        %v4275 = vld [vmem:[%s2910 + $0xfa] sm:$0xff]
        %v4276 = vld [vmem:[%s2910 + $0x10a] sm:$0xff]
        %v4277 = vld [vmem:[%s2910 + $0x112] sm:$0xff]
        %v4278 = vld [vmem:[%s2910 + $0x122] sm:$0xff]
        %v4279 = vld [vmem:[%s2910 + $0x12a] sm:$0xff]
        %v4280 = vld [vmem:[%s2910 + $0x13a] sm:$0xff]
        %v4281 = vld [vmem:[%s2910 + $0x142] sm:$0xff]
        %v4282 = vld [vmem:[%s2910 + $0x152] sm:$0xff]
        %v4283 = vld [vmem:[%s2910 + $0x15a] sm:$0xff]
        %v4284 = vld [vmem:[%s2910 + $0x16a] sm:$0xff]
        %v4285 = vld [vmem:[%s2910 + $0x172] sm:$0xff]
        %s4286 = scalar_lea.vmem %s3, 40
        %v4287 = vld [vmem:[%s4286] sm:$0xff]
        %v4289 = vsel %vm2911, %v4254, 0
        %v4292 = vsel %vm2911, %v4255, 0
        %v4295 = vsel %vm2911, %v4256, 0
        %v4298 = vsel %vm2911, %v4257, 0
        %v4301 = vsel %vm2911, %v4258, 0
        %v4304 = vsel %vm2911, %v4259, 0
        %v4307 = vsel %vm2911, %v4260, 0
        %v4310 = vsel %vm2911, %v4261, 0
        %v4313 = vsel %vm2911, %v4262, 0
        %v4316 = vsel %vm2911, %v4263, 0
        %v4319 = vsel %vm2911, %v4264, 0
        %v4322 = vsel %vm2911, %v4265, 0
        %v4325 = vsel %vm2911, %v4266, 0
        %v4328 = vsel %vm2911, %v4267, 0
        %v4331 = vsel %vm2911, %v4268, 0
        %v4334 = vsel %vm2911, %v4269, 0
        %v4337 = vsel %vm2911, %v4270, 0
        %v4340 = vsel %vm2911, %v4271, 0
        %v4343 = vsel %vm2911, %v4272, 0
        %v4346 = vsel %vm2911, %v4273, 0
        %v4349 = vsel %vm2911, %v4274, 0
        %v4352 = vsel %vm2911, %v4275, 0
        %v4355 = vsel %vm2911, %v4276, 0
        %v4358 = vsel %vm2911, %v4277, 0
        %v4361 = vsel %vm2911, %v4278, 0
        %v4364 = vsel %vm2911, %v4279, 0
        %v4367 = vsel %vm2911, %v4280, 0
        %v4370 = vsel %vm2911, %v4281, 0
        %v4373 = vsel %vm2911, %v4282, 0
        %v4376 = vsel %vm2911, %v4283, 0
        %v4379 = vsel %vm2911, %v4284, 0
        %v4382 = vsel %vm2911, %v4285, 0
        %4384 = vmatpush.msra.mxu0 0.0
        %4385 = vmatpush.msra.mxu0 0.0
        %4386 = vmatpush.msra.mxu0 0.0
        %4387 = vmatpush.msra.mxu0 0.0
        %4388 = vmatpush.msra.mxu0 0.0
        %4389 = vmatpush.msra.mxu0 0.0
        %4390 = vmatpush.msra.mxu0 0.0
        %4391 = vmatpush.msra.mxu0 0.0
        %4392 = vmatpush.msra.mxu0 0.0
        %4393 = vmatpush.msra.mxu0 0.0
        %4394 = vmatpush.msra.mxu0 0.0
        %4395 = vmatpush.msra.mxu0 0.0
        %4396 = vmatpush.msra.mxu0 0.0
        %4397 = vmatpush.msra.mxu0 0.0
        %4398 = vmatpush.msra.mxu0 0.0
        %4399 = vmatpush.msra.mxu0 %v4287
        %4400 = vmatmul.f32.gmra.mxu0 %v4289
        %v4401 = vpop.f32.mrf.mxu0
        %v4402 = vadd.f32 0.0, %v4401
        %4403 = vmatmul.f32.gmra.mxu0 %v4292
        %v4404 = vpop.f32.mrf.mxu0
        %v4405 = vadd.f32 0.0, %v4404
        %4406 = vmatmul.f32.gmra.mxu0 %v4295
        %v4407 = vpop.f32.mrf.mxu0
        %v4408 = vadd.f32 0.0, %v4407
        %4409 = vmatmul.f32.gmra.mxu0 %v4298
        %v4410 = vpop.f32.mrf.mxu0
        %v4411 = vadd.f32 0.0, %v4410
        %4412 = vmatmul.f32.gmra.mxu0 %v4301
        %v4413 = vpop.f32.mrf.mxu0
        %v4414 = vadd.f32 0.0, %v4413
        %4415 = vmatmul.f32.gmra.mxu0 %v4304
        %v4416 = vpop.f32.mrf.mxu0
        %v4417 = vadd.f32 0.0, %v4416
        %4418 = vmatmul.f32.gmra.mxu0 %v4307
        %v4419 = vpop.f32.mrf.mxu0
        %v4420 = vadd.f32 0.0, %v4419
        %4421 = vmatmul.f32.gmra.mxu0 %v4310
        %v4422 = vpop.f32.mrf.mxu0
        %v4423 = vadd.f32 0.0, %v4422
        %4424 = vmatmul.f32.gmra.mxu0 %v4313
        %v4425 = vpop.f32.mrf.mxu0
        %v4426 = vadd.f32 0.0, %v4425
        %4427 = vmatmul.f32.gmra.mxu0 %v4316
        %v4428 = vpop.f32.mrf.mxu0
        %v4429 = vadd.f32 0.0, %v4428
        %4430 = vmatmul.f32.gmra.mxu0 %v4319
        %v4431 = vpop.f32.mrf.mxu0
        %v4432 = vadd.f32 0.0, %v4431
        %4433 = vmatmul.f32.gmra.mxu0 %v4322
        %v4434 = vpop.f32.mrf.mxu0
        %v4435 = vadd.f32 0.0, %v4434
        %4436 = vmatmul.f32.gmra.mxu0 %v4325
        %v4437 = vpop.f32.mrf.mxu0
        %v4438 = vadd.f32 0.0, %v4437
        %4439 = vmatmul.f32.gmra.mxu0 %v4328
        %v4440 = vpop.f32.mrf.mxu0
        %v4441 = vadd.f32 0.0, %v4440
        %4442 = vmatmul.f32.gmra.mxu0 %v4331
        %v4443 = vpop.f32.mrf.mxu0
        %v4444 = vadd.f32 0.0, %v4443
        %4445 = vmatmul.f32.gmra.mxu0 %v4334
        %v4446 = vpop.f32.mrf.mxu0
        %v4447 = vadd.f32 0.0, %v4446
        %4448 = vmatmul.f32.gmra.mxu0 %v4337
        %v4449 = vpop.f32.mrf.mxu0
        %v4450 = vadd.f32 0.0, %v4449
        %4451 = vmatmul.f32.gmra.mxu0 %v4340
        %v4452 = vpop.f32.mrf.mxu0
        %v4453 = vadd.f32 0.0, %v4452
        %4454 = vmatmul.f32.gmra.mxu0 %v4343
        %v4455 = vpop.f32.mrf.mxu0
        %v4456 = vadd.f32 0.0, %v4455
        %4457 = vmatmul.f32.gmra.mxu0 %v4346
        %v4458 = vpop.f32.mrf.mxu0
        %v4459 = vadd.f32 0.0, %v4458
        %4460 = vmatmul.f32.gmra.mxu0 %v4349
        %v4461 = vpop.f32.mrf.mxu0
        %v4462 = vadd.f32 0.0, %v4461
        %4463 = vmatmul.f32.gmra.mxu0 %v4352
        %v4464 = vpop.f32.mrf.mxu0
        %v4465 = vadd.f32 0.0, %v4464
        %4466 = vmatmul.f32.gmra.mxu0 %v4355
        %v4467 = vpop.f32.mrf.mxu0
        %v4468 = vadd.f32 0.0, %v4467
        %4469 = vmatmul.f32.gmra.mxu0 %v4358
        %v4470 = vpop.f32.mrf.mxu0
        %v4471 = vadd.f32 0.0, %v4470
        %4472 = vmatmul.f32.gmra.mxu0 %v4361
        %v4473 = vpop.f32.mrf.mxu0
        %v4474 = vadd.f32 0.0, %v4473
        %4475 = vmatmul.f32.gmra.mxu0 %v4364
        %v4476 = vpop.f32.mrf.mxu0
        %v4477 = vadd.f32 0.0, %v4476
        %4478 = vmatmul.f32.gmra.mxu0 %v4367
        %v4479 = vpop.f32.mrf.mxu0
        %v4480 = vadd.f32 0.0, %v4479
        %4481 = vmatmul.f32.gmra.mxu0 %v4370
        %v4482 = vpop.f32.mrf.mxu0
        %v4483 = vadd.f32 0.0, %v4482
        %4484 = vmatmul.f32.gmra.mxu0 %v4373
        %v4485 = vpop.f32.mrf.mxu0
        %v4486 = vadd.f32 0.0, %v4485
        %4487 = vmatmul.f32.gmra.mxu0 %v4376
        %v4488 = vpop.f32.mrf.mxu0
        %v4489 = vadd.f32 0.0, %v4488
        %4490 = vmatmul.f32.gmra.mxu0 %v4379
        %v4491 = vpop.f32.mrf.mxu0
        %v4492 = vadd.f32 0.0, %v4491
        %4493 = vmatmul.f32.gmra.mxu0 %v4382
        %v4494 = vpop.f32.mrf.mxu0
        %v4495 = vadd.f32 0.0, %v4494
        %4496 = vdwg.mxu0
        %v4497 = vadd.f32 %v4222, %v4402
        %v4498 = vadd.f32 %v4223, %v4405
        %v4499 = vadd.f32 %v4224, %v4408
        %v4500 = vadd.f32 %v4225, %v4411
        %v4501 = vadd.f32 %v4226, %v4414
        %v4502 = vadd.f32 %v4227, %v4417
        %v4503 = vadd.f32 %v4228, %v4420
        %v4504 = vadd.f32 %v4229, %v4423
        %v4505 = vadd.f32 %v4230, %v4426
        %v4506 = vadd.f32 %v4231, %v4429
        %v4507 = vadd.f32 %v4232, %v4432
        %v4508 = vadd.f32 %v4233, %v4435
        %v4509 = vadd.f32 %v4234, %v4438
        %v4510 = vadd.f32 %v4235, %v4441
        %v4511 = vadd.f32 %v4236, %v4444
        %v4512 = vadd.f32 %v4237, %v4447
        %v4513 = vadd.f32 %v4238, %v4450
        %v4514 = vadd.f32 %v4239, %v4453
        %v4515 = vadd.f32 %v4240, %v4456
        %v4516 = vadd.f32 %v4241, %v4459
        %v4517 = vadd.f32 %v4242, %v4462
        %v4518 = vadd.f32 %v4243, %v4465
        %v4519 = vadd.f32 %v4244, %v4468
        %v4520 = vadd.f32 %v4245, %v4471
        %v4521 = vadd.f32 %v4246, %v4474
        %v4522 = vadd.f32 %v4247, %v4477
        %v4523 = vadd.f32 %v4248, %v4480
        %v4524 = vadd.f32 %v4249, %v4483
        %v4525 = vadd.f32 %v4250, %v4486
        %v4526 = vadd.f32 %v4251, %v4489
        %v4527 = vadd.f32 %v4252, %v4492
        %v4528 = vadd.f32 %v4253, %v4495
        %s4529 = scalar_lea.vmem [#allocation3], 48
        %v4530 = vld [vmem:[%s4529] sm:$0xff]
        %v4531 = vld [vmem:[%s4529 + $0x8] sm:$0xff]
        %v4532 = vld [vmem:[%s4529 + $0x18] sm:$0xff]
        %v4533 = vld [vmem:[%s4529 + $0x20] sm:$0xff]
        %v4534 = vld [vmem:[%s4529 + $0x30] sm:$0xff]
        %v4535 = vld [vmem:[%s4529 + $0x38] sm:$0xff]
        %v4536 = vld [vmem:[%s4529 + $0x48] sm:$0xff]
        %v4537 = vld [vmem:[%s4529 + $0x50] sm:$0xff]
        %v4538 = vld [vmem:[%s4529 + $0x60] sm:$0xff]
        %v4539 = vld [vmem:[%s4529 + $0x68] sm:$0xff]
        %v4540 = vld [vmem:[%s4529 + $0x78] sm:$0xff]
        %v4541 = vld [vmem:[%s4529 + $0x80] sm:$0xff]
        %v4542 = vld [vmem:[%s4529 + $0x90] sm:$0xff]
        %v4543 = vld [vmem:[%s4529 + $0x98] sm:$0xff]
        %v4544 = vld [vmem:[%s4529 + $0xa8] sm:$0xff]
        %v4545 = vld [vmem:[%s4529 + $0xb0] sm:$0xff]
        %v4546 = vld [vmem:[%s4529 + $0xc0] sm:$0xff]
        %v4547 = vld [vmem:[%s4529 + $0xc8] sm:$0xff]
        %v4548 = vld [vmem:[%s4529 + $0xd8] sm:$0xff]
        %v4549 = vld [vmem:[%s4529 + $0xe0] sm:$0xff]
        %v4550 = vld [vmem:[%s4529 + $0xf0] sm:$0xff]
        %v4551 = vld [vmem:[%s4529 + $0xf8] sm:$0xff]
        %v4552 = vld [vmem:[%s4529 + $0x108] sm:$0xff]
        %v4553 = vld [vmem:[%s4529 + $0x110] sm:$0xff]
        %v4554 = vld [vmem:[%s4529 + $0x120] sm:$0xff]
        %v4555 = vld [vmem:[%s4529 + $0x128] sm:$0xff]
        %v4556 = vld [vmem:[%s4529 + $0x138] sm:$0xff]
        %v4557 = vld [vmem:[%s4529 + $0x140] sm:$0xff]
        %v4558 = vld [vmem:[%s4529 + $0x150] sm:$0xff]
        %v4559 = vld [vmem:[%s4529 + $0x158] sm:$0xff]
        %v4560 = vld [vmem:[%s4529 + $0x168] sm:$0xff]
        %v4561 = vld [vmem:[%s4529 + $0x170] sm:$0xff]
        %s4562 = scalar_lea.vmem %s3, 48
        %v4563 = vld [vmem:[%s4562] sm:$0xff]
        %v4565 = vsel %vm2911, %v4530, 0
        %v4568 = vsel %vm2911, %v4531, 0
        %v4571 = vsel %vm2911, %v4532, 0
        %v4574 = vsel %vm2911, %v4533, 0
        %v4577 = vsel %vm2911, %v4534, 0
        %v4580 = vsel %vm2911, %v4535, 0
        %v4583 = vsel %vm2911, %v4536, 0
        %v4586 = vsel %vm2911, %v4537, 0
        %v4589 = vsel %vm2911, %v4538, 0
        %v4592 = vsel %vm2911, %v4539, 0
        %v4595 = vsel %vm2911, %v4540, 0
        %v4598 = vsel %vm2911, %v4541, 0
        %v4601 = vsel %vm2911, %v4542, 0
        %v4604 = vsel %vm2911, %v4543, 0
        %v4607 = vsel %vm2911, %v4544, 0
        %v4610 = vsel %vm2911, %v4545, 0
        %v4613 = vsel %vm2911, %v4546, 0
        %v4616 = vsel %vm2911, %v4547, 0
        %v4619 = vsel %vm2911, %v4548, 0
        %v4622 = vsel %vm2911, %v4549, 0
        %v4625 = vsel %vm2911, %v4550, 0
        %v4628 = vsel %vm2911, %v4551, 0
        %v4631 = vsel %vm2911, %v4552, 0
        %v4634 = vsel %vm2911, %v4553, 0
        %v4637 = vsel %vm2911, %v4554, 0
        %v4640 = vsel %vm2911, %v4555, 0
        %v4643 = vsel %vm2911, %v4556, 0
        %v4646 = vsel %vm2911, %v4557, 0
        %v4649 = vsel %vm2911, %v4558, 0
        %v4652 = vsel %vm2911, %v4559, 0
        %v4655 = vsel %vm2911, %v4560, 0
        %v4658 = vsel %vm2911, %v4561, 0
        %4660 = vmatpush.msra.mxu0 0.0
        %4661 = vmatpush.msra.mxu0 0.0
        %4662 = vmatpush.msra.mxu0 0.0
        %4663 = vmatpush.msra.mxu0 0.0
        %4664 = vmatpush.msra.mxu0 0.0
        %4665 = vmatpush.msra.mxu0 0.0
        %4666 = vmatpush.msra.mxu0 0.0
        %4667 = vmatpush.msra.mxu0 0.0
        %4668 = vmatpush.msra.mxu0 0.0
        %4669 = vmatpush.msra.mxu0 0.0
        %4670 = vmatpush.msra.mxu0 0.0
        %4671 = vmatpush.msra.mxu0 0.0
        %4672 = vmatpush.msra.mxu0 0.0
        %4673 = vmatpush.msra.mxu0 0.0
        %4674 = vmatpush.msra.mxu0 0.0
        %4675 = vmatpush.msra.mxu0 %v4563
        %4676 = vmatmul.f32.gmra.mxu0 %v4565
        %v4677 = vpop.f32.mrf.mxu0
        %v4678 = vadd.f32 0.0, %v4677
        %4679 = vmatmul.f32.gmra.mxu0 %v4568
        %v4680 = vpop.f32.mrf.mxu0
        %v4681 = vadd.f32 0.0, %v4680
        %4682 = vmatmul.f32.gmra.mxu0 %v4571
        %v4683 = vpop.f32.mrf.mxu0
        %v4684 = vadd.f32 0.0, %v4683
        %4685 = vmatmul.f32.gmra.mxu0 %v4574
        %v4686 = vpop.f32.mrf.mxu0
        %v4687 = vadd.f32 0.0, %v4686
        %4688 = vmatmul.f32.gmra.mxu0 %v4577
        %v4689 = vpop.f32.mrf.mxu0
        %v4690 = vadd.f32 0.0, %v4689
        %4691 = vmatmul.f32.gmra.mxu0 %v4580
        %v4692 = vpop.f32.mrf.mxu0
        %v4693 = vadd.f32 0.0, %v4692
        %4694 = vmatmul.f32.gmra.mxu0 %v4583
        %v4695 = vpop.f32.mrf.mxu0
        %v4696 = vadd.f32 0.0, %v4695
        %4697 = vmatmul.f32.gmra.mxu0 %v4586
        %v4698 = vpop.f32.mrf.mxu0
        %v4699 = vadd.f32 0.0, %v4698
        %4700 = vmatmul.f32.gmra.mxu0 %v4589
        %v4701 = vpop.f32.mrf.mxu0
        %v4702 = vadd.f32 0.0, %v4701
        %4703 = vmatmul.f32.gmra.mxu0 %v4592
        %v4704 = vpop.f32.mrf.mxu0
        %v4705 = vadd.f32 0.0, %v4704
        %4706 = vmatmul.f32.gmra.mxu0 %v4595
        %v4707 = vpop.f32.mrf.mxu0
        %v4708 = vadd.f32 0.0, %v4707
        %4709 = vmatmul.f32.gmra.mxu0 %v4598
        %v4710 = vpop.f32.mrf.mxu0
        %v4711 = vadd.f32 0.0, %v4710
        %4712 = vmatmul.f32.gmra.mxu0 %v4601
        %v4713 = vpop.f32.mrf.mxu0
        %v4714 = vadd.f32 0.0, %v4713
        %4715 = vmatmul.f32.gmra.mxu0 %v4604
        %v4716 = vpop.f32.mrf.mxu0
        %v4717 = vadd.f32 0.0, %v4716
        %4718 = vmatmul.f32.gmra.mxu0 %v4607
        %v4719 = vpop.f32.mrf.mxu0
        %v4720 = vadd.f32 0.0, %v4719
        %4721 = vmatmul.f32.gmra.mxu0 %v4610
        %v4722 = vpop.f32.mrf.mxu0
        %v4723 = vadd.f32 0.0, %v4722
        %4724 = vmatmul.f32.gmra.mxu0 %v4613
        %v4725 = vpop.f32.mrf.mxu0
        %v4726 = vadd.f32 0.0, %v4725
        %4727 = vmatmul.f32.gmra.mxu0 %v4616
        %v4728 = vpop.f32.mrf.mxu0
        %v4729 = vadd.f32 0.0, %v4728
        %4730 = vmatmul.f32.gmra.mxu0 %v4619
        %v4731 = vpop.f32.mrf.mxu0
        %v4732 = vadd.f32 0.0, %v4731
        %4733 = vmatmul.f32.gmra.mxu0 %v4622
        %v4734 = vpop.f32.mrf.mxu0
        %v4735 = vadd.f32 0.0, %v4734
        %4736 = vmatmul.f32.gmra.mxu0 %v4625
        %v4737 = vpop.f32.mrf.mxu0
        %v4738 = vadd.f32 0.0, %v4737
        %4739 = vmatmul.f32.gmra.mxu0 %v4628
        %v4740 = vpop.f32.mrf.mxu0
        %v4741 = vadd.f32 0.0, %v4740
        %4742 = vmatmul.f32.gmra.mxu0 %v4631
        %v4743 = vpop.f32.mrf.mxu0
        %v4744 = vadd.f32 0.0, %v4743
        %4745 = vmatmul.f32.gmra.mxu0 %v4634
        %v4746 = vpop.f32.mrf.mxu0
        %v4747 = vadd.f32 0.0, %v4746
        %4748 = vmatmul.f32.gmra.mxu0 %v4637
        %v4749 = vpop.f32.mrf.mxu0
        %v4750 = vadd.f32 0.0, %v4749
        %4751 = vmatmul.f32.gmra.mxu0 %v4640
        %v4752 = vpop.f32.mrf.mxu0
        %v4753 = vadd.f32 0.0, %v4752
        %4754 = vmatmul.f32.gmra.mxu0 %v4643
        %v4755 = vpop.f32.mrf.mxu0
        %v4756 = vadd.f32 0.0, %v4755
        %4757 = vmatmul.f32.gmra.mxu0 %v4646
        %v4758 = vpop.f32.mrf.mxu0
        %v4759 = vadd.f32 0.0, %v4758
        %4760 = vmatmul.f32.gmra.mxu0 %v4649
        %v4761 = vpop.f32.mrf.mxu0
        %v4762 = vadd.f32 0.0, %v4761
        %4763 = vmatmul.f32.gmra.mxu0 %v4652
        %v4764 = vpop.f32.mrf.mxu0
        %v4765 = vadd.f32 0.0, %v4764
        %4766 = vmatmul.f32.gmra.mxu0 %v4655
        %v4767 = vpop.f32.mrf.mxu0
        %v4768 = vadd.f32 0.0, %v4767
        %4769 = vmatmul.f32.gmra.mxu0 %v4658
        %v4770 = vpop.f32.mrf.mxu0
        %v4771 = vadd.f32 0.0, %v4770
        %4772 = vdwg.mxu0
        %v4773 = vadd.f32 %v4497, %v4678
        %v4774 = vadd.f32 %v4498, %v4681
        %v4775 = vadd.f32 %v4499, %v4684
        %v4776 = vadd.f32 %v4500, %v4687
        %v4777 = vadd.f32 %v4501, %v4690
        %v4778 = vadd.f32 %v4502, %v4693
        %v4779 = vadd.f32 %v4503, %v4696
        %v4780 = vadd.f32 %v4504, %v4699
        %v4781 = vadd.f32 %v4505, %v4702
        %v4782 = vadd.f32 %v4506, %v4705
        %v4783 = vadd.f32 %v4507, %v4708
        %v4784 = vadd.f32 %v4508, %v4711
        %v4785 = vadd.f32 %v4509, %v4714
        %v4786 = vadd.f32 %v4510, %v4717
        %v4787 = vadd.f32 %v4511, %v4720
        %v4788 = vadd.f32 %v4512, %v4723
        %v4789 = vadd.f32 %v4513, %v4726
        %v4790 = vadd.f32 %v4514, %v4729
        %v4791 = vadd.f32 %v4515, %v4732
        %v4792 = vadd.f32 %v4516, %v4735
        %v4793 = vadd.f32 %v4517, %v4738
        %v4794 = vadd.f32 %v4518, %v4741
        %v4795 = vadd.f32 %v4519, %v4744
        %v4796 = vadd.f32 %v4520, %v4747
        %v4797 = vadd.f32 %v4521, %v4750
        %v4798 = vadd.f32 %v4522, %v4753
        %v4799 = vadd.f32 %v4523, %v4756
        %v4800 = vadd.f32 %v4524, %v4759
        %v4801 = vadd.f32 %v4525, %v4762
        %v4802 = vadd.f32 %v4526, %v4765
        %v4803 = vadd.f32 %v4527, %v4768
        %v4804 = vadd.f32 %v4528, %v4771
        %v4805 = vld [vmem:[%s4529 + $0x1] sm:$0xff]
        %v4806 = vld [vmem:[%s4529 + $0x9] sm:$0xff]
        %v4807 = vld [vmem:[%s4529 + $0x19] sm:$0xff]
        %v4808 = vld [vmem:[%s4529 + $0x21] sm:$0xff]
        %v4809 = vld [vmem:[%s4529 + $0x31] sm:$0xff]
        %v4810 = vld [vmem:[%s4529 + $0x39] sm:$0xff]
        %v4811 = vld [vmem:[%s4529 + $0x49] sm:$0xff]
        %v4812 = vld [vmem:[%s4529 + $0x51] sm:$0xff]
        %v4813 = vld [vmem:[%s4529 + $0x61] sm:$0xff]
        %v4814 = vld [vmem:[%s4529 + $0x69] sm:$0xff]
        %v4815 = vld [vmem:[%s4529 + $0x79] sm:$0xff]
        %v4816 = vld [vmem:[%s4529 + $0x81] sm:$0xff]
        %v4817 = vld [vmem:[%s4529 + $0x91] sm:$0xff]
        %v4818 = vld [vmem:[%s4529 + $0x99] sm:$0xff]
        %v4819 = vld [vmem:[%s4529 + $0xa9] sm:$0xff]
        %v4820 = vld [vmem:[%s4529 + $0xb1] sm:$0xff]
        %v4821 = vld [vmem:[%s4529 + $0xc1] sm:$0xff]
        %v4822 = vld [vmem:[%s4529 + $0xc9] sm:$0xff]
        %v4823 = vld [vmem:[%s4529 + $0xd9] sm:$0xff]
        %v4824 = vld [vmem:[%s4529 + $0xe1] sm:$0xff]
        %v4825 = vld [vmem:[%s4529 + $0xf1] sm:$0xff]
        %v4826 = vld [vmem:[%s4529 + $0xf9] sm:$0xff]
        %v4827 = vld [vmem:[%s4529 + $0x109] sm:$0xff]
        %v4828 = vld [vmem:[%s4529 + $0x111] sm:$0xff]
        %v4829 = vld [vmem:[%s4529 + $0x121] sm:$0xff]
        %v4830 = vld [vmem:[%s4529 + $0x129] sm:$0xff]
        %v4831 = vld [vmem:[%s4529 + $0x139] sm:$0xff]
        %v4832 = vld [vmem:[%s4529 + $0x141] sm:$0xff]
        %v4833 = vld [vmem:[%s4529 + $0x151] sm:$0xff]
        %v4834 = vld [vmem:[%s4529 + $0x159] sm:$0xff]
        %v4835 = vld [vmem:[%s4529 + $0x169] sm:$0xff]
        %v4836 = vld [vmem:[%s4529 + $0x171] sm:$0xff]
        %s4837 = scalar_lea.vmem %s3, 56
        %v4838 = vld [vmem:[%s4837] sm:$0xff]
        %v4840 = vsel %vm2911, %v4805, 0
        %v4843 = vsel %vm2911, %v4806, 0
        %v4846 = vsel %vm2911, %v4807, 0
        %v4849 = vsel %vm2911, %v4808, 0
        %v4852 = vsel %vm2911, %v4809, 0
        %v4855 = vsel %vm2911, %v4810, 0
        %v4858 = vsel %vm2911, %v4811, 0
        %v4861 = vsel %vm2911, %v4812, 0
        %v4864 = vsel %vm2911, %v4813, 0
        %v4867 = vsel %vm2911, %v4814, 0
        %v4870 = vsel %vm2911, %v4815, 0
        %v4873 = vsel %vm2911, %v4816, 0
        %v4876 = vsel %vm2911, %v4817, 0
        %v4879 = vsel %vm2911, %v4818, 0
        %v4882 = vsel %vm2911, %v4819, 0
        %v4885 = vsel %vm2911, %v4820, 0
        %v4888 = vsel %vm2911, %v4821, 0
        %v4891 = vsel %vm2911, %v4822, 0
        %v4894 = vsel %vm2911, %v4823, 0
        %v4897 = vsel %vm2911, %v4824, 0
        %v4900 = vsel %vm2911, %v4825, 0
        %v4903 = vsel %vm2911, %v4826, 0
        %v4906 = vsel %vm2911, %v4827, 0
        %v4909 = vsel %vm2911, %v4828, 0
        %v4912 = vsel %vm2911, %v4829, 0
        %v4915 = vsel %vm2911, %v4830, 0
        %v4918 = vsel %vm2911, %v4831, 0
        %v4921 = vsel %vm2911, %v4832, 0
        %v4924 = vsel %vm2911, %v4833, 0
        %v4927 = vsel %vm2911, %v4834, 0
        %v4930 = vsel %vm2911, %v4835, 0
        %v4933 = vsel %vm2911, %v4836, 0
        %4935 = vmatpush.msra.mxu0 0.0
        %4936 = vmatpush.msra.mxu0 0.0
        %4937 = vmatpush.msra.mxu0 0.0
        %4938 = vmatpush.msra.mxu0 0.0
        %4939 = vmatpush.msra.mxu0 0.0
        %4940 = vmatpush.msra.mxu0 0.0
        %4941 = vmatpush.msra.mxu0 0.0
        %4942 = vmatpush.msra.mxu0 0.0
        %4943 = vmatpush.msra.mxu0 0.0
        %4944 = vmatpush.msra.mxu0 0.0
        %4945 = vmatpush.msra.mxu0 0.0
        %4946 = vmatpush.msra.mxu0 0.0
        %4947 = vmatpush.msra.mxu0 0.0
        %4948 = vmatpush.msra.mxu0 0.0
        %4949 = vmatpush.msra.mxu0 0.0
        %4950 = vmatpush.msra.mxu0 %v4838
        %4951 = vmatmul.f32.gmra.mxu0 %v4840
        %v4952 = vpop.f32.mrf.mxu0
        %v4953 = vadd.f32 0.0, %v4952
        %4954 = vmatmul.f32.gmra.mxu0 %v4843
        %v4955 = vpop.f32.mrf.mxu0
        %v4956 = vadd.f32 0.0, %v4955
        %4957 = vmatmul.f32.gmra.mxu0 %v4846
        %v4958 = vpop.f32.mrf.mxu0
        %v4959 = vadd.f32 0.0, %v4958
        %4960 = vmatmul.f32.gmra.mxu0 %v4849
        %v4961 = vpop.f32.mrf.mxu0
        %v4962 = vadd.f32 0.0, %v4961
        %4963 = vmatmul.f32.gmra.mxu0 %v4852
        %v4964 = vpop.f32.mrf.mxu0
        %v4965 = vadd.f32 0.0, %v4964
        %4966 = vmatmul.f32.gmra.mxu0 %v4855
        %v4967 = vpop.f32.mrf.mxu0
        %v4968 = vadd.f32 0.0, %v4967
        %4969 = vmatmul.f32.gmra.mxu0 %v4858
        %v4970 = vpop.f32.mrf.mxu0
        %v4971 = vadd.f32 0.0, %v4970
        %4972 = vmatmul.f32.gmra.mxu0 %v4861
        %v4973 = vpop.f32.mrf.mxu0
        %v4974 = vadd.f32 0.0, %v4973
        %4975 = vmatmul.f32.gmra.mxu0 %v4864
        %v4976 = vpop.f32.mrf.mxu0
        %v4977 = vadd.f32 0.0, %v4976
        %4978 = vmatmul.f32.gmra.mxu0 %v4867
        %v4979 = vpop.f32.mrf.mxu0
        %v4980 = vadd.f32 0.0, %v4979
        %4981 = vmatmul.f32.gmra.mxu0 %v4870
        %v4982 = vpop.f32.mrf.mxu0
        %v4983 = vadd.f32 0.0, %v4982
        %4984 = vmatmul.f32.gmra.mxu0 %v4873
        %v4985 = vpop.f32.mrf.mxu0
        %v4986 = vadd.f32 0.0, %v4985
        %4987 = vmatmul.f32.gmra.mxu0 %v4876
        %v4988 = vpop.f32.mrf.mxu0
        %v4989 = vadd.f32 0.0, %v4988
        %4990 = vmatmul.f32.gmra.mxu0 %v4879
        %v4991 = vpop.f32.mrf.mxu0
        %v4992 = vadd.f32 0.0, %v4991
        %4993 = vmatmul.f32.gmra.mxu0 %v4882
        %v4994 = vpop.f32.mrf.mxu0
        %v4995 = vadd.f32 0.0, %v4994
        %4996 = vmatmul.f32.gmra.mxu0 %v4885
        %v4997 = vpop.f32.mrf.mxu0
        %v4998 = vadd.f32 0.0, %v4997
        %4999 = vmatmul.f32.gmra.mxu0 %v4888
        %v5000 = vpop.f32.mrf.mxu0
        %v5001 = vadd.f32 0.0, %v5000
        %5002 = vmatmul.f32.gmra.mxu0 %v4891
        %v5003 = vpop.f32.mrf.mxu0
        %v5004 = vadd.f32 0.0, %v5003
        %5005 = vmatmul.f32.gmra.mxu0 %v4894
        %v5006 = vpop.f32.mrf.mxu0
        %v5007 = vadd.f32 0.0, %v5006
        %5008 = vmatmul.f32.gmra.mxu0 %v4897
        %v5009 = vpop.f32.mrf.mxu0
        %v5010 = vadd.f32 0.0, %v5009
        %5011 = vmatmul.f32.gmra.mxu0 %v4900
        %v5012 = vpop.f32.mrf.mxu0
        %v5013 = vadd.f32 0.0, %v5012
        %5014 = vmatmul.f32.gmra.mxu0 %v4903
        %v5015 = vpop.f32.mrf.mxu0
        %v5016 = vadd.f32 0.0, %v5015
        %5017 = vmatmul.f32.gmra.mxu0 %v4906
        %v5018 = vpop.f32.mrf.mxu0
        %v5019 = vadd.f32 0.0, %v5018
        %5020 = vmatmul.f32.gmra.mxu0 %v4909
        %v5021 = vpop.f32.mrf.mxu0
        %v5022 = vadd.f32 0.0, %v5021
        %5023 = vmatmul.f32.gmra.mxu0 %v4912
        %v5024 = vpop.f32.mrf.mxu0
        %v5025 = vadd.f32 0.0, %v5024
        %5026 = vmatmul.f32.gmra.mxu0 %v4915
        %v5027 = vpop.f32.mrf.mxu0
        %v5028 = vadd.f32 0.0, %v5027
        %5029 = vmatmul.f32.gmra.mxu0 %v4918
        %v5030 = vpop.f32.mrf.mxu0
        %v5031 = vadd.f32 0.0, %v5030
        %5032 = vmatmul.f32.gmra.mxu0 %v4921
        %v5033 = vpop.f32.mrf.mxu0
        %v5034 = vadd.f32 0.0, %v5033
        %5035 = vmatmul.f32.gmra.mxu0 %v4924
        %v5036 = vpop.f32.mrf.mxu0
        %v5037 = vadd.f32 0.0, %v5036
        %5038 = vmatmul.f32.gmra.mxu0 %v4927
        %v5039 = vpop.f32.mrf.mxu0
        %v5040 = vadd.f32 0.0, %v5039
        %5041 = vmatmul.f32.gmra.mxu0 %v4930
        %v5042 = vpop.f32.mrf.mxu0
        %v5043 = vadd.f32 0.0, %v5042
        %5044 = vmatmul.f32.gmra.mxu0 %v4933
        %v5045 = vpop.f32.mrf.mxu0
        %v5046 = vadd.f32 0.0, %v5045
        %5047 = vdwg.mxu0
        %v5048 = vadd.f32 %v4773, %v4953
        %v5049 = vadd.f32 %v4774, %v4956
        %v5050 = vadd.f32 %v4775, %v4959
        %v5051 = vadd.f32 %v4776, %v4962
        %v5052 = vadd.f32 %v4777, %v4965
        %v5053 = vadd.f32 %v4778, %v4968
        %v5054 = vadd.f32 %v4779, %v4971
        %v5055 = vadd.f32 %v4780, %v4974
        %v5056 = vadd.f32 %v4781, %v4977
        %v5057 = vadd.f32 %v4782, %v4980
        %v5058 = vadd.f32 %v4783, %v4983
        %v5059 = vadd.f32 %v4784, %v4986
        %v5060 = vadd.f32 %v4785, %v4989
        %v5061 = vadd.f32 %v4786, %v4992
        %v5062 = vadd.f32 %v4787, %v4995
        %v5063 = vadd.f32 %v4788, %v4998
        %v5064 = vadd.f32 %v4789, %v5001
        %v5065 = vadd.f32 %v4790, %v5004
        %v5066 = vadd.f32 %v4791, %v5007
        %v5067 = vadd.f32 %v4792, %v5010
        %v5068 = vadd.f32 %v4793, %v5013
        %v5069 = vadd.f32 %v4794, %v5016
        %v5070 = vadd.f32 %v4795, %v5019
        %v5071 = vadd.f32 %v4796, %v5022
        %v5072 = vadd.f32 %v4797, %v5025
        %v5073 = vadd.f32 %v4798, %v5028
        %v5074 = vadd.f32 %v4799, %v5031
        %v5075 = vadd.f32 %v4800, %v5034
        %v5076 = vadd.f32 %v4801, %v5037
        %v5077 = vadd.f32 %v4802, %v5040
        %v5078 = vadd.f32 %v4803, %v5043
        %v5079 = vadd.f32 %v4804, %v5046
        %v5080 = vld [vmem:[%s4529 + $0x2] sm:$0xff]
        %v5081 = vld [vmem:[%s4529 + $0xa] sm:$0xff]
        %v5082 = vld [vmem:[%s4529 + $0x1a] sm:$0xff]
        %v5083 = vld [vmem:[%s4529 + $0x22] sm:$0xff]
        %v5084 = vld [vmem:[%s4529 + $0x32] sm:$0xff]
        %v5085 = vld [vmem:[%s4529 + $0x3a] sm:$0xff]
        %v5086 = vld [vmem:[%s4529 + $0x4a] sm:$0xff]
        %v5087 = vld [vmem:[%s4529 + $0x52] sm:$0xff]
        %v5088 = vld [vmem:[%s4529 + $0x62] sm:$0xff]
        %v5089 = vld [vmem:[%s4529 + $0x6a] sm:$0xff]
        %v5090 = vld [vmem:[%s4529 + $0x7a] sm:$0xff]
        %v5091 = vld [vmem:[%s4529 + $0x82] sm:$0xff]
        %v5092 = vld [vmem:[%s4529 + $0x92] sm:$0xff]
        %v5093 = vld [vmem:[%s4529 + $0x9a] sm:$0xff]
        %v5094 = vld [vmem:[%s4529 + $0xaa] sm:$0xff]
        %v5095 = vld [vmem:[%s4529 + $0xb2] sm:$0xff]
        %v5096 = vld [vmem:[%s4529 + $0xc2] sm:$0xff]
        %v5097 = vld [vmem:[%s4529 + $0xca] sm:$0xff]
        %v5098 = vld [vmem:[%s4529 + $0xda] sm:$0xff]
        %v5099 = vld [vmem:[%s4529 + $0xe2] sm:$0xff]
        %v5100 = vld [vmem:[%s4529 + $0xf2] sm:$0xff]
        %v5101 = vld [vmem:[%s4529 + $0xfa] sm:$0xff]
        %v5102 = vld [vmem:[%s4529 + $0x10a] sm:$0xff]
        %v5103 = vld [vmem:[%s4529 + $0x112] sm:$0xff]
        %v5104 = vld [vmem:[%s4529 + $0x122] sm:$0xff]
        %v5105 = vld [vmem:[%s4529 + $0x12a] sm:$0xff]
        %v5106 = vld [vmem:[%s4529 + $0x13a] sm:$0xff]
        %v5107 = vld [vmem:[%s4529 + $0x142] sm:$0xff]
        %v5108 = vld [vmem:[%s4529 + $0x152] sm:$0xff]
        %v5109 = vld [vmem:[%s4529 + $0x15a] sm:$0xff]
        %v5110 = vld [vmem:[%s4529 + $0x16a] sm:$0xff]
        %v5111 = vld [vmem:[%s4529 + $0x172] sm:$0xff]
        %s5112 = scalar_lea.vmem %s3, 64
        %v5113 = vld [vmem:[%s5112] sm:$0xff]
        %v5115 = vsel %vm2911, %v5080, 0
        %v5118 = vsel %vm2911, %v5081, 0
        %v5121 = vsel %vm2911, %v5082, 0
        %v5124 = vsel %vm2911, %v5083, 0
        %v5127 = vsel %vm2911, %v5084, 0
        %v5130 = vsel %vm2911, %v5085, 0
        %v5133 = vsel %vm2911, %v5086, 0
        %v5136 = vsel %vm2911, %v5087, 0
        %v5139 = vsel %vm2911, %v5088, 0
        %v5142 = vsel %vm2911, %v5089, 0
        %v5145 = vsel %vm2911, %v5090, 0
        %v5148 = vsel %vm2911, %v5091, 0
        %v5151 = vsel %vm2911, %v5092, 0
        %v5154 = vsel %vm2911, %v5093, 0
        %v5157 = vsel %vm2911, %v5094, 0
        %v5160 = vsel %vm2911, %v5095, 0
        %v5163 = vsel %vm2911, %v5096, 0
        %v5166 = vsel %vm2911, %v5097, 0
        %v5169 = vsel %vm2911, %v5098, 0
        %v5172 = vsel %vm2911, %v5099, 0
        %v5175 = vsel %vm2911, %v5100, 0
        %v5178 = vsel %vm2911, %v5101, 0
        %v5181 = vsel %vm2911, %v5102, 0
        %v5184 = vsel %vm2911, %v5103, 0
        %v5187 = vsel %vm2911, %v5104, 0
        %v5190 = vsel %vm2911, %v5105, 0
        %v5193 = vsel %vm2911, %v5106, 0
        %v5196 = vsel %vm2911, %v5107, 0
        %v5199 = vsel %vm2911, %v5108, 0
        %v5202 = vsel %vm2911, %v5109, 0
        %v5205 = vsel %vm2911, %v5110, 0
        %v5208 = vsel %vm2911, %v5111, 0
        %5210 = vmatpush.msra.mxu0 0.0
        %5211 = vmatpush.msra.mxu0 0.0
        %5212 = vmatpush.msra.mxu0 0.0
        %5213 = vmatpush.msra.mxu0 0.0
        %5214 = vmatpush.msra.mxu0 0.0
        %5215 = vmatpush.msra.mxu0 0.0
        %5216 = vmatpush.msra.mxu0 0.0
        %5217 = vmatpush.msra.mxu0 0.0
        %5218 = vmatpush.msra.mxu0 0.0
        %5219 = vmatpush.msra.mxu0 0.0
        %5220 = vmatpush.msra.mxu0 0.0
        %5221 = vmatpush.msra.mxu0 0.0
        %5222 = vmatpush.msra.mxu0 0.0
        %5223 = vmatpush.msra.mxu0 0.0
        %5224 = vmatpush.msra.mxu0 0.0
        %5225 = vmatpush.msra.mxu0 %v5113
        %5226 = vmatmul.f32.gmra.mxu0 %v5115
        %v5227 = vpop.f32.mrf.mxu0
        %v5228 = vadd.f32 0.0, %v5227
        %5229 = vmatmul.f32.gmra.mxu0 %v5118
        %v5230 = vpop.f32.mrf.mxu0
        %v5231 = vadd.f32 0.0, %v5230
        %5232 = vmatmul.f32.gmra.mxu0 %v5121
        %v5233 = vpop.f32.mrf.mxu0
        %v5234 = vadd.f32 0.0, %v5233
        %5235 = vmatmul.f32.gmra.mxu0 %v5124
        %v5236 = vpop.f32.mrf.mxu0
        %v5237 = vadd.f32 0.0, %v5236
        %5238 = vmatmul.f32.gmra.mxu0 %v5127
        %v5239 = vpop.f32.mrf.mxu0
        %v5240 = vadd.f32 0.0, %v5239
        %5241 = vmatmul.f32.gmra.mxu0 %v5130
        %v5242 = vpop.f32.mrf.mxu0
        %v5243 = vadd.f32 0.0, %v5242
        %5244 = vmatmul.f32.gmra.mxu0 %v5133
        %v5245 = vpop.f32.mrf.mxu0
        %v5246 = vadd.f32 0.0, %v5245
        %5247 = vmatmul.f32.gmra.mxu0 %v5136
        %v5248 = vpop.f32.mrf.mxu0
        %v5249 = vadd.f32 0.0, %v5248
        %5250 = vmatmul.f32.gmra.mxu0 %v5139
        %v5251 = vpop.f32.mrf.mxu0
        %v5252 = vadd.f32 0.0, %v5251
        %5253 = vmatmul.f32.gmra.mxu0 %v5142
        %v5254 = vpop.f32.mrf.mxu0
        %v5255 = vadd.f32 0.0, %v5254
        %5256 = vmatmul.f32.gmra.mxu0 %v5145
        %v5257 = vpop.f32.mrf.mxu0
        %v5258 = vadd.f32 0.0, %v5257
        %5259 = vmatmul.f32.gmra.mxu0 %v5148
        %v5260 = vpop.f32.mrf.mxu0
        %v5261 = vadd.f32 0.0, %v5260
        %5262 = vmatmul.f32.gmra.mxu0 %v5151
        %v5263 = vpop.f32.mrf.mxu0
        %v5264 = vadd.f32 0.0, %v5263
        %5265 = vmatmul.f32.gmra.mxu0 %v5154
        %v5266 = vpop.f32.mrf.mxu0
        %v5267 = vadd.f32 0.0, %v5266
        %5268 = vmatmul.f32.gmra.mxu0 %v5157
        %v5269 = vpop.f32.mrf.mxu0
        %v5270 = vadd.f32 0.0, %v5269
        %5271 = vmatmul.f32.gmra.mxu0 %v5160
        %v5272 = vpop.f32.mrf.mxu0
        %v5273 = vadd.f32 0.0, %v5272
        %5274 = vmatmul.f32.gmra.mxu0 %v5163
        %v5275 = vpop.f32.mrf.mxu0
        %v5276 = vadd.f32 0.0, %v5275
        %5277 = vmatmul.f32.gmra.mxu0 %v5166
        %v5278 = vpop.f32.mrf.mxu0
        %v5279 = vadd.f32 0.0, %v5278
        %5280 = vmatmul.f32.gmra.mxu0 %v5169
        %v5281 = vpop.f32.mrf.mxu0
        %v5282 = vadd.f32 0.0, %v5281
        %5283 = vmatmul.f32.gmra.mxu0 %v5172
        %v5284 = vpop.f32.mrf.mxu0
        %v5285 = vadd.f32 0.0, %v5284
        %5286 = vmatmul.f32.gmra.mxu0 %v5175
        %v5287 = vpop.f32.mrf.mxu0
        %v5288 = vadd.f32 0.0, %v5287
        %5289 = vmatmul.f32.gmra.mxu0 %v5178
        %v5290 = vpop.f32.mrf.mxu0
        %v5291 = vadd.f32 0.0, %v5290
        %5292 = vmatmul.f32.gmra.mxu0 %v5181
        %v5293 = vpop.f32.mrf.mxu0
        %v5294 = vadd.f32 0.0, %v5293
        %5295 = vmatmul.f32.gmra.mxu0 %v5184
        %v5296 = vpop.f32.mrf.mxu0
        %v5297 = vadd.f32 0.0, %v5296
        %5298 = vmatmul.f32.gmra.mxu0 %v5187
        %v5299 = vpop.f32.mrf.mxu0
        %v5300 = vadd.f32 0.0, %v5299
        %5301 = vmatmul.f32.gmra.mxu0 %v5190
        %v5302 = vpop.f32.mrf.mxu0
        %v5303 = vadd.f32 0.0, %v5302
        %5304 = vmatmul.f32.gmra.mxu0 %v5193
        %v5305 = vpop.f32.mrf.mxu0
        %v5306 = vadd.f32 0.0, %v5305
        %5307 = vmatmul.f32.gmra.mxu0 %v5196
        %v5308 = vpop.f32.mrf.mxu0
        %v5309 = vadd.f32 0.0, %v5308
        %5310 = vmatmul.f32.gmra.mxu0 %v5199
        %v5311 = vpop.f32.mrf.mxu0
        %v5312 = vadd.f32 0.0, %v5311
        %5313 = vmatmul.f32.gmra.mxu0 %v5202
        %v5314 = vpop.f32.mrf.mxu0
        %v5315 = vadd.f32 0.0, %v5314
        %5316 = vmatmul.f32.gmra.mxu0 %v5205
        %v5317 = vpop.f32.mrf.mxu0
        %v5318 = vadd.f32 0.0, %v5317
        %5319 = vmatmul.f32.gmra.mxu0 %v5208
        %v5320 = vpop.f32.mrf.mxu0
        %v5321 = vadd.f32 0.0, %v5320
        %5322 = vdwg.mxu0
        %v5323 = vadd.f32 %v5048, %v5228
        %v5324 = vadd.f32 %v5049, %v5231
        %v5325 = vadd.f32 %v5050, %v5234
        %v5326 = vadd.f32 %v5051, %v5237
        %v5327 = vadd.f32 %v5052, %v5240
        %v5328 = vadd.f32 %v5053, %v5243
        %v5329 = vadd.f32 %v5054, %v5246
        %v5330 = vadd.f32 %v5055, %v5249
        %v5331 = vadd.f32 %v5056, %v5252
        %v5332 = vadd.f32 %v5057, %v5255
        %v5333 = vadd.f32 %v5058, %v5258
        %v5334 = vadd.f32 %v5059, %v5261
        %v5335 = vadd.f32 %v5060, %v5264
        %v5336 = vadd.f32 %v5061, %v5267
        %v5337 = vadd.f32 %v5062, %v5270
        %v5338 = vadd.f32 %v5063, %v5273
        %v5339 = vadd.f32 %v5064, %v5276
        %v5340 = vadd.f32 %v5065, %v5279
        %v5341 = vadd.f32 %v5066, %v5282
        %v5342 = vadd.f32 %v5067, %v5285
        %v5343 = vadd.f32 %v5068, %v5288
        %v5344 = vadd.f32 %v5069, %v5291
        %v5345 = vadd.f32 %v5070, %v5294
        %v5346 = vadd.f32 %v5071, %v5297
        %v5347 = vadd.f32 %v5072, %v5300
        %v5348 = vadd.f32 %v5073, %v5303
        %v5349 = vadd.f32 %v5074, %v5306
        %v5350 = vadd.f32 %v5075, %v5309
        %v5351 = vadd.f32 %v5076, %v5312
        %v5352 = vadd.f32 %v5077, %v5315
        %v5353 = vadd.f32 %v5078, %v5318
        %v5354 = vadd.f32 %v5079, %v5321
        %v5355 = vld [vmem:[%s4] sm:$0x1]
        %v5357 = vperm.slane %v5355, 0
        %v5359 = vadd.f32 %v5323, %v5357
        %v5360 = vadd.f32 %v5324, %v5357
        %v5361 = vadd.f32 %v5325, %v5357
        %v5362 = vadd.f32 %v5326, %v5357
        %v5363 = vadd.f32 %v5327, %v5357
        %v5364 = vadd.f32 %v5328, %v5357
        %v5365 = vadd.f32 %v5329, %v5357
        %v5366 = vadd.f32 %v5330, %v5357
        %v5367 = vadd.f32 %v5331, %v5357
        %v5368 = vadd.f32 %v5332, %v5357
        %v5369 = vadd.f32 %v5333, %v5357
        %v5370 = vadd.f32 %v5334, %v5357
        %v5371 = vadd.f32 %v5335, %v5357
        %v5372 = vadd.f32 %v5336, %v5357
        %v5373 = vadd.f32 %v5337, %v5357
        %v5374 = vadd.f32 %v5338, %v5357
        %v5375 = vadd.f32 %v5339, %v5357
        %v5376 = vadd.f32 %v5340, %v5357
        %v5377 = vadd.f32 %v5341, %v5357
        %v5378 = vadd.f32 %v5342, %v5357
        %v5379 = vadd.f32 %v5343, %v5357
        %v5380 = vadd.f32 %v5344, %v5357
        %v5381 = vadd.f32 %v5345, %v5357
        %v5382 = vadd.f32 %v5346, %v5357
        %v5383 = vadd.f32 %v5347, %v5357
        %v5384 = vadd.f32 %v5348, %v5357
        %v5385 = vadd.f32 %v5349, %v5357
        %v5386 = vadd.f32 %v5350, %v5357
        %v5387 = vadd.f32 %v5351, %v5357
        %v5388 = vadd.f32 %v5352, %v5357
        %v5389 = vadd.f32 %v5353, %v5357
        %v5390 = vadd.f32 %v5354, %v5357
        %v5391 = vmax.f32 %v5359, 0.0
        %v5392 = vmax.f32 %v5360, 0.0
        %v5393 = vmax.f32 %v5361, 0.0
        %v5394 = vmax.f32 %v5362, 0.0
        %v5395 = vmax.f32 %v5363, 0.0
        %v5396 = vmax.f32 %v5364, 0.0
        %v5397 = vmax.f32 %v5365, 0.0
        %v5398 = vmax.f32 %v5366, 0.0
        %v5399 = vmax.f32 %v5367, 0.0
        %v5400 = vmax.f32 %v5368, 0.0
        %v5401 = vmax.f32 %v5369, 0.0
        %v5402 = vmax.f32 %v5370, 0.0
        %v5403 = vmax.f32 %v5371, 0.0
        %v5404 = vmax.f32 %v5372, 0.0
        %v5405 = vmax.f32 %v5373, 0.0
        %v5406 = vmax.f32 %v5374, 0.0
        %v5407 = vmax.f32 %v5375, 0.0
        %v5408 = vmax.f32 %v5376, 0.0
        %v5409 = vmax.f32 %v5377, 0.0
        %v5410 = vmax.f32 %v5378, 0.0
        %v5411 = vmax.f32 %v5379, 0.0
        %v5412 = vmax.f32 %v5380, 0.0
        %v5413 = vmax.f32 %v5381, 0.0
        %v5414 = vmax.f32 %v5382, 0.0
        %v5415 = vmax.f32 %v5383, 0.0
        %v5416 = vmax.f32 %v5384, 0.0
        %v5417 = vmax.f32 %v5385, 0.0
        %v5418 = vmax.f32 %v5386, 0.0
        %v5419 = vmax.f32 %v5387, 0.0
        %v5420 = vmax.f32 %v5388, 0.0
        %v5421 = vmax.f32 %v5389, 0.0
        %v5422 = vmax.f32 %v5390, 0.0
        %v5423 = vtanh.pop %v5391
        %v5424 = vtanh.pop %v5392
        %v5425 = vtanh.pop %v5393
        %v5426 = vtanh.pop %v5394
        %v5427 = vtanh.pop %v5395
        %v5428 = vtanh.pop %v5396
        %v5429 = vtanh.pop %v5397
        %v5430 = vtanh.pop %v5398
        %v5431 = vtanh.pop %v5399
        %v5432 = vtanh.pop %v5400
        %v5433 = vtanh.pop %v5401
        %v5434 = vtanh.pop %v5402
        %v5435 = vtanh.pop %v5403
        %v5436 = vtanh.pop %v5404
        %v5437 = vtanh.pop %v5405
        %v5438 = vtanh.pop %v5406
        %v5439 = vtanh.pop %v5407
        %v5440 = vtanh.pop %v5408
        %v5441 = vtanh.pop %v5409
        %v5442 = vtanh.pop %v5410
        %v5443 = vtanh.pop %v5411
        %v5444 = vtanh.pop %v5412
        %v5445 = vtanh.pop %v5413
        %v5446 = vtanh.pop %v5414
        %v5447 = vtanh.pop %v5415
        %v5448 = vtanh.pop %v5416
        %v5449 = vtanh.pop %v5417
        %v5450 = vtanh.pop %v5418
        %v5451 = vtanh.pop %v5419
        %v5452 = vtanh.pop %v5420
        %v5453 = vtanh.pop %v5421
        %v5454 = vtanh.pop %v5422
        %vm5455 = vcmask 31744
        %5456 = vst.msk [vmem:[%s246] sm:$0xff] %vm5455, %v5423
        %5457 = vst.msk [vmem:[%s246 + $0x8] sm:$0xff] %vm5455, %v5424
        %5458 = vst.msk [vmem:[%s246 + $0x10] sm:$0xff] %vm5455, %v5425
        %5459 = vst.msk [vmem:[%s246 + $0x18] sm:$0xff] %vm5455, %v5426
        %5460 = vst.msk [vmem:[%s246 + $0x20] sm:$0xff] %vm5455, %v5427
        %5461 = vst.msk [vmem:[%s246 + $0x28] sm:$0xff] %vm5455, %v5428
        %5462 = vst.msk [vmem:[%s246 + $0x30] sm:$0xff] %vm5455, %v5429
        %5463 = vst.msk [vmem:[%s246 + $0x38] sm:$0xff] %vm5455, %v5430
        %5464 = vst.msk [vmem:[%s246 + $0x40] sm:$0xff] %vm5455, %v5431
        %5465 = vst.msk [vmem:[%s246 + $0x48] sm:$0xff] %vm5455, %v5432
        %5466 = vst.msk [vmem:[%s246 + $0x50] sm:$0xff] %vm5455, %v5433
        %5467 = vst.msk [vmem:[%s246 + $0x58] sm:$0xff] %vm5455, %v5434
        %5468 = vst.msk [vmem:[%s246 + $0x60] sm:$0xff] %vm5455, %v5435
        %5469 = vst.msk [vmem:[%s246 + $0x68] sm:$0xff] %vm5455, %v5436
        %5470 = vst.msk [vmem:[%s246 + $0x70] sm:$0xff] %vm5455, %v5437
        %5471 = vst.msk [vmem:[%s246 + $0x78] sm:$0xff] %vm5455, %v5438
        %5472 = vst.msk [vmem:[%s246 + $0x80] sm:$0xff] %vm5455, %v5439
        %5473 = vst.msk [vmem:[%s246 + $0x88] sm:$0xff] %vm5455, %v5440
        %5474 = vst.msk [vmem:[%s246 + $0x90] sm:$0xff] %vm5455, %v5441
        %5475 = vst.msk [vmem:[%s246 + $0x98] sm:$0xff] %vm5455, %v5442
        %5476 = vst.msk [vmem:[%s246 + $0xa0] sm:$0xff] %vm5455, %v5443
        %5477 = vst.msk [vmem:[%s246 + $0xa8] sm:$0xff] %vm5455, %v5444
        %5478 = vst.msk [vmem:[%s246 + $0xb0] sm:$0xff] %vm5455, %v5445
        %5479 = vst.msk [vmem:[%s246 + $0xb8] sm:$0xff] %vm5455, %v5446
        %5480 = vst.msk [vmem:[%s246 + $0xc0] sm:$0xff] %vm5455, %v5447
        %5481 = vst.msk [vmem:[%s246 + $0xc8] sm:$0xff] %vm5455, %v5448
        %5482 = vst.msk [vmem:[%s246 + $0xd0] sm:$0xff] %vm5455, %v5449
        %5483 = vst.msk [vmem:[%s246 + $0xd8] sm:$0xff] %vm5455, %v5450
        %5484 = vst.msk [vmem:[%s246 + $0xe0] sm:$0xff] %vm5455, %v5451
        %5485 = vst.msk [vmem:[%s246 + $0xe8] sm:$0xff] %vm5455, %v5452
        %5486 = vst.msk [vmem:[%s246 + $0xf0] sm:$0xff] %vm5455, %v5453
        %5487 = vst.msk [vmem:[%s246 + $0xf8] sm:$0xff] %vm5455, %v5454
        %p5488 = scmp.lt.s32.totalorder %s19, 1
        %s5489 = scalar_select %p5488, %s19, 1
        %s5490 = smul.addr %s5489, 32
        %s5491 = smul.addr %s5490, 8
        %s5492 = scalar_lea.vmem %s5, %s5491
        // Predicated region
        $region45: #{tpu_custom_call.1} parent=39 // pred_check
          %p5493 = pneg %p147
        $region46: #{tpu_custom_call.1} parent=39 // pred_check_branch
          %5495 = sbr.rel (%p5493) target = $region48
        $region47: #{tpu_custom_call.1} parent=39 // pred_region
          _
        $region48: #{tpu_custom_call.1} parent=39 // pred_fallthru
          _
      $region40: #{tpu_custom_call.1} parent=5 // pred_fallthru
        _
      %p5496 = scmp.le.s32.totalorder 2, %s14
      // Predicated region
      $region49: #{tpu_custom_call.1} parent=5 // pred_check
        %p5497 = pneg %p5496
      $region50: #{tpu_custom_call.1} parent=5 // pred_check_branch
        %5499 = sbr.rel (%p5497) target = $region52
      $region51: #{tpu_custom_call.1} parent=5 // pred_region
        %s5500 = ssub.s32 %s14, 2
        // Predicated region
        $region53: #{tpu_custom_call.1} parent=51 // pred_check
          %p5501 = pneg %p153
        $region54: #{tpu_custom_call.1} parent=51 // pred_check_branch
          %5503 = sbr.rel (%p5501) target = $region56
        $region55: #{tpu_custom_call.1} parent=51 // pred_region
          %p5504 = scmp.lt.s32.totalorder %s20, 1
          %s5505 = scalar_select %p5504, %s20, 1
          %s5506 = smul.addr %s5505, 32
          %s5507 = smul.addr %s5506, 8
          %s5508 = scalar_lea.vmem %s5, %s5507
        $region56: #{tpu_custom_call.1} parent=51 // pred_fallthru
          _
      $region52: #{tpu_custom_call.1} parent=5 // pred_fallthru
        _
    $region6: #{tpu_custom_call.1} parent=1 // loop_footer
      %s18 = sadd.s32 1, %s14
    $region7: #{tpu_custom_call.1} parent=1 // loop_footer_branch
      %13 = sbr.rel target = $region3
    $region8: #{tpu_custom_call.1} parent=1 // loop_exit
      _
    %5509 = vsyncpa [#allocation5], 1
    %s5510 = scalar_lea.sflag [#allocation5], 1
    %5511 = vsyncpa %s5510, 1

</llo_original>
